<compile_context>
chip_gen: v7x
topology: tpu7x:2x2x1
jax: 0.10.0
libtpu: 0.0.40
codegen_flags: <defaults>
</compile_context>

<pallas_src>
import jax
import jax.numpy as jnp
from jax.experimental import pallas as pl
from jax.experimental.pallas import tpu as pltpu

EMB = 300      # embedding dim (PyTorch nn.RNN input size)
HID = 150      # hidden size
EMB_P = 384    # EMB padded to a multiple of 128
HID_P = 256    # HID padded to a multiple of 128
OUT_P = 128    # head output padded to one full lane group (lane-dense store)


def rnn1_kernel(x_ref,       # (T*B, EMB_P)    bf16  VMEM  time-major embedded sequence
                wih1_ref,    # (EMB_P, HID_P)  bf16  VMEM  layer-0 input weights (pre-T, padded)
                whh1_hbm,    # (HID_P, HID_P)  bf16  HBM   layer-0 recurrent weights
                b1_ref,      # (1, HID_P)      f32   VMEM  layer-0 combined bias (b_ih + b_hh)
                w21_hbm,     # (HID_P, HID_P)  bf16  HBM   layer-1 input weights  (W_ih_l1^T)
                w22_hbm,     # (HID_P, HID_P)  bf16  HBM   layer-1 recurrent wts   (W_hh_l1^T)
                b2_ref,      # (1, HID_P)      f32   VMEM  layer-1 combined bias
                wl1_hbm,     # (HID_P, HID_P)  bf16  HBM   head linear-1 weights
                bl1_ref,     # (1, HID_P)      f32   VMEM
                wl2_hbm,     # (HID_P, OUT_P)  bf16  HBM   head linear-2 weights (col 0 real)
                bl2_ref,     # (1, OUT_P)      f32   VMEM
                out_ref,     # (B, OUT_P)      f32   VMEM  column 0 holds the result
                ix1_ref,     # (T*B, HID_P)    f32   VMEM scratch: Phase-1 projection
                whh1_v, w21_v, w22_v, wl1_v, wl2_v,   # VMEM scratch landing buffers
                sem):        # DMA semaphores (5,)
    B = out_ref.shape[0]
    T = x_ref.shape[0] // B
    f32 = jnp.float32
    bf16 = jnp.bfloat16

    # ---- Kick off async copies of late-used weights; hide them behind Phase 1 / recurrence.
    cp_whh1 = pltpu.make_async_copy(whh1_hbm, whh1_v, sem.at[0]); cp_whh1.start()
    cp_w21 = pltpu.make_async_copy(w21_hbm, w21_v, sem.at[1]); cp_w21.start()
    cp_w22 = pltpu.make_async_copy(w22_hbm, w22_v, sem.at[2]); cp_w22.start()
    cp_wl1 = pltpu.make_async_copy(wl1_hbm, wl1_v, sem.at[3]); cp_wl1.start()
    cp_wl2 = pltpu.make_async_copy(wl2_hbm, wl2_v, sem.at[4]); cp_wl2.start()

    # ---- Phase 1: time-parallel input projection (one big MXU call) + bias fold, staged
    #      in a VMEM scratch so the unrolled recurrence doesn't keep 16 vregs of ix1 live.
    ix1_ref[...] = (
        jnp.dot(x_ref[...], wih1_ref[...], preferred_element_type=f32) + b1_ref[...]
    )
    # row block [t*B:(t+1)*B] of ix1 is the layer-0 input term at step t.

    # Hoist broadcasts out of the unrolled loop (JAX does not CSE broadcast_in_dim).
    b2 = jnp.broadcast_to(b2_ref[...], (B, HID_P))

    # ---- Phase 2: sequential recurrence, fully unrolled; step 0 peeled (h_prev == 0).
    h1 = jnp.tanh(ix1_ref[0:B, :])                      # rec term is 0 at t=0
    cp_w21.wait()                                       # first use of W_ih_l1
    h2 = jnp.tanh(jnp.dot(h1.astype(bf16), w21_v[...], preferred_element_type=f32) + b2)

    cp_whh1.wait()                                      # first use at t=1
    cp_w22.wait()
    for t in range(1, T):
        # h2_prev partial depends only on last step's h2 -> overlaps layer-0's tanh.
        part2 = jnp.dot(h2.astype(bf16), w22_v[...], preferred_element_type=f32)
        rec1 = jnp.dot(h1.astype(bf16), whh1_v[...], preferred_element_type=f32)
        h1 = jnp.tanh(ix1_ref[t * B:(t + 1) * B, :] + rec1)
        part1 = jnp.dot(h1.astype(bf16), w21_v[...], preferred_element_type=f32)
        h2 = jnp.tanh(part1 + part2 + b2)

    # ---- Phase 3: MLP head on the last top-layer hidden state; lane-dense store.
    cp_wl1.wait()                                       # fully hidden behind the recurrence
    z = jnp.maximum(
        jnp.dot(h2.astype(bf16), wl1_v[...], preferred_element_type=f32) + bl1_ref[...],
        0.0,
    )
    cp_wl2.wait()
    out_ref[...] = (
        jnp.dot(z.astype(bf16), wl2_v[...], preferred_element_type=f32) + bl2_ref[...]
    )


@jax.jit
def rnn1_forward(x_ids, emb_table_padded, kparams):
    """x_ids: int32 (B, T) token ids. emb_table_padded: (V, EMB_P) bf16. Returns f32 (B,)."""
    B, T = x_ids.shape
    # Embedding lookup, gathered directly in time-major order (transpose the tiny id matrix,
    # not the (B,T,EMB) activations) -- mirrors x = embeddings(x); x = transpose(x, 0, 1).
    x = jnp.take(emb_table_padded, x_ids.T, axis=0).reshape(T * B, EMB_P)  # (T*B, EMB_P) bf16

    vmem = pltpu.MemorySpace.VMEM
    out = pl.pallas_call(
        rnn1_kernel,
        out_shape=jax.ShapeDtypeStruct((B, OUT_P), jnp.float32),
        # No grid: single invocation; total VMEM footprint ~1.5 MiB (fits every generation).
        in_specs=[
            pl.BlockSpec(memory_space=vmem),    # x        (needed immediately)
            pl.BlockSpec(memory_space=vmem),    # wih1     (needed immediately)
            pl.BlockSpec(memory_space=pl.ANY),  # whh1     -> manual async copy
            pl.BlockSpec(memory_space=vmem),    # b1
            pl.BlockSpec(memory_space=pl.ANY),  # w21      -> manual async copy
            pl.BlockSpec(memory_space=pl.ANY),  # w22      -> manual async copy
            pl.BlockSpec(memory_space=vmem),    # b2
            pl.BlockSpec(memory_space=pl.ANY),  # wl1      -> manual async copy
            pl.BlockSpec(memory_space=vmem),    # bl1
            pl.BlockSpec(memory_space=pl.ANY),  # wl2      -> manual async copy
            pl.BlockSpec(memory_space=vmem),    # bl2
        ],
        out_specs=pl.BlockSpec(memory_space=vmem),
        scratch_shapes=[
            pltpu.VMEM((T * B, HID_P), jnp.float32),    # ix1 staging
            pltpu.VMEM((HID_P, HID_P), jnp.bfloat16),   # whh1 landing
            pltpu.VMEM((HID_P, HID_P), jnp.bfloat16),   # w21 landing
            pltpu.VMEM((HID_P, HID_P), jnp.bfloat16),   # w22 landing
            pltpu.VMEM((HID_P, HID_P), jnp.bfloat16),   # wl1 landing
            pltpu.VMEM((HID_P, OUT_P), jnp.bfloat16),   # wl2 landing
            pltpu.SemaphoreType.DMA((5,)),
        ],
    )(x, *kparams)
    return out[:, 0]


# ----------------------------------------------------------------------------- parameters

def init_params(key):
    """Deterministic synthetic parameters with PyTorch nn.RNN / nn.Linear shapes."""
    ks = jax.random.split(key, 12)
    s = 0.05
    n = lambda k, shape: s * jax.random.normal(k, shape, jnp.float32)
    return (
        n(ks[0], (HID, EMB)),    # W_ih_l0
        n(ks[1], (HID, HID)),    # W_hh_l0
        n(ks[2], (HID,)),        # b_ih_l0
        n(ks[3], (HID,)),        # b_hh_l0
        n(ks[4], (HID, HID)),    # W_ih_l1
        n(ks[5], (HID, HID)),    # W_hh_l1
        n(ks[6], (HID,)),        # b_ih_l1
        n(ks[7], (HID,)),        # b_hh_l1
        n(ks[8], (HID, HID)),    # l1.weight
        n(ks[9], (HID,)),        # l1.bias
        n(ks[10], (1, HID)),     # l2.weight
        n(ks[11], (1,)),         # l2.bias
    )


def _pad2(w, shape):
    out = jnp.zeros(shape, jnp.float32)
    return out.at[: w.shape[0], : w.shape[1]].set(w)


def prepare_kernel_params(raw):
    """Pre-transpose, zero-pad to lane multiples, split layer-1 weights into the two halves
    the kernel consumes, cast matmul operands to bf16 (biases stay f32). Zero padding is
    exact: padded hidden lanes stay zero through tanh/relu and hit zero weight rows."""
    (w_ih_l0, w_hh_l0, b_ih_l0, b_hh_l0,
     w_ih_l1, w_hh_l1, b_ih_l1, b_hh_l1,
     w_l1, b_l1, w_l2, b_l2) = raw
    bf16 = jnp.bfloat16

    wih1 = _pad2(w_ih_l0.T, (EMB_P, HID_P)).astype(bf16)
    whh1 = _pad2(w_hh_l0.T, (HID_P, HID_P)).astype(bf16)
    b1 = _pad2((b_ih_l0 + b_hh_l0).reshape(1, HID), (1, HID_P))

    w21 = _pad2(w_ih_l1.T, (HID_P, HID_P)).astype(bf16)   # multiplies h1
    w22 = _pad2(w_hh_l1.T, (HID_P, HID_P)).astype(bf16)   # multiplies h2_prev
    b2 = _pad2((b_ih_l1 + b_hh_l1).reshape(1, HID), (1, HID_P))

    wl1 = _pad2(w_l1.T, (HID_P, HID_P)).astype(bf16)
    bl1 = _pad2(b_l1.reshape(1, HID), (1, HID_P))
    wl2 = _pad2(w_l2.T, (HID_P, OUT_P)).astype(bf16)
    bl2 = _pad2(b_l2.reshape(1, 1), (1, OUT_P))

    return (wih1, whh1, b1, w21, w22, b2, wl1, bl1, wl2, bl2)


def prepare_embedding(emb_table):
    v = emb_table.shape[0]
    return _pad2(emb_table, (v, EMB_P)).astype(jnp.bfloat16)


# ----------------------------------------------------------------------------- reference

def reference_forward(x_ids, emb_table, raw):
    """Pure-JAX f32 reference of the PyTorch forward pass."""
    (w_ih_l0, w_hh_l0, b_ih_l0, b_hh_l0,
     w_ih_l1, w_hh_l1, b_ih_l1, b_hh_l1,
     w_l1, b_l1, w_l2, b_l2) = raw
    B, T = x_ids.shape
    x = jnp.take(emb_table, x_ids, axis=0).transpose(1, 0, 2)  # (T, B, EMB)
    h1 = jnp.zeros((B, HID), jnp.float32)
    h2 = jnp.zeros((B, HID), jnp.float32)
    for t in range(T):
        h1 = jnp.tanh(x[t] @ w_ih_l0.T + b_ih_l0 + h1 @ w_hh_l0.T + b_hh_l0)
        h2 = jnp.tanh(h1 @ w_ih_l1.T + b_ih_l1 + h2 @ w_hh_l1.T + b_hh_l1)
    z = jnp.maximum(h2 @ w_l1.T + b_l1, 0.0)
    return (z @ w_l2.T + b_l2).reshape(-1)


if __name__ == "__main__":
    key = jax.random.PRNGKey(0)
    k_emb, k_ids, k_par = jax.random.split(key, 3)

    B, T, VOCAB = 8, 8, 32
    emb_table = 0.1 * jax.random.normal(k_emb, (VOCAB, EMB), jnp.float32)
    x_ids = jax.random.randint(k_ids, (B, T), 0, VOCAB, dtype=jnp.int32)

    raw = init_params(k_par)
    kparams = prepare_kernel_params(raw)
    emb_padded = prepare_embedding(emb_table)

    out = jax.block_until_ready(rnn1_forward(x_ids, emb_padded, kparams))
    ref = reference_forward(x_ids, emb_table, raw)

    assert out.shape == (B,)
    # bf16 MXU operands (f32 accumulation) => relaxed tolerance vs the f32 reference.
    assert jnp.allclose(out, ref, atol=1e-2, rtol=2e-2), (out, ref)

    print("KERNEL_OK")
</pallas_src>

<mosaic_0001>
module attributes {stable_mosaic.version = 11 : i64} {
  func.func @rnn1_kernel(%arg0: memref<64x384xbf16, #tpu.memory_space<vmem>>, %arg1: memref<384x256xbf16, #tpu.memory_space<vmem>>, %arg2: memref<256x256xbf16, #tpu.memory_space<any>>, %arg3: memref<1x256xf32, #tpu.memory_space<vmem>>, %arg4: memref<256x256xbf16, #tpu.memory_space<any>>, %arg5: memref<256x256xbf16, #tpu.memory_space<any>>, %arg6: memref<1x256xf32, #tpu.memory_space<vmem>>, %arg7: memref<256x256xbf16, #tpu.memory_space<any>>, %arg8: memref<1x256xf32, #tpu.memory_space<vmem>>, %arg9: memref<256x128xbf16, #tpu.memory_space<any>>, %arg10: memref<1x128xf32, #tpu.memory_space<vmem>>, %arg11: memref<8x128xf32, #tpu.memory_space<vmem>>, %arg12: memref<64x256xf32, #tpu.memory_space<vmem>>, %arg13: memref<256x256xbf16, #tpu.memory_space<vmem>>, %arg14: memref<256x256xbf16, #tpu.memory_space<vmem>>, %arg15: memref<256x256xbf16, #tpu.memory_space<vmem>>, %arg16: memref<256x256xbf16, #tpu.memory_space<vmem>>, %arg17: memref<256x128xbf16, #tpu.memory_space<vmem>>, %arg18: memref<5x!tpu.dma_semaphore, #tpu.memory_space<semaphore_mem>>) attributes {dimension_semantics = [], scalar_prefetch = 0 : i64, scratch_operands = 7 : i64, tpu.core_type = #tpu.core_type<tc>} {
    %c0_i32 = arith.constant 0 : i32
    %0 = tpu.memref_slice %arg18[%c0_i32] : memref<5x!tpu.dma_semaphore, #tpu.memory_space<semaphore_mem>> -> memref<1x!tpu.dma_semaphore, #tpu.memory_space<semaphore_mem>>
    %1 = tpu.memref_squeeze %0 : memref<1x!tpu.dma_semaphore, #tpu.memory_space<semaphore_mem>> -> memref<!tpu.dma_semaphore, #tpu.memory_space<semaphore_mem>>
    tpu.enqueue_dma source(%arg2 : memref<256x256xbf16, #tpu.memory_space<any>>) target(%arg13 : memref<256x256xbf16, #tpu.memory_space<vmem>>) target_semaphore(%1 : memref<!tpu.dma_semaphore, #tpu.memory_space<semaphore_mem>>)
    %c1_i32 = arith.constant 1 : i32
    %2 = tpu.memref_slice %arg18[%c1_i32] : memref<5x!tpu.dma_semaphore, #tpu.memory_space<semaphore_mem>> -> memref<1x!tpu.dma_semaphore, #tpu.memory_space<semaphore_mem>>
    %3 = tpu.memref_squeeze %2 : memref<1x!tpu.dma_semaphore, #tpu.memory_space<semaphore_mem>> -> memref<!tpu.dma_semaphore, #tpu.memory_space<semaphore_mem>>
    tpu.enqueue_dma source(%arg4 : memref<256x256xbf16, #tpu.memory_space<any>>) target(%arg14 : memref<256x256xbf16, #tpu.memory_space<vmem>>) target_semaphore(%3 : memref<!tpu.dma_semaphore, #tpu.memory_space<semaphore_mem>>)
    %c2_i32 = arith.constant 2 : i32
    %4 = tpu.memref_slice %arg18[%c2_i32] : memref<5x!tpu.dma_semaphore, #tpu.memory_space<semaphore_mem>> -> memref<1x!tpu.dma_semaphore, #tpu.memory_space<semaphore_mem>>
    %5 = tpu.memref_squeeze %4 : memref<1x!tpu.dma_semaphore, #tpu.memory_space<semaphore_mem>> -> memref<!tpu.dma_semaphore, #tpu.memory_space<semaphore_mem>>
    tpu.enqueue_dma source(%arg5 : memref<256x256xbf16, #tpu.memory_space<any>>) target(%arg15 : memref<256x256xbf16, #tpu.memory_space<vmem>>) target_semaphore(%5 : memref<!tpu.dma_semaphore, #tpu.memory_space<semaphore_mem>>)
    %c3_i32 = arith.constant 3 : i32
    %6 = tpu.memref_slice %arg18[%c3_i32] : memref<5x!tpu.dma_semaphore, #tpu.memory_space<semaphore_mem>> -> memref<1x!tpu.dma_semaphore, #tpu.memory_space<semaphore_mem>>
    %7 = tpu.memref_squeeze %6 : memref<1x!tpu.dma_semaphore, #tpu.memory_space<semaphore_mem>> -> memref<!tpu.dma_semaphore, #tpu.memory_space<semaphore_mem>>
    tpu.enqueue_dma source(%arg7 : memref<256x256xbf16, #tpu.memory_space<any>>) target(%arg16 : memref<256x256xbf16, #tpu.memory_space<vmem>>) target_semaphore(%7 : memref<!tpu.dma_semaphore, #tpu.memory_space<semaphore_mem>>)
    %c4_i32 = arith.constant 4 : i32
    %8 = tpu.memref_slice %arg18[%c4_i32] : memref<5x!tpu.dma_semaphore, #tpu.memory_space<semaphore_mem>> -> memref<1x!tpu.dma_semaphore, #tpu.memory_space<semaphore_mem>>
    %9 = tpu.memref_squeeze %8 : memref<1x!tpu.dma_semaphore, #tpu.memory_space<semaphore_mem>> -> memref<!tpu.dma_semaphore, #tpu.memory_space<semaphore_mem>>
    tpu.enqueue_dma source(%arg9 : memref<256x128xbf16, #tpu.memory_space<any>>) target(%arg17 : memref<256x128xbf16, #tpu.memory_space<vmem>>) target_semaphore(%9 : memref<!tpu.dma_semaphore, #tpu.memory_space<semaphore_mem>>)
    %c0 = arith.constant 0 : index
    %c0_0 = arith.constant 0 : index
    %10 = vector.load %arg0[%c0, %c0_0] : memref<64x384xbf16, #tpu.memory_space<vmem>>, vector<64x384xbf16>
    %c0_1 = arith.constant 0 : index
    %c0_2 = arith.constant 0 : index
    %11 = vector.load %arg1[%c0_1, %c0_2] : memref<384x256xbf16, #tpu.memory_space<vmem>>, vector<384x256xbf16>
    %cst = arith.constant dense<0.000000e+00> : vector<64x256xf32>
    %12 = tpu.matmul %10, %11, %cst {dimension_numbers = #tpu.dot_dimension_numbers<[1], [0], [0], [1], [0, 0, 1, 1], [], []>} : vector<64x384xbf16>, vector<384x256xbf16>, vector<64x256xf32> -> vector<64x256xf32>
    %c0_3 = arith.constant 0 : index
    %c0_4 = arith.constant 0 : index
    %13 = vector.load %arg3[%c0_3, %c0_4] : memref<1x256xf32, #tpu.memory_space<vmem>>, vector<1x256xf32>
    %14 = vector.broadcast %13 : vector<1x256xf32> to vector<64x256xf32>
    %15 = arith.addf %12, %14 : vector<64x256xf32>
    %c0_5 = arith.constant 0 : index
    %c0_6 = arith.constant 0 : index
    %16 = vector.load %arg12[%c0_5, %c0_6] : memref<64x256xf32, #tpu.memory_space<vmem>>, vector<64x256xf32>
    tpu.vector_store %arg12[%c0_5, %c0_6], %15 {strides = array<i32>} : memref<64x256xf32, #tpu.memory_space<vmem>>, vector<64x256xf32>,
    %c0_7 = arith.constant 0 : index
    %c0_8 = arith.constant 0 : index
    %17 = vector.load %arg6[%c0_7, %c0_8] : memref<1x256xf32, #tpu.memory_space<vmem>>, vector<1x256xf32>
    %18 = vector.shape_cast %17 : vector<1x256xf32> to vector<1x256xf32>
    %19 = vector.broadcast %18 : vector<1x256xf32> to vector<8x256xf32>
    %c0_9 = arith.constant 0 : index
    %c0_10 = arith.constant 0 : index
    %20 = vector.load %arg12[%c0_9, %c0_10] : memref<64x256xf32, #tpu.memory_space<vmem>>, vector<8x256xf32>
    %21 = math.tanh %20 : vector<8x256xf32>
    %c1_i32_11 = arith.constant 1 : i32
    %22 = tpu.memref_slice %arg18[%c1_i32_11] : memref<5x!tpu.dma_semaphore, #tpu.memory_space<semaphore_mem>> -> memref<1x!tpu.dma_semaphore, #tpu.memory_space<semaphore_mem>>
    %23 = tpu.memref_squeeze %22 : memref<1x!tpu.dma_semaphore, #tpu.memory_space<semaphore_mem>> -> memref<!tpu.dma_semaphore, #tpu.memory_space<semaphore_mem>>
    tpu.wait_dma2 semaphore(%23 : memref<!tpu.dma_semaphore, #tpu.memory_space<semaphore_mem>>) src(%arg4 : memref<256x256xbf16, #tpu.memory_space<any>>) dst(%arg14 : memref<256x256xbf16, #tpu.memory_space<vmem>>)
    %24 = arith.truncf %21 : vector<8x256xf32> to vector<8x256xbf16>
    %c0_12 = arith.constant 0 : index
    %c0_13 = arith.constant 0 : index
    %25 = vector.load %arg14[%c0_12, %c0_13] : memref<256x256xbf16, #tpu.memory_space<vmem>>, vector<256x256xbf16>
    %cst_14 = arith.constant dense<0.000000e+00> : vector<8x256xf32>
    %26 = tpu.matmul %24, %25, %cst_14 {dimension_numbers = #tpu.dot_dimension_numbers<[1], [0], [0], [1], [0, 0, 1, 1], [], []>} : vector<8x256xbf16>, vector<256x256xbf16>, vector<8x256xf32> -> vector<8x256xf32>
    %27 = arith.addf %26, %19 : vector<8x256xf32>
    %28 = math.tanh %27 : vector<8x256xf32>
    %c0_i32_15 = arith.constant 0 : i32
    %29 = tpu.memref_slice %arg18[%c0_i32_15] : memref<5x!tpu.dma_semaphore, #tpu.memory_space<semaphore_mem>> -> memref<1x!tpu.dma_semaphore, #tpu.memory_space<semaphore_mem>>
    %30 = tpu.memref_squeeze %29 : memref<1x!tpu.dma_semaphore, #tpu.memory_space<semaphore_mem>> -> memref<!tpu.dma_semaphore, #tpu.memory_space<semaphore_mem>>
    tpu.wait_dma2 semaphore(%30 : memref<!tpu.dma_semaphore, #tpu.memory_space<semaphore_mem>>) src(%arg2 : memref<256x256xbf16, #tpu.memory_space<any>>) dst(%arg13 : memref<256x256xbf16, #tpu.memory_space<vmem>>)
    %c2_i32_16 = arith.constant 2 : i32
    %31 = tpu.memref_slice %arg18[%c2_i32_16] : memref<5x!tpu.dma_semaphore, #tpu.memory_space<semaphore_mem>> -> memref<1x!tpu.dma_semaphore, #tpu.memory_space<semaphore_mem>>
    %32 = tpu.memref_squeeze %31 : memref<1x!tpu.dma_semaphore, #tpu.memory_space<semaphore_mem>> -> memref<!tpu.dma_semaphore, #tpu.memory_space<semaphore_mem>>
    tpu.wait_dma2 semaphore(%32 : memref<!tpu.dma_semaphore, #tpu.memory_space<semaphore_mem>>) src(%arg5 : memref<256x256xbf16, #tpu.memory_space<any>>) dst(%arg15 : memref<256x256xbf16, #tpu.memory_space<vmem>>)
    %33 = arith.truncf %28 : vector<8x256xf32> to vector<8x256xbf16>
    %c0_17 = arith.constant 0 : index
    %c0_18 = arith.constant 0 : index
    %34 = vector.load %arg15[%c0_17, %c0_18] : memref<256x256xbf16, #tpu.memory_space<vmem>>, vector<256x256xbf16>
    %cst_19 = arith.constant dense<0.000000e+00> : vector<8x256xf32>
    %35 = tpu.matmul %33, %34, %cst_19 {dimension_numbers = #tpu.dot_dimension_numbers<[1], [0], [0], [1], [0, 0, 1, 1], [], []>} : vector<8x256xbf16>, vector<256x256xbf16>, vector<8x256xf32> -> vector<8x256xf32>
    %36 = arith.truncf %21 : vector<8x256xf32> to vector<8x256xbf16>
    %c0_20 = arith.constant 0 : index
    %c0_21 = arith.constant 0 : index
    %37 = vector.load %arg13[%c0_20, %c0_21] : memref<256x256xbf16, #tpu.memory_space<vmem>>, vector<256x256xbf16>
    %cst_22 = arith.constant dense<0.000000e+00> : vector<8x256xf32>
    %38 = tpu.matmul %36, %37, %cst_22 {dimension_numbers = #tpu.dot_dimension_numbers<[1], [0], [0], [1], [0, 0, 1, 1], [], []>} : vector<8x256xbf16>, vector<256x256xbf16>, vector<8x256xf32> -> vector<8x256xf32>
    %c8 = arith.constant 8 : index
    %c0_23 = arith.constant 0 : index
    %39 = vector.load %arg12[%c8, %c0_23] : memref<64x256xf32, #tpu.memory_space<vmem>>, vector<8x256xf32>
    %40 = arith.addf %39, %38 : vector<8x256xf32>
    %41 = math.tanh %40 : vector<8x256xf32>
    %42 = arith.truncf %41 : vector<8x256xf32> to vector<8x256xbf16>
    %c0_24 = arith.constant 0 : index
    %c0_25 = arith.constant 0 : index
    %43 = vector.load %arg14[%c0_24, %c0_25] : memref<256x256xbf16, #tpu.memory_space<vmem>>, vector<256x256xbf16>
    %cst_26 = arith.constant dense<0.000000e+00> : vector<8x256xf32>
    %44 = tpu.matmul %42, %43, %cst_26 {dimension_numbers = #tpu.dot_dimension_numbers<[1], [0], [0], [1], [0, 0, 1, 1], [], []>} : vector<8x256xbf16>, vector<256x256xbf16>, vector<8x256xf32> -> vector<8x256xf32>
    %45 = arith.addf %44, %35 : vector<8x256xf32>
    %46 = arith.addf %45, %19 : vector<8x256xf32>
    %47 = math.tanh %46 : vector<8x256xf32>
    %48 = arith.truncf %47 : vector<8x256xf32> to vector<8x256xbf16>
    %c0_27 = arith.constant 0 : index
    %c0_28 = arith.constant 0 : index
    %49 = vector.load %arg15[%c0_27, %c0_28] : memref<256x256xbf16, #tpu.memory_space<vmem>>, vector<256x256xbf16>
    %cst_29 = arith.constant dense<0.000000e+00> : vector<8x256xf32>
    %50 = tpu.matmul %48, %49, %cst_29 {dimension_numbers = #tpu.dot_dimension_numbers<[1], [0], [0], [1], [0, 0, 1, 1], [], []>} : vector<8x256xbf16>, vector<256x256xbf16>, vector<8x256xf32> -> vector<8x256xf32>
    %51 = arith.truncf %41 : vector<8x256xf32> to vector<8x256xbf16>
    %c0_30 = arith.constant 0 : index
    %c0_31 = arith.constant 0 : index
    %52 = vector.load %arg13[%c0_30, %c0_31] : memref<256x256xbf16, #tpu.memory_space<vmem>>, vector<256x256xbf16>
    %cst_32 = arith.constant dense<0.000000e+00> : vector<8x256xf32>
    %53 = tpu.matmul %51, %52, %cst_32 {dimension_numbers = #tpu.dot_dimension_numbers<[1], [0], [0], [1], [0, 0, 1, 1], [], []>} : vector<8x256xbf16>, vector<256x256xbf16>, vector<8x256xf32> -> vector<8x256xf32>
    %c16 = arith.constant 16 : index
    %c0_33 = arith.constant 0 : index
    %54 = vector.load %arg12[%c16, %c0_33] : memref<64x256xf32, #tpu.memory_space<vmem>>, vector<8x256xf32>
    %55 = arith.addf %54, %53 : vector<8x256xf32>
    %56 = math.tanh %55 : vector<8x256xf32>
    %57 = arith.truncf %56 : vector<8x256xf32> to vector<8x256xbf16>
    %c0_34 = arith.constant 0 : index
    %c0_35 = arith.constant 0 : index
    %58 = vector.load %arg14[%c0_34, %c0_35] : memref<256x256xbf16, #tpu.memory_space<vmem>>, vector<256x256xbf16>
    %cst_36 = arith.constant dense<0.000000e+00> : vector<8x256xf32>
    %59 = tpu.matmul %57, %58, %cst_36 {dimension_numbers = #tpu.dot_dimension_numbers<[1], [0], [0], [1], [0, 0, 1, 1], [], []>} : vector<8x256xbf16>, vector<256x256xbf16>, vector<8x256xf32> -> vector<8x256xf32>
    %60 = arith.addf %59, %50 : vector<8x256xf32>
    %61 = arith.addf %60, %19 : vector<8x256xf32>
    %62 = math.tanh %61 : vector<8x256xf32>
    %63 = arith.truncf %62 : vector<8x256xf32> to vector<8x256xbf16>
    %c0_37 = arith.constant 0 : index
    %c0_38 = arith.constant 0 : index
    %64 = vector.load %arg15[%c0_37, %c0_38] : memref<256x256xbf16, #tpu.memory_space<vmem>>, vector<256x256xbf16>
    %cst_39 = arith.constant dense<0.000000e+00> : vector<8x256xf32>
    %65 = tpu.matmul %63, %64, %cst_39 {dimension_numbers = #tpu.dot_dimension_numbers<[1], [0], [0], [1], [0, 0, 1, 1], [], []>} : vector<8x256xbf16>, vector<256x256xbf16>, vector<8x256xf32> -> vector<8x256xf32>
    %66 = arith.truncf %56 : vector<8x256xf32> to vector<8x256xbf16>
    %c0_40 = arith.constant 0 : index
    %c0_41 = arith.constant 0 : index
    %67 = vector.load %arg13[%c0_40, %c0_41] : memref<256x256xbf16, #tpu.memory_space<vmem>>, vector<256x256xbf16>
    %cst_42 = arith.constant dense<0.000000e+00> : vector<8x256xf32>
    %68 = tpu.matmul %66, %67, %cst_42 {dimension_numbers = #tpu.dot_dimension_numbers<[1], [0], [0], [1], [0, 0, 1, 1], [], []>} : vector<8x256xbf16>, vector<256x256xbf16>, vector<8x256xf32> -> vector<8x256xf32>
    %c24 = arith.constant 24 : index
    %c0_43 = arith.constant 0 : index
    %69 = vector.load %arg12[%c24, %c0_43] : memref<64x256xf32, #tpu.memory_space<vmem>>, vector<8x256xf32>
    %70 = arith.addf %69, %68 : vector<8x256xf32>
    %71 = math.tanh %70 : vector<8x256xf32>
    %72 = arith.truncf %71 : vector<8x256xf32> to vector<8x256xbf16>
    %c0_44 = arith.constant 0 : index
    %c0_45 = arith.constant 0 : index
    %73 = vector.load %arg14[%c0_44, %c0_45] : memref<256x256xbf16, #tpu.memory_space<vmem>>, vector<256x256xbf16>
    %cst_46 = arith.constant dense<0.000000e+00> : vector<8x256xf32>
    %74 = tpu.matmul %72, %73, %cst_46 {dimension_numbers = #tpu.dot_dimension_numbers<[1], [0], [0], [1], [0, 0, 1, 1], [], []>} : vector<8x256xbf16>, vector<256x256xbf16>, vector<8x256xf32> -> vector<8x256xf32>
    %75 = arith.addf %74, %65 : vector<8x256xf32>
    %76 = arith.addf %75, %19 : vector<8x256xf32>
    %77 = math.tanh %76 : vector<8x256xf32>
    %78 = arith.truncf %77 : vector<8x256xf32> to vector<8x256xbf16>
    %c0_47 = arith.constant 0 : index
    %c0_48 = arith.constant 0 : index
    %79 = vector.load %arg15[%c0_47, %c0_48] : memref<256x256xbf16, #tpu.memory_space<vmem>>, vector<256x256xbf16>
    %cst_49 = arith.constant dense<0.000000e+00> : vector<8x256xf32>
    %80 = tpu.matmul %78, %79, %cst_49 {dimension_numbers = #tpu.dot_dimension_numbers<[1], [0], [0], [1], [0, 0, 1, 1], [], []>} : vector<8x256xbf16>, vector<256x256xbf16>, vector<8x256xf32> -> vector<8x256xf32>
    %81 = arith.truncf %71 : vector<8x256xf32> to vector<8x256xbf16>
    %c0_50 = arith.constant 0 : index
    %c0_51 = arith.constant 0 : index
    %82 = vector.load %arg13[%c0_50, %c0_51] : memref<256x256xbf16, #tpu.memory_space<vmem>>, vector<256x256xbf16>
    %cst_52 = arith.constant dense<0.000000e+00> : vector<8x256xf32>
    %83 = tpu.matmul %81, %82, %cst_52 {dimension_numbers = #tpu.dot_dimension_numbers<[1], [0], [0], [1], [0, 0, 1, 1], [], []>} : vector<8x256xbf16>, vector<256x256xbf16>, vector<8x256xf32> -> vector<8x256xf32>
    %c32 = arith.constant 32 : index
    %c0_53 = arith.constant 0 : index
    %84 = vector.load %arg12[%c32, %c0_53] : memref<64x256xf32, #tpu.memory_space<vmem>>, vector<8x256xf32>
    %85 = arith.addf %84, %83 : vector<8x256xf32>
    %86 = math.tanh %85 : vector<8x256xf32>
    %87 = arith.truncf %86 : vector<8x256xf32> to vector<8x256xbf16>
    %c0_54 = arith.constant 0 : index
    %c0_55 = arith.constant 0 : index
    %88 = vector.load %arg14[%c0_54, %c0_55] : memref<256x256xbf16, #tpu.memory_space<vmem>>, vector<256x256xbf16>
    %cst_56 = arith.constant dense<0.000000e+00> : vector<8x256xf32>
    %89 = tpu.matmul %87, %88, %cst_56 {dimension_numbers = #tpu.dot_dimension_numbers<[1], [0], [0], [1], [0, 0, 1, 1], [], []>} : vector<8x256xbf16>, vector<256x256xbf16>, vector<8x256xf32> -> vector<8x256xf32>
    %90 = arith.addf %89, %80 : vector<8x256xf32>
    %91 = arith.addf %90, %19 : vector<8x256xf32>
    %92 = math.tanh %91 : vector<8x256xf32>
    %93 = arith.truncf %92 : vector<8x256xf32> to vector<8x256xbf16>
    %c0_57 = arith.constant 0 : index
    %c0_58 = arith.constant 0 : index
    %94 = vector.load %arg15[%c0_57, %c0_58] : memref<256x256xbf16, #tpu.memory_space<vmem>>, vector<256x256xbf16>
    %cst_59 = arith.constant dense<0.000000e+00> : vector<8x256xf32>
    %95 = tpu.matmul %93, %94, %cst_59 {dimension_numbers = #tpu.dot_dimension_numbers<[1], [0], [0], [1], [0, 0, 1, 1], [], []>} : vector<8x256xbf16>, vector<256x256xbf16>, vector<8x256xf32> -> vector<8x256xf32>
    %96 = arith.truncf %86 : vector<8x256xf32> to vector<8x256xbf16>
    %c0_60 = arith.constant 0 : index
    %c0_61 = arith.constant 0 : index
    %97 = vector.load %arg13[%c0_60, %c0_61] : memref<256x256xbf16, #tpu.memory_space<vmem>>, vector<256x256xbf16>
    %cst_62 = arith.constant dense<0.000000e+00> : vector<8x256xf32>
    %98 = tpu.matmul %96, %97, %cst_62 {dimension_numbers = #tpu.dot_dimension_numbers<[1], [0], [0], [1], [0, 0, 1, 1], [], []>} : vector<8x256xbf16>, vector<256x256xbf16>, vector<8x256xf32> -> vector<8x256xf32>
    %c40 = arith.constant 40 : index
    %c0_63 = arith.constant 0 : index
    %99 = vector.load %arg12[%c40, %c0_63] : memref<64x256xf32, #tpu.memory_space<vmem>>, vector<8x256xf32>
    %100 = arith.addf %99, %98 : vector<8x256xf32>
    %101 = math.tanh %100 : vector<8x256xf32>
    %102 = arith.truncf %101 : vector<8x256xf32> to vector<8x256xbf16>
    %c0_64 = arith.constant 0 : index
    %c0_65 = arith.constant 0 : index
    %103 = vector.load %arg14[%c0_64, %c0_65] : memref<256x256xbf16, #tpu.memory_space<vmem>>, vector<256x256xbf16>
    %cst_66 = arith.constant dense<0.000000e+00> : vector<8x256xf32>
    %104 = tpu.matmul %102, %103, %cst_66 {dimension_numbers = #tpu.dot_dimension_numbers<[1], [0], [0], [1], [0, 0, 1, 1], [], []>} : vector<8x256xbf16>, vector<256x256xbf16>, vector<8x256xf32> -> vector<8x256xf32>
    %105 = arith.addf %104, %95 : vector<8x256xf32>
    %106 = arith.addf %105, %19 : vector<8x256xf32>
    %107 = math.tanh %106 : vector<8x256xf32>
    %108 = arith.truncf %107 : vector<8x256xf32> to vector<8x256xbf16>
    %c0_67 = arith.constant 0 : index
    %c0_68 = arith.constant 0 : index
    %109 = vector.load %arg15[%c0_67, %c0_68] : memref<256x256xbf16, #tpu.memory_space<vmem>>, vector<256x256xbf16>
    %cst_69 = arith.constant dense<0.000000e+00> : vector<8x256xf32>
    %110 = tpu.matmul %108, %109, %cst_69 {dimension_numbers = #tpu.dot_dimension_numbers<[1], [0], [0], [1], [0, 0, 1, 1], [], []>} : vector<8x256xbf16>, vector<256x256xbf16>, vector<8x256xf32> -> vector<8x256xf32>
    %111 = arith.truncf %101 : vector<8x256xf32> to vector<8x256xbf16>
    %c0_70 = arith.constant 0 : index
    %c0_71 = arith.constant 0 : index
    %112 = vector.load %arg13[%c0_70, %c0_71] : memref<256x256xbf16, #tpu.memory_space<vmem>>, vector<256x256xbf16>
    %cst_72 = arith.constant dense<0.000000e+00> : vector<8x256xf32>
    %113 = tpu.matmul %111, %112, %cst_72 {dimension_numbers = #tpu.dot_dimension_numbers<[1], [0], [0], [1], [0, 0, 1, 1], [], []>} : vector<8x256xbf16>, vector<256x256xbf16>, vector<8x256xf32> -> vector<8x256xf32>
    %c48 = arith.constant 48 : index
    %c0_73 = arith.constant 0 : index
    %114 = vector.load %arg12[%c48, %c0_73] : memref<64x256xf32, #tpu.memory_space<vmem>>, vector<8x256xf32>
    %115 = arith.addf %114, %113 : vector<8x256xf32>
    %116 = math.tanh %115 : vector<8x256xf32>
    %117 = arith.truncf %116 : vector<8x256xf32> to vector<8x256xbf16>
    %c0_74 = arith.constant 0 : index
    %c0_75 = arith.constant 0 : index
    %118 = vector.load %arg14[%c0_74, %c0_75] : memref<256x256xbf16, #tpu.memory_space<vmem>>, vector<256x256xbf16>
    %cst_76 = arith.constant dense<0.000000e+00> : vector<8x256xf32>
    %119 = tpu.matmul %117, %118, %cst_76 {dimension_numbers = #tpu.dot_dimension_numbers<[1], [0], [0], [1], [0, 0, 1, 1], [], []>} : vector<8x256xbf16>, vector<256x256xbf16>, vector<8x256xf32> -> vector<8x256xf32>
    %120 = arith.addf %119, %110 : vector<8x256xf32>
    %121 = arith.addf %120, %19 : vector<8x256xf32>
    %122 = math.tanh %121 : vector<8x256xf32>
    %123 = arith.truncf %122 : vector<8x256xf32> to vector<8x256xbf16>
    %c0_77 = arith.constant 0 : index
    %c0_78 = arith.constant 0 : index
    %124 = vector.load %arg15[%c0_77, %c0_78] : memref<256x256xbf16, #tpu.memory_space<vmem>>, vector<256x256xbf16>
    %cst_79 = arith.constant dense<0.000000e+00> : vector<8x256xf32>
    %125 = tpu.matmul %123, %124, %cst_79 {dimension_numbers = #tpu.dot_dimension_numbers<[1], [0], [0], [1], [0, 0, 1, 1], [], []>} : vector<8x256xbf16>, vector<256x256xbf16>, vector<8x256xf32> -> vector<8x256xf32>
    %126 = arith.truncf %116 : vector<8x256xf32> to vector<8x256xbf16>
    %c0_80 = arith.constant 0 : index
    %c0_81 = arith.constant 0 : index
    %127 = vector.load %arg13[%c0_80, %c0_81] : memref<256x256xbf16, #tpu.memory_space<vmem>>, vector<256x256xbf16>
    %cst_82 = arith.constant dense<0.000000e+00> : vector<8x256xf32>
    %128 = tpu.matmul %126, %127, %cst_82 {dimension_numbers = #tpu.dot_dimension_numbers<[1], [0], [0], [1], [0, 0, 1, 1], [], []>} : vector<8x256xbf16>, vector<256x256xbf16>, vector<8x256xf32> -> vector<8x256xf32>
    %c56 = arith.constant 56 : index
    %c0_83 = arith.constant 0 : index
    %129 = vector.load %arg12[%c56, %c0_83] : memref<64x256xf32, #tpu.memory_space<vmem>>, vector<8x256xf32>
    %130 = arith.addf %129, %128 : vector<8x256xf32>
    %131 = math.tanh %130 : vector<8x256xf32>
    %132 = arith.truncf %131 : vector<8x256xf32> to vector<8x256xbf16>
    %c0_84 = arith.constant 0 : index
    %c0_85 = arith.constant 0 : index
    %133 = vector.load %arg14[%c0_84, %c0_85] : memref<256x256xbf16, #tpu.memory_space<vmem>>, vector<256x256xbf16>
    %cst_86 = arith.constant dense<0.000000e+00> : vector<8x256xf32>
    %134 = tpu.matmul %132, %133, %cst_86 {dimension_numbers = #tpu.dot_dimension_numbers<[1], [0], [0], [1], [0, 0, 1, 1], [], []>} : vector<8x256xbf16>, vector<256x256xbf16>, vector<8x256xf32> -> vector<8x256xf32>
    %135 = arith.addf %134, %125 : vector<8x256xf32>
    %136 = arith.addf %135, %19 : vector<8x256xf32>
    %137 = math.tanh %136 : vector<8x256xf32>
    %c3_i32_87 = arith.constant 3 : i32
    %138 = tpu.memref_slice %arg18[%c3_i32_87] : memref<5x!tpu.dma_semaphore, #tpu.memory_space<semaphore_mem>> -> memref<1x!tpu.dma_semaphore, #tpu.memory_space<semaphore_mem>>
    %139 = tpu.memref_squeeze %138 : memref<1x!tpu.dma_semaphore, #tpu.memory_space<semaphore_mem>> -> memref<!tpu.dma_semaphore, #tpu.memory_space<semaphore_mem>>
    tpu.wait_dma2 semaphore(%139 : memref<!tpu.dma_semaphore, #tpu.memory_space<semaphore_mem>>) src(%arg7 : memref<256x256xbf16, #tpu.memory_space<any>>) dst(%arg16 : memref<256x256xbf16, #tpu.memory_space<vmem>>)
    %140 = arith.truncf %137 : vector<8x256xf32> to vector<8x256xbf16>
    %c0_88 = arith.constant 0 : index
    %c0_89 = arith.constant 0 : index
    %141 = vector.load %arg16[%c0_88, %c0_89] : memref<256x256xbf16, #tpu.memory_space<vmem>>, vector<256x256xbf16>
    %cst_90 = arith.constant dense<0.000000e+00> : vector<8x256xf32>
    %142 = tpu.matmul %140, %141, %cst_90 {dimension_numbers = #tpu.dot_dimension_numbers<[1], [0], [0], [1], [0, 0, 1, 1], [], []>} : vector<8x256xbf16>, vector<256x256xbf16>, vector<8x256xf32> -> vector<8x256xf32>
    %c0_91 = arith.constant 0 : index
    %c0_92 = arith.constant 0 : index
    %143 = vector.load %arg8[%c0_91, %c0_92] : memref<1x256xf32, #tpu.memory_space<vmem>>, vector<1x256xf32>
    %144 = vector.broadcast %143 : vector<1x256xf32> to vector<8x256xf32>
    %145 = arith.addf %142, %144 : vector<8x256xf32>
    %cst_93 = arith.constant 0.000000e+00 : f32
    %146 = vector.broadcast %cst_93 : f32 to vector<8x256xf32>
    %147 = arith.maximumf %145, %146 : vector<8x256xf32>
    %c4_i32_94 = arith.constant 4 : i32
    %148 = tpu.memref_slice %arg18[%c4_i32_94] : memref<5x!tpu.dma_semaphore, #tpu.memory_space<semaphore_mem>> -> memref<1x!tpu.dma_semaphore, #tpu.memory_space<semaphore_mem>>
    %149 = tpu.memref_squeeze %148 : memref<1x!tpu.dma_semaphore, #tpu.memory_space<semaphore_mem>> -> memref<!tpu.dma_semaphore, #tpu.memory_space<semaphore_mem>>
    tpu.wait_dma2 semaphore(%149 : memref<!tpu.dma_semaphore, #tpu.memory_space<semaphore_mem>>) src(%arg9 : memref<256x128xbf16, #tpu.memory_space<any>>) dst(%arg17 : memref<256x128xbf16, #tpu.memory_space<vmem>>)
    %150 = arith.truncf %147 : vector<8x256xf32> to vector<8x256xbf16>
    %c0_95 = arith.constant 0 : index
    %c0_96 = arith.constant 0 : index
    %151 = vector.load %arg17[%c0_95, %c0_96] : memref<256x128xbf16, #tpu.memory_space<vmem>>, vector<256x128xbf16>
    %cst_97 = arith.constant dense<0.000000e+00> : vector<8x128xf32>
    %152 = tpu.matmul %150, %151, %cst_97 {dimension_numbers = #tpu.dot_dimension_numbers<[1], [0], [0], [1], [0, 0, 1, 1], [], []>} : vector<8x256xbf16>, vector<256x128xbf16>, vector<8x128xf32> -> vector<8x128xf32>
    %c0_98 = arith.constant 0 : index
    %c0_99 = arith.constant 0 : index
    %153 = vector.load %arg10[%c0_98, %c0_99] : memref<1x128xf32, #tpu.memory_space<vmem>>, vector<1x128xf32>
    %154 = vector.broadcast %153 : vector<1x128xf32> to vector<8x128xf32>
    %155 = arith.addf %152, %154 : vector<8x128xf32>
    %c0_100 = arith.constant 0 : index
    %c0_101 = arith.constant 0 : index
    %156 = vector.load %arg11[%c0_100, %c0_101] : memref<8x128xf32, #tpu.memory_space<vmem>>, vector<8x128xf32>
    tpu.vector_store %arg11[%c0_100, %c0_101], %155 {strides = array<i32>} : memref<8x128xf32, #tpu.memory_space<vmem>>, vector<8x128xf32>,
    return
  }
}

</mosaic_0001>

<llo_original>
// kernel: rnn1_forward.1
$region0: #{rnn1_forward.1}
  #allocation0 [shape = 'u32[]', space=smem, size = 0x4, offset = 0x4, fixed_abs, tag = 'smem constant byte address 0x4 - core index']
  #allocation1 [shape = 'u32[144,128]{1,0:T(1,128)}', space=vmem, size = 0x12000, scoped, tag = 'internal scratch']
  #allocation2 [shape = 'f32[64,256]{1,0:T(8,128)}', space=vmem, size = 0x10000, scoped, tag = 'scratch operand']
  #allocation3 [shape = 'bf16[256,256]{1,0:T(16,128)(2,1)}', space=vmem, size = 0x20000, scoped, tag = 'scratch operand']
  #allocation4 [shape = 'bf16[256,256]{1,0:T(16,128)(2,1)}', space=vmem, size = 0x20000, scoped, tag = 'scratch operand']
  #allocation5 [shape = 'bf16[256,256]{1,0:T(16,128)(2,1)}', space=vmem, size = 0x20000, scoped, tag = 'scratch operand']
  #allocation6 [shape = 'bf16[256,256]{1,0:T(16,128)(2,1)}', space=vmem, size = 0x20000, scoped, tag = 'scratch operand']
  #allocation7 [shape = 'bf16[256,128]{1,0:T(16,128)(2,1)}', space=vmem, size = 0x10000, scoped, tag = 'scratch operand']
  #allocation8 [shape = 's32[5]{0}', space=sflag, size = 0x14, scoped, tag = 'scratch operand']
  #allocation9 [shape = 's32[]', space=sflag, size = 0x4, offset = 0, fixed_abs, tag = 'sflag constant byte address 0x0 - dummy sync flag']
  #allocation10 [shape = 's32[]', space=sflag, size = 0x4, offset = 0, fixed_abs, tag = 'sflag constant byte address 0x0 - dummy sync flag']
  #allocation11 [shape = 's32[]', space=sflag, size = 0x4, offset = 0, fixed_abs, tag = 'sflag constant byte address 0x0 - dummy sync flag']
  #allocation13 [shape = 's32[]', space=sflag, size = 0x4, offset = 0, fixed_abs, tag = 'sflag constant byte address 0x0 - dummy sync flag']
  #allocation15 [shape = 's32[]', space=sflag, size = 0x4, offset = 0, fixed_abs, tag = 'sflag constant byte address 0x0 - dummy sync flag']
  %s0 = inlined_call_operand.vmem [shape: bf16[64,384], index: 0, kind: input, shape index: {}]
  %s1 = inlined_call_operand.vmem [shape: bf16[384,256], index: 1, kind: input, shape index: {}]
  %s2 = inlined_call_operand.vmem [shape: bf16[256,256], index: 2, kind: input, shape index: {}]
  %s3 = inlined_call_operand.vmem [shape: f32[1,256], index: 3, kind: input, shape index: {}]
  %s4 = inlined_call_operand.vmem [shape: bf16[256,256], index: 4, kind: input, shape index: {}]
  %s5 = inlined_call_operand.hbm [shape: bf16[256,256], index: 5, kind: input, shape index: {}]
  %s6 = inlined_call_operand.vmem [shape: f32[1,256], index: 6, kind: input, shape index: {}]
  %s7 = inlined_call_operand.hbm [shape: bf16[256,256], index: 7, kind: input, shape index: {}]
  %s8 = inlined_call_operand.vmem [shape: f32[1,256], index: 8, kind: input, shape index: {}]
  %s9 = inlined_call_operand.vmem [shape: bf16[256,128], index: 9, kind: input, shape index: {}]
  %s10 = inlined_call_operand.vmem [shape: f32[1,128], index: 10, kind: input, shape index: {}]
  %s11 = inlined_call_operand.vmem [shape: f32[8,128], index: 11, kind: output, shape index: {}]
  %s12 = sld [smem:[#allocation0]]
  $region142: #{rnn1_forward.1} parent=0
    _
  %s14 = ssub.s32 1, %s12
  %s15 = scalar_select 0, %s14, %s12
  $region1: #{rnn1_forward.1} parent=0
    #allocation12 [shape = 'u32[9]{0}', space=smem, size = 0x24, scoped, tag = 'DMA stride descriptor']
    #allocation14 [shape = 'u32[9]{0}', space=smem, size = 0x24, scoped, tag = 'DMA stride descriptor']
    // Predicated region
    $region2: #{rnn1_forward.1} parent=1 // pred_check
      _
    $region3: #{rnn1_forward.1} parent=1 // pred_check_branch
      %17 = sbr.rel (0) target = $region5
    $region4: #{rnn1_forward.1} parent=1 // pred_region
      _
    $region5: #{rnn1_forward.1} parent=1 // pred_fallthru
      _
    // Predicated region
    $region6: #{rnn1_forward.1} parent=1 // pred_check
      _
    $region7: #{rnn1_forward.1} parent=1 // pred_check_branch
      %19 = sbr.rel (0) target = $region9
    $region8: #{rnn1_forward.1} parent=1 // pred_region
      _
    $region9: #{rnn1_forward.1} parent=1 // pred_fallthru
      _
    // Predicated region
    $region10: #{rnn1_forward.1} parent=1 // pred_check
      _
    $region11: #{rnn1_forward.1} parent=1 // pred_check_branch
      %21 = sbr.rel (0) target = $region13
    $region12: #{rnn1_forward.1} parent=1 // pred_region
      _
    $region13: #{rnn1_forward.1} parent=1 // pred_fallthru
      _
    // Predicated region
    $region14: #{rnn1_forward.1} parent=1 // pred_check
      _
    $region15: #{rnn1_forward.1} parent=1 // pred_check_branch
      %23 = sbr.rel (0) target = $region17
    $region16: #{rnn1_forward.1} parent=1 // pred_region
      _
    $region17: #{rnn1_forward.1} parent=1 // pred_fallthru
      _
    // Predicated region
    $region18: #{rnn1_forward.1} parent=1 // pred_check
      _
    $region19: #{rnn1_forward.1} parent=1 // pred_check_branch
      %25 = sbr.rel (0) target = $region21
    $region20: #{rnn1_forward.1} parent=1 // pred_region
      _
    $region21: #{rnn1_forward.1} parent=1 // pred_fallthru
      _
    // Predicated region
    $region22: #{rnn1_forward.1} parent=1 // pred_check
      _
    $region23: #{rnn1_forward.1} parent=1 // pred_check_branch
      %27 = sbr.rel (0) target = $region25
    $region24: #{rnn1_forward.1} parent=1 // pred_region
      _
    $region25: #{rnn1_forward.1} parent=1 // pred_fallthru
      _
    %p30 = scmp.lt.u32.totalorder 4, 8
    %p31 = pneg %p30
    // Predicated region
    $region26: #{rnn1_forward.1} parent=1 // pred_check
      _
    $region27: #{rnn1_forward.1} parent=1 // pred_check_branch
      %33 = sbr.rel (%p30) target = $region29
    $region28: #{rnn1_forward.1} parent=1 // pred_region
      %s174 = sand.u32 4, 7
      %p175 = scmp.eq.s32.totalorder %s174, 0
      %p176 = pneg %p175
      // Predicated region
      $region41: #{rnn1_forward.1} parent=28 // pred_check
        _
      $region42: #{rnn1_forward.1} parent=28 // pred_check_branch
        %178 = sbr.rel (%p175) target = $region44
      $region43: #{rnn1_forward.1} parent=28 // pred_region
        %s179 = sand.u32 4, 7
        %s180 = ssub.s32 4, %s179
        %s181 = scalar_lea.vmem %s2, %s180
        %s182 = ssub.s32 4, %s179
        %s183 = scalar_lea.vmem [#allocation3], %s182
        loop: start=0, step=1, limit=1
        $region45: #{rnn1_forward.1} parent=43 // loop_pre_header
          _
        $region46: #{rnn1_forward.1} parent=43 // loop_header
          %s185 = sphi 0, %s189
          %p186 = scmp.ge.s32.totalorder %s185, 1
          %s190 = sphi %s2, %s2
          %s191 = sphi [#allocation3], [#allocation3]
        $region47: #{rnn1_forward.1} parent=43 // loop_header_branch
          %188 = sbr.rel (%p186) target = $region51
        $region48: #{rnn1_forward.1} parent=43 // loop_body
          _
        $region49: #{rnn1_forward.1} parent=43 // loop_footer
          %s189 = sadd.s32 1, %s185
        $region50: #{rnn1_forward.1} parent=43 // loop_footer_branch
          %184 = sbr.rel target = $region46
        $region51: #{rnn1_forward.1} parent=43 // loop_exit
          _
        %s192 = sshllo.u32 0, %s179
        loop: start=0, step=1, limit=1
        $region52: #{rnn1_forward.1} parent=43 // loop_pre_header
          _
        $region53: #{rnn1_forward.1} parent=43 // loop_header
          %s194 = sphi 0, %s198
          %p195 = scmp.ge.s32.totalorder %s194, 1
          %s199 = sphi %s181, %s181
          %s200 = sphi %s183, %s183
        $region54: #{rnn1_forward.1} parent=43 // loop_header_branch
          %197 = sbr.rel (%p195) target = $region58
        $region55: #{rnn1_forward.1} parent=43 // loop_body
          %v201 = vld [vmem:[%s199] sm:%s192]
          %202 = vst [vmem:[%s200] sm:%s192] %v201
          %v203 = vld [vmem:[%s199 + $0x8] sm:%s192]
          %204 = vst [vmem:[%s200 + $0x4] sm:%s192] %v203
          %v205 = vld [vmem:[%s199 + $0x4] sm:%s192]
          %206 = vst [vmem:[%s200 + $0x8] sm:%s192] %v205
          %v207 = vld [vmem:[%s199 + $0xc] sm:%s192]
          %208 = vst [vmem:[%s200 + $0xc] sm:%s192] %v207
          %v209 = vld [vmem:[%s199 + $0x10] sm:%s192]
          %210 = vst [vmem:[%s200 + $0x10] sm:%s192] %v209
          %v211 = vld [vmem:[%s199 + $0x18] sm:%s192]
          %212 = vst [vmem:[%s200 + $0x14] sm:%s192] %v211
          %v213 = vld [vmem:[%s199 + $0x14] sm:%s192]
          %214 = vst [vmem:[%s200 + $0x18] sm:%s192] %v213
          %v215 = vld [vmem:[%s199 + $0x1c] sm:%s192]
          %216 = vst [vmem:[%s200 + $0x1c] sm:%s192] %v215
          %v217 = vld [vmem:[%s199 + $0x20] sm:%s192]
          %218 = vst [vmem:[%s200 + $0x20] sm:%s192] %v217
          %v219 = vld [vmem:[%s199 + $0x28] sm:%s192]
          %220 = vst [vmem:[%s200 + $0x24] sm:%s192] %v219
          %v221 = vld [vmem:[%s199 + $0x24] sm:%s192]
          %222 = vst [vmem:[%s200 + $0x28] sm:%s192] %v221
          %v223 = vld [vmem:[%s199 + $0x2c] sm:%s192]
          %224 = vst [vmem:[%s200 + $0x2c] sm:%s192] %v223
          %v225 = vld [vmem:[%s199 + $0x30] sm:%s192]
          %226 = vst [vmem:[%s200 + $0x30] sm:%s192] %v225
          %v227 = vld [vmem:[%s199 + $0x38] sm:%s192]
          %228 = vst [vmem:[%s200 + $0x34] sm:%s192] %v227
          %v229 = vld [vmem:[%s199 + $0x34] sm:%s192]
          %230 = vst [vmem:[%s200 + $0x38] sm:%s192] %v229
          %v231 = vld [vmem:[%s199 + $0x3c] sm:%s192]
          %232 = vst [vmem:[%s200 + $0x3c] sm:%s192] %v231
          %v233 = vld [vmem:[%s199 + $0x40] sm:%s192]
          %234 = vst [vmem:[%s200 + $0x40] sm:%s192] %v233
          %v235 = vld [vmem:[%s199 + $0x48] sm:%s192]
          %236 = vst [vmem:[%s200 + $0x44] sm:%s192] %v235
          %v237 = vld [vmem:[%s199 + $0x44] sm:%s192]
          %238 = vst [vmem:[%s200 + $0x48] sm:%s192] %v237
          %v239 = vld [vmem:[%s199 + $0x4c] sm:%s192]
          %240 = vst [vmem:[%s200 + $0x4c] sm:%s192] %v239
          %v241 = vld [vmem:[%s199 + $0x50] sm:%s192]
          %242 = vst [vmem:[%s200 + $0x50] sm:%s192] %v241
          %v243 = vld [vmem:[%s199 + $0x58] sm:%s192]
          %244 = vst [vmem:[%s200 + $0x54] sm:%s192] %v243
          %v245 = vld [vmem:[%s199 + $0x54] sm:%s192]
          %246 = vst [vmem:[%s200 + $0x58] sm:%s192] %v245
          %v247 = vld [vmem:[%s199 + $0x5c] sm:%s192]
          %248 = vst [vmem:[%s200 + $0x5c] sm:%s192] %v247
          %v249 = vld [vmem:[%s199 + $0x60] sm:%s192]
          %250 = vst [vmem:[%s200 + $0x60] sm:%s192] %v249
          %v251 = vld [vmem:[%s199 + $0x68] sm:%s192]
          %252 = vst [vmem:[%s200 + $0x64] sm:%s192] %v251
          %v253 = vld [vmem:[%s199 + $0x64] sm:%s192]
          %254 = vst [vmem:[%s200 + $0x68] sm:%s192] %v253
          %v255 = vld [vmem:[%s199 + $0x6c] sm:%s192]
          %256 = vst [vmem:[%s200 + $0x6c] sm:%s192] %v255
          %v257 = vld [vmem:[%s199 + $0x70] sm:%s192]
          %258 = vst [vmem:[%s200 + $0x70] sm:%s192] %v257
          %v259 = vld [vmem:[%s199 + $0x78] sm:%s192]
          %260 = vst [vmem:[%s200 + $0x74] sm:%s192] %v259
          %v261 = vld [vmem:[%s199 + $0x74] sm:%s192]
          %262 = vst [vmem:[%s200 + $0x78] sm:%s192] %v261
          %v263 = vld [vmem:[%s199 + $0x7c] sm:%s192]
          %264 = vst [vmem:[%s200 + $0x7c] sm:%s192] %v263
          %v265 = vld [vmem:[%s199 + $0x80] sm:%s192]
          %266 = vst [vmem:[%s200 + $0x80] sm:%s192] %v265
          %v267 = vld [vmem:[%s199 + $0x88] sm:%s192]
          %268 = vst [vmem:[%s200 + $0x84] sm:%s192] %v267
          %v269 = vld [vmem:[%s199 + $0x84] sm:%s192]
          %270 = vst [vmem:[%s200 + $0x88] sm:%s192] %v269
          %v271 = vld [vmem:[%s199 + $0x8c] sm:%s192]
          %272 = vst [vmem:[%s200 + $0x8c] sm:%s192] %v271
          %v273 = vld [vmem:[%s199 + $0x90] sm:%s192]
          %274 = vst [vmem:[%s200 + $0x90] sm:%s192] %v273
          %v275 = vld [vmem:[%s199 + $0x98] sm:%s192]
          %276 = vst [vmem:[%s200 + $0x94] sm:%s192] %v275
          %v277 = vld [vmem:[%s199 + $0x94] sm:%s192]
          %278 = vst [vmem:[%s200 + $0x98] sm:%s192] %v277
          %v279 = vld [vmem:[%s199 + $0x9c] sm:%s192]
          %280 = vst [vmem:[%s200 + $0x9c] sm:%s192] %v279
          %v281 = vld [vmem:[%s199 + $0xa0] sm:%s192]
          %282 = vst [vmem:[%s200 + $0xa0] sm:%s192] %v281
          %v283 = vld [vmem:[%s199 + $0xa8] sm:%s192]
          %284 = vst [vmem:[%s200 + $0xa4] sm:%s192] %v283
          %v285 = vld [vmem:[%s199 + $0xa4] sm:%s192]
          %286 = vst [vmem:[%s200 + $0xa8] sm:%s192] %v285
          %v287 = vld [vmem:[%s199 + $0xac] sm:%s192]
          %288 = vst [vmem:[%s200 + $0xac] sm:%s192] %v287
          %v289 = vld [vmem:[%s199 + $0xb0] sm:%s192]
          %290 = vst [vmem:[%s200 + $0xb0] sm:%s192] %v289
          %v291 = vld [vmem:[%s199 + $0xb8] sm:%s192]
          %292 = vst [vmem:[%s200 + $0xb4] sm:%s192] %v291
          %v293 = vld [vmem:[%s199 + $0xb4] sm:%s192]
          %294 = vst [vmem:[%s200 + $0xb8] sm:%s192] %v293
          %v295 = vld [vmem:[%s199 + $0xbc] sm:%s192]
          %296 = vst [vmem:[%s200 + $0xbc] sm:%s192] %v295
          %v297 = vld [vmem:[%s199 + $0xc0] sm:%s192]
          %298 = vst [vmem:[%s200 + $0xc0] sm:%s192] %v297
          %v299 = vld [vmem:[%s199 + $0xc8] sm:%s192]
          %300 = vst [vmem:[%s200 + $0xc4] sm:%s192] %v299
          %v301 = vld [vmem:[%s199 + $0xc4] sm:%s192]
          %302 = vst [vmem:[%s200 + $0xc8] sm:%s192] %v301
          %v303 = vld [vmem:[%s199 + $0xcc] sm:%s192]
          %304 = vst [vmem:[%s200 + $0xcc] sm:%s192] %v303
          %v305 = vld [vmem:[%s199 + $0xd0] sm:%s192]
          %306 = vst [vmem:[%s200 + $0xd0] sm:%s192] %v305
          %v307 = vld [vmem:[%s199 + $0xd8] sm:%s192]
          %308 = vst [vmem:[%s200 + $0xd4] sm:%s192] %v307
          %v309 = vld [vmem:[%s199 + $0xd4] sm:%s192]
          %310 = vst [vmem:[%s200 + $0xd8] sm:%s192] %v309
          %v311 = vld [vmem:[%s199 + $0xdc] sm:%s192]
          %312 = vst [vmem:[%s200 + $0xdc] sm:%s192] %v311
          %v313 = vld [vmem:[%s199 + $0xe0] sm:%s192]
          %314 = vst [vmem:[%s200 + $0xe0] sm:%s192] %v313
          %v315 = vld [vmem:[%s199 + $0xe8] sm:%s192]
          %316 = vst [vmem:[%s200 + $0xe4] sm:%s192] %v315
          %v317 = vld [vmem:[%s199 + $0xe4] sm:%s192]
          %318 = vst [vmem:[%s200 + $0xe8] sm:%s192] %v317
          %v319 = vld [vmem:[%s199 + $0xec] sm:%s192]
          %320 = vst [vmem:[%s200 + $0xec] sm:%s192] %v319
          %v321 = vld [vmem:[%s199 + $0xf0] sm:%s192]
          %322 = vst [vmem:[%s200 + $0xf0] sm:%s192] %v321
          %v323 = vld [vmem:[%s199 + $0xf8] sm:%s192]
          %324 = vst [vmem:[%s200 + $0xf4] sm:%s192] %v323
          %v325 = vld [vmem:[%s199 + $0xf4] sm:%s192]
          %326 = vst [vmem:[%s200 + $0xf8] sm:%s192] %v325
          %v327 = vld [vmem:[%s199 + $0xfc] sm:%s192]
          %328 = vst [vmem:[%s200 + $0xfc] sm:%s192] %v327
        $region56: #{rnn1_forward.1} parent=43 // loop_footer
          %s198 = sadd.s32 1, %s194
        $region57: #{rnn1_forward.1} parent=43 // loop_footer_branch
          %193 = sbr.rel target = $region53
        $region58: #{rnn1_forward.1} parent=43 // loop_exit
          _
      $region44: #{rnn1_forward.1} parent=28 // pred_fallthru
        _
    $region29: #{rnn1_forward.1} parent=1 // pred_fallthru
      _
    // Predicated region
    $region30: #{rnn1_forward.1} parent=1 // pred_check
      %p34 = pneg %p30
    $region31: #{rnn1_forward.1} parent=1 // pred_check_branch
      %36 = sbr.rel (%p34) target = $region33
    $region32: #{rnn1_forward.1} parent=1 // pred_region
      %s37 = sshllo.u32 0, 4
      loop: start=0, step=1, limit=1
      $region34: #{rnn1_forward.1} parent=32 // loop_pre_header
        _
      $region35: #{rnn1_forward.1} parent=32 // loop_header
        %s39 = sphi 0, %s43
        %p40 = scmp.ge.s32.totalorder %s39, 1
        %s44 = sphi %s2, %s2
        %s45 = sphi [#allocation3], [#allocation3]
      $region36: #{rnn1_forward.1} parent=32 // loop_header_branch
        %42 = sbr.rel (%p40) target = $region40
      $region37: #{rnn1_forward.1} parent=32 // loop_body
        %v46 = vld [vmem:[%s44] sm:%s37]
        %47 = vst [vmem:[%s45] sm:%s37] %v46
        %v48 = vld [vmem:[%s44 + $0x8] sm:%s37]
        %49 = vst [vmem:[%s45 + $0x4] sm:%s37] %v48
        %v50 = vld [vmem:[%s44 + $0x4] sm:%s37]
        %51 = vst [vmem:[%s45 + $0x8] sm:%s37] %v50
        %v52 = vld [vmem:[%s44 + $0xc] sm:%s37]
        %53 = vst [vmem:[%s45 + $0xc] sm:%s37] %v52
        %v54 = vld [vmem:[%s44 + $0x10] sm:%s37]
        %55 = vst [vmem:[%s45 + $0x10] sm:%s37] %v54
        %v56 = vld [vmem:[%s44 + $0x18] sm:%s37]
        %57 = vst [vmem:[%s45 + $0x14] sm:%s37] %v56
        %v58 = vld [vmem:[%s44 + $0x14] sm:%s37]
        %59 = vst [vmem:[%s45 + $0x18] sm:%s37] %v58
        %v60 = vld [vmem:[%s44 + $0x1c] sm:%s37]
        %61 = vst [vmem:[%s45 + $0x1c] sm:%s37] %v60
        %v62 = vld [vmem:[%s44 + $0x20] sm:%s37]
        %63 = vst [vmem:[%s45 + $0x20] sm:%s37] %v62
        %v64 = vld [vmem:[%s44 + $0x28] sm:%s37]
        %65 = vst [vmem:[%s45 + $0x24] sm:%s37] %v64
        %v66 = vld [vmem:[%s44 + $0x24] sm:%s37]
        %67 = vst [vmem:[%s45 + $0x28] sm:%s37] %v66
        %v68 = vld [vmem:[%s44 + $0x2c] sm:%s37]
        %69 = vst [vmem:[%s45 + $0x2c] sm:%s37] %v68
        %v70 = vld [vmem:[%s44 + $0x30] sm:%s37]
        %71 = vst [vmem:[%s45 + $0x30] sm:%s37] %v70
        %v72 = vld [vmem:[%s44 + $0x38] sm:%s37]
        %73 = vst [vmem:[%s45 + $0x34] sm:%s37] %v72
        %v74 = vld [vmem:[%s44 + $0x34] sm:%s37]
        %75 = vst [vmem:[%s45 + $0x38] sm:%s37] %v74
        %v76 = vld [vmem:[%s44 + $0x3c] sm:%s37]
        %77 = vst [vmem:[%s45 + $0x3c] sm:%s37] %v76
        %v78 = vld [vmem:[%s44 + $0x40] sm:%s37]
        %79 = vst [vmem:[%s45 + $0x40] sm:%s37] %v78
        %v80 = vld [vmem:[%s44 + $0x48] sm:%s37]
        %81 = vst [vmem:[%s45 + $0x44] sm:%s37] %v80
        %v82 = vld [vmem:[%s44 + $0x44] sm:%s37]
        %83 = vst [vmem:[%s45 + $0x48] sm:%s37] %v82
        %v84 = vld [vmem:[%s44 + $0x4c] sm:%s37]
        %85 = vst [vmem:[%s45 + $0x4c] sm:%s37] %v84
        %v86 = vld [vmem:[%s44 + $0x50] sm:%s37]
        %87 = vst [vmem:[%s45 + $0x50] sm:%s37] %v86
        %v88 = vld [vmem:[%s44 + $0x58] sm:%s37]
        %89 = vst [vmem:[%s45 + $0x54] sm:%s37] %v88
        %v90 = vld [vmem:[%s44 + $0x54] sm:%s37]
        %91 = vst [vmem:[%s45 + $0x58] sm:%s37] %v90
        %v92 = vld [vmem:[%s44 + $0x5c] sm:%s37]
        %93 = vst [vmem:[%s45 + $0x5c] sm:%s37] %v92
        %v94 = vld [vmem:[%s44 + $0x60] sm:%s37]
        %95 = vst [vmem:[%s45 + $0x60] sm:%s37] %v94
        %v96 = vld [vmem:[%s44 + $0x68] sm:%s37]
        %97 = vst [vmem:[%s45 + $0x64] sm:%s37] %v96
        %v98 = vld [vmem:[%s44 + $0x64] sm:%s37]
        %99 = vst [vmem:[%s45 + $0x68] sm:%s37] %v98
        %v100 = vld [vmem:[%s44 + $0x6c] sm:%s37]
        %101 = vst [vmem:[%s45 + $0x6c] sm:%s37] %v100
        %v102 = vld [vmem:[%s44 + $0x70] sm:%s37]
        %103 = vst [vmem:[%s45 + $0x70] sm:%s37] %v102
        %v104 = vld [vmem:[%s44 + $0x78] sm:%s37]
        %105 = vst [vmem:[%s45 + $0x74] sm:%s37] %v104
        %v106 = vld [vmem:[%s44 + $0x74] sm:%s37]
        %107 = vst [vmem:[%s45 + $0x78] sm:%s37] %v106
        %v108 = vld [vmem:[%s44 + $0x7c] sm:%s37]
        %109 = vst [vmem:[%s45 + $0x7c] sm:%s37] %v108
        %v110 = vld [vmem:[%s44 + $0x80] sm:%s37]
        %111 = vst [vmem:[%s45 + $0x80] sm:%s37] %v110
        %v112 = vld [vmem:[%s44 + $0x88] sm:%s37]
        %113 = vst [vmem:[%s45 + $0x84] sm:%s37] %v112
        %v114 = vld [vmem:[%s44 + $0x84] sm:%s37]
        %115 = vst [vmem:[%s45 + $0x88] sm:%s37] %v114
        %v116 = vld [vmem:[%s44 + $0x8c] sm:%s37]
        %117 = vst [vmem:[%s45 + $0x8c] sm:%s37] %v116
        %v118 = vld [vmem:[%s44 + $0x90] sm:%s37]
        %119 = vst [vmem:[%s45 + $0x90] sm:%s37] %v118
        %v120 = vld [vmem:[%s44 + $0x98] sm:%s37]
        %121 = vst [vmem:[%s45 + $0x94] sm:%s37] %v120
        %v122 = vld [vmem:[%s44 + $0x94] sm:%s37]
        %123 = vst [vmem:[%s45 + $0x98] sm:%s37] %v122
        %v124 = vld [vmem:[%s44 + $0x9c] sm:%s37]
        %125 = vst [vmem:[%s45 + $0x9c] sm:%s37] %v124
        %v126 = vld [vmem:[%s44 + $0xa0] sm:%s37]
        %127 = vst [vmem:[%s45 + $0xa0] sm:%s37] %v126
        %v128 = vld [vmem:[%s44 + $0xa8] sm:%s37]
        %129 = vst [vmem:[%s45 + $0xa4] sm:%s37] %v128
        %v130 = vld [vmem:[%s44 + $0xa4] sm:%s37]
        %131 = vst [vmem:[%s45 + $0xa8] sm:%s37] %v130
        %v132 = vld [vmem:[%s44 + $0xac] sm:%s37]
        %133 = vst [vmem:[%s45 + $0xac] sm:%s37] %v132
        %v134 = vld [vmem:[%s44 + $0xb0] sm:%s37]
        %135 = vst [vmem:[%s45 + $0xb0] sm:%s37] %v134
        %v136 = vld [vmem:[%s44 + $0xb8] sm:%s37]
        %137 = vst [vmem:[%s45 + $0xb4] sm:%s37] %v136
        %v138 = vld [vmem:[%s44 + $0xb4] sm:%s37]
        %139 = vst [vmem:[%s45 + $0xb8] sm:%s37] %v138
        %v140 = vld [vmem:[%s44 + $0xbc] sm:%s37]
        %141 = vst [vmem:[%s45 + $0xbc] sm:%s37] %v140
        %v142 = vld [vmem:[%s44 + $0xc0] sm:%s37]
        %143 = vst [vmem:[%s45 + $0xc0] sm:%s37] %v142
        %v144 = vld [vmem:[%s44 + $0xc8] sm:%s37]
        %145 = vst [vmem:[%s45 + $0xc4] sm:%s37] %v144
        %v146 = vld [vmem:[%s44 + $0xc4] sm:%s37]
        %147 = vst [vmem:[%s45 + $0xc8] sm:%s37] %v146
        %v148 = vld [vmem:[%s44 + $0xcc] sm:%s37]
        %149 = vst [vmem:[%s45 + $0xcc] sm:%s37] %v148
        %v150 = vld [vmem:[%s44 + $0xd0] sm:%s37]
        %151 = vst [vmem:[%s45 + $0xd0] sm:%s37] %v150
        %v152 = vld [vmem:[%s44 + $0xd8] sm:%s37]
        %153 = vst [vmem:[%s45 + $0xd4] sm:%s37] %v152
        %v154 = vld [vmem:[%s44 + $0xd4] sm:%s37]
        %155 = vst [vmem:[%s45 + $0xd8] sm:%s37] %v154
        %v156 = vld [vmem:[%s44 + $0xdc] sm:%s37]
        %157 = vst [vmem:[%s45 + $0xdc] sm:%s37] %v156
        %v158 = vld [vmem:[%s44 + $0xe0] sm:%s37]
        %159 = vst [vmem:[%s45 + $0xe0] sm:%s37] %v158
        %v160 = vld [vmem:[%s44 + $0xe8] sm:%s37]
        %161 = vst [vmem:[%s45 + $0xe4] sm:%s37] %v160
        %v162 = vld [vmem:[%s44 + $0xe4] sm:%s37]
        %163 = vst [vmem:[%s45 + $0xe8] sm:%s37] %v162
        %v164 = vld [vmem:[%s44 + $0xec] sm:%s37]
        %165 = vst [vmem:[%s45 + $0xec] sm:%s37] %v164
        %v166 = vld [vmem:[%s44 + $0xf0] sm:%s37]
        %167 = vst [vmem:[%s45 + $0xf0] sm:%s37] %v166
        %v168 = vld [vmem:[%s44 + $0xf8] sm:%s37]
        %169 = vst [vmem:[%s45 + $0xf4] sm:%s37] %v168
        %v170 = vld [vmem:[%s44 + $0xf4] sm:%s37]
        %171 = vst [vmem:[%s45 + $0xf8] sm:%s37] %v170
        %v172 = vld [vmem:[%s44 + $0xfc] sm:%s37]
        %173 = vst [vmem:[%s45 + $0xfc] sm:%s37] %v172
      $region38: #{rnn1_forward.1} parent=32 // loop_footer
        %s43 = sadd.s32 1, %s39
      $region39: #{rnn1_forward.1} parent=32 // loop_footer_branch
        %38 = sbr.rel target = $region35
      $region40: #{rnn1_forward.1} parent=32 // loop_exit
        _
    $region33: #{rnn1_forward.1} parent=1 // pred_fallthru
      _
    // Predicated region
    $region59: #{rnn1_forward.1} parent=1 // pred_check
      _
    $region60: #{rnn1_forward.1} parent=1 // pred_check_branch
      %331 = sbr.rel (0) target = $region62
    $region61: #{rnn1_forward.1} parent=1 // pred_region
      %332 = vsyncadd [#allocation8], 4096
    $region62: #{rnn1_forward.1} parent=1 // pred_fallthru
      _
    %s333 = scalar_lea.sflag [#allocation8], 1
    %p335 = scmp.lt.u32.totalorder 4, 8
    %p336 = pneg %p335
    // Predicated region
    $region63: #{rnn1_forward.1} parent=1 // pred_check
      _
    $region64: #{rnn1_forward.1} parent=1 // pred_check_branch
      %338 = sbr.rel (%p335) target = $region66
    $region65: #{rnn1_forward.1} parent=1 // pred_region
      %s479 = sand.u32 4, 7
      %p480 = scmp.eq.s32.totalorder %s479, 0
      %p481 = pneg %p480
      // Predicated region
      $region78: #{rnn1_forward.1} parent=65 // pred_check
        _
      $region79: #{rnn1_forward.1} parent=65 // pred_check_branch
        %483 = sbr.rel (%p480) target = $region81
      $region80: #{rnn1_forward.1} parent=65 // pred_region
        %s484 = sand.u32 4, 7
        %s485 = ssub.s32 4, %s484
        %s486 = scalar_lea.vmem %s4, %s485
        %s487 = ssub.s32 4, %s484
        %s488 = scalar_lea.vmem [#allocation4], %s487
        loop: start=0, step=1, limit=1
        $region82: #{rnn1_forward.1} parent=80 // loop_pre_header
          _
        $region83: #{rnn1_forward.1} parent=80 // loop_header
          %s490 = sphi 0, %s494
          %p491 = scmp.ge.s32.totalorder %s490, 1
          %s495 = sphi %s4, %s4
          %s496 = sphi [#allocation4], [#allocation4]
        $region84: #{rnn1_forward.1} parent=80 // loop_header_branch
          %493 = sbr.rel (%p491) target = $region88
        $region85: #{rnn1_forward.1} parent=80 // loop_body
          _
        $region86: #{rnn1_forward.1} parent=80 // loop_footer
          %s494 = sadd.s32 1, %s490
        $region87: #{rnn1_forward.1} parent=80 // loop_footer_branch
          %489 = sbr.rel target = $region83
        $region88: #{rnn1_forward.1} parent=80 // loop_exit
          _
        %s497 = sshllo.u32 0, %s484
        loop: start=0, step=1, limit=1
        $region89: #{rnn1_forward.1} parent=80 // loop_pre_header
          _
        $region90: #{rnn1_forward.1} parent=80 // loop_header
          %s499 = sphi 0, %s503
          %p500 = scmp.ge.s32.totalorder %s499, 1
          %s504 = sphi %s486, %s486
          %s505 = sphi %s488, %s488
        $region91: #{rnn1_forward.1} parent=80 // loop_header_branch
          %502 = sbr.rel (%p500) target = $region95
        $region92: #{rnn1_forward.1} parent=80 // loop_body
          %v506 = vld [vmem:[%s504] sm:%s497]
          %507 = vst [vmem:[%s505] sm:%s497] %v506
          %v508 = vld [vmem:[%s504 + $0x8] sm:%s497]
          %509 = vst [vmem:[%s505 + $0x4] sm:%s497] %v508
          %v510 = vld [vmem:[%s504 + $0x4] sm:%s497]
          %511 = vst [vmem:[%s505 + $0x8] sm:%s497] %v510
          %v512 = vld [vmem:[%s504 + $0xc] sm:%s497]
          %513 = vst [vmem:[%s505 + $0xc] sm:%s497] %v512
          %v514 = vld [vmem:[%s504 + $0x10] sm:%s497]
          %515 = vst [vmem:[%s505 + $0x10] sm:%s497] %v514
          %v516 = vld [vmem:[%s504 + $0x18] sm:%s497]
          %517 = vst [vmem:[%s505 + $0x14] sm:%s497] %v516
          %v518 = vld [vmem:[%s504 + $0x14] sm:%s497]
          %519 = vst [vmem:[%s505 + $0x18] sm:%s497] %v518
          %v520 = vld [vmem:[%s504 + $0x1c] sm:%s497]
          %521 = vst [vmem:[%s505 + $0x1c] sm:%s497] %v520
          %v522 = vld [vmem:[%s504 + $0x20] sm:%s497]
          %523 = vst [vmem:[%s505 + $0x20] sm:%s497] %v522
          %v524 = vld [vmem:[%s504 + $0x28] sm:%s497]
          %525 = vst [vmem:[%s505 + $0x24] sm:%s497] %v524
          %v526 = vld [vmem:[%s504 + $0x24] sm:%s497]
          %527 = vst [vmem:[%s505 + $0x28] sm:%s497] %v526
          %v528 = vld [vmem:[%s504 + $0x2c] sm:%s497]
          %529 = vst [vmem:[%s505 + $0x2c] sm:%s497] %v528
          %v530 = vld [vmem:[%s504 + $0x30] sm:%s497]
          %531 = vst [vmem:[%s505 + $0x30] sm:%s497] %v530
          %v532 = vld [vmem:[%s504 + $0x38] sm:%s497]
          %533 = vst [vmem:[%s505 + $0x34] sm:%s497] %v532
          %v534 = vld [vmem:[%s504 + $0x34] sm:%s497]
          %535 = vst [vmem:[%s505 + $0x38] sm:%s497] %v534
          %v536 = vld [vmem:[%s504 + $0x3c] sm:%s497]
          %537 = vst [vmem:[%s505 + $0x3c] sm:%s497] %v536
          %v538 = vld [vmem:[%s504 + $0x40] sm:%s497]
          %539 = vst [vmem:[%s505 + $0x40] sm:%s497] %v538
          %v540 = vld [vmem:[%s504 + $0x48] sm:%s497]
          %541 = vst [vmem:[%s505 + $0x44] sm:%s497] %v540
          %v542 = vld [vmem:[%s504 + $0x44] sm:%s497]
          %543 = vst [vmem:[%s505 + $0x48] sm:%s497] %v542
          %v544 = vld [vmem:[%s504 + $0x4c] sm:%s497]
          %545 = vst [vmem:[%s505 + $0x4c] sm:%s497] %v544
          %v546 = vld [vmem:[%s504 + $0x50] sm:%s497]
          %547 = vst [vmem:[%s505 + $0x50] sm:%s497] %v546
          %v548 = vld [vmem:[%s504 + $0x58] sm:%s497]
          %549 = vst [vmem:[%s505 + $0x54] sm:%s497] %v548
          %v550 = vld [vmem:[%s504 + $0x54] sm:%s497]
          %551 = vst [vmem:[%s505 + $0x58] sm:%s497] %v550
          %v552 = vld [vmem:[%s504 + $0x5c] sm:%s497]
          %553 = vst [vmem:[%s505 + $0x5c] sm:%s497] %v552
          %v554 = vld [vmem:[%s504 + $0x60] sm:%s497]
          %555 = vst [vmem:[%s505 + $0x60] sm:%s497] %v554
          %v556 = vld [vmem:[%s504 + $0x68] sm:%s497]
          %557 = vst [vmem:[%s505 + $0x64] sm:%s497] %v556
          %v558 = vld [vmem:[%s504 + $0x64] sm:%s497]
          %559 = vst [vmem:[%s505 + $0x68] sm:%s497] %v558
          %v560 = vld [vmem:[%s504 + $0x6c] sm:%s497]
          %561 = vst [vmem:[%s505 + $0x6c] sm:%s497] %v560
          %v562 = vld [vmem:[%s504 + $0x70] sm:%s497]
          %563 = vst [vmem:[%s505 + $0x70] sm:%s497] %v562
          %v564 = vld [vmem:[%s504 + $0x78] sm:%s497]
          %565 = vst [vmem:[%s505 + $0x74] sm:%s497] %v564
          %v566 = vld [vmem:[%s504 + $0x74] sm:%s497]
          %567 = vst [vmem:[%s505 + $0x78] sm:%s497] %v566
          %v568 = vld [vmem:[%s504 + $0x7c] sm:%s497]
          %569 = vst [vmem:[%s505 + $0x7c] sm:%s497] %v568
          %v570 = vld [vmem:[%s504 + $0x80] sm:%s497]
          %571 = vst [vmem:[%s505 + $0x80] sm:%s497] %v570
          %v572 = vld [vmem:[%s504 + $0x88] sm:%s497]
          %573 = vst [vmem:[%s505 + $0x84] sm:%s497] %v572
          %v574 = vld [vmem:[%s504 + $0x84] sm:%s497]
          %575 = vst [vmem:[%s505 + $0x88] sm:%s497] %v574
          %v576 = vld [vmem:[%s504 + $0x8c] sm:%s497]
          %577 = vst [vmem:[%s505 + $0x8c] sm:%s497] %v576
          %v578 = vld [vmem:[%s504 + $0x90] sm:%s497]
          %579 = vst [vmem:[%s505 + $0x90] sm:%s497] %v578
          %v580 = vld [vmem:[%s504 + $0x98] sm:%s497]
          %581 = vst [vmem:[%s505 + $0x94] sm:%s497] %v580
          %v582 = vld [vmem:[%s504 + $0x94] sm:%s497]
          %583 = vst [vmem:[%s505 + $0x98] sm:%s497] %v582
          %v584 = vld [vmem:[%s504 + $0x9c] sm:%s497]
          %585 = vst [vmem:[%s505 + $0x9c] sm:%s497] %v584
          %v586 = vld [vmem:[%s504 + $0xa0] sm:%s497]
          %587 = vst [vmem:[%s505 + $0xa0] sm:%s497] %v586
          %v588 = vld [vmem:[%s504 + $0xa8] sm:%s497]
          %589 = vst [vmem:[%s505 + $0xa4] sm:%s497] %v588
          %v590 = vld [vmem:[%s504 + $0xa4] sm:%s497]
          %591 = vst [vmem:[%s505 + $0xa8] sm:%s497] %v590
          %v592 = vld [vmem:[%s504 + $0xac] sm:%s497]
          %593 = vst [vmem:[%s505 + $0xac] sm:%s497] %v592
          %v594 = vld [vmem:[%s504 + $0xb0] sm:%s497]
          %595 = vst [vmem:[%s505 + $0xb0] sm:%s497] %v594
          %v596 = vld [vmem:[%s504 + $0xb8] sm:%s497]
          %597 = vst [vmem:[%s505 + $0xb4] sm:%s497] %v596
          %v598 = vld [vmem:[%s504 + $0xb4] sm:%s497]
          %599 = vst [vmem:[%s505 + $0xb8] sm:%s497] %v598
          %v600 = vld [vmem:[%s504 + $0xbc] sm:%s497]
          %601 = vst [vmem:[%s505 + $0xbc] sm:%s497] %v600
          %v602 = vld [vmem:[%s504 + $0xc0] sm:%s497]
          %603 = vst [vmem:[%s505 + $0xc0] sm:%s497] %v602
          %v604 = vld [vmem:[%s504 + $0xc8] sm:%s497]
          %605 = vst [vmem:[%s505 + $0xc4] sm:%s497] %v604
          %v606 = vld [vmem:[%s504 + $0xc4] sm:%s497]
          %607 = vst [vmem:[%s505 + $0xc8] sm:%s497] %v606
          %v608 = vld [vmem:[%s504 + $0xcc] sm:%s497]
          %609 = vst [vmem:[%s505 + $0xcc] sm:%s497] %v608
          %v610 = vld [vmem:[%s504 + $0xd0] sm:%s497]
          %611 = vst [vmem:[%s505 + $0xd0] sm:%s497] %v610
          %v612 = vld [vmem:[%s504 + $0xd8] sm:%s497]
          %613 = vst [vmem:[%s505 + $0xd4] sm:%s497] %v612
          %v614 = vld [vmem:[%s504 + $0xd4] sm:%s497]
          %615 = vst [vmem:[%s505 + $0xd8] sm:%s497] %v614
          %v616 = vld [vmem:[%s504 + $0xdc] sm:%s497]
          %617 = vst [vmem:[%s505 + $0xdc] sm:%s497] %v616
          %v618 = vld [vmem:[%s504 + $0xe0] sm:%s497]
          %619 = vst [vmem:[%s505 + $0xe0] sm:%s497] %v618
          %v620 = vld [vmem:[%s504 + $0xe8] sm:%s497]
          %621 = vst [vmem:[%s505 + $0xe4] sm:%s497] %v620
          %v622 = vld [vmem:[%s504 + $0xe4] sm:%s497]
          %623 = vst [vmem:[%s505 + $0xe8] sm:%s497] %v622
          %v624 = vld [vmem:[%s504 + $0xec] sm:%s497]
          %625 = vst [vmem:[%s505 + $0xec] sm:%s497] %v624
          %v626 = vld [vmem:[%s504 + $0xf0] sm:%s497]
          %627 = vst [vmem:[%s505 + $0xf0] sm:%s497] %v626
          %v628 = vld [vmem:[%s504 + $0xf8] sm:%s497]
          %629 = vst [vmem:[%s505 + $0xf4] sm:%s497] %v628
          %v630 = vld [vmem:[%s504 + $0xf4] sm:%s497]
          %631 = vst [vmem:[%s505 + $0xf8] sm:%s497] %v630
          %v632 = vld [vmem:[%s504 + $0xfc] sm:%s497]
          %633 = vst [vmem:[%s505 + $0xfc] sm:%s497] %v632
        $region93: #{rnn1_forward.1} parent=80 // loop_footer
          %s503 = sadd.s32 1, %s499
        $region94: #{rnn1_forward.1} parent=80 // loop_footer_branch
          %498 = sbr.rel target = $region90
        $region95: #{rnn1_forward.1} parent=80 // loop_exit
          _
      $region81: #{rnn1_forward.1} parent=65 // pred_fallthru
        _
    $region66: #{rnn1_forward.1} parent=1 // pred_fallthru
      _
    // Predicated region
    $region67: #{rnn1_forward.1} parent=1 // pred_check
      %p339 = pneg %p335
    $region68: #{rnn1_forward.1} parent=1 // pred_check_branch
      %341 = sbr.rel (%p339) target = $region70
    $region69: #{rnn1_forward.1} parent=1 // pred_region
      %s342 = sshllo.u32 0, 4
      loop: start=0, step=1, limit=1
      $region71: #{rnn1_forward.1} parent=69 // loop_pre_header
        _
      $region72: #{rnn1_forward.1} parent=69 // loop_header
        %s344 = sphi 0, %s348
        %p345 = scmp.ge.s32.totalorder %s344, 1
        %s349 = sphi %s4, %s4
        %s350 = sphi [#allocation4], [#allocation4]
      $region73: #{rnn1_forward.1} parent=69 // loop_header_branch
        %347 = sbr.rel (%p345) target = $region77
      $region74: #{rnn1_forward.1} parent=69 // loop_body
        %v351 = vld [vmem:[%s349] sm:%s342]
        %352 = vst [vmem:[%s350] sm:%s342] %v351
        %v353 = vld [vmem:[%s349 + $0x8] sm:%s342]
        %354 = vst [vmem:[%s350 + $0x4] sm:%s342] %v353
        %v355 = vld [vmem:[%s349 + $0x4] sm:%s342]
        %356 = vst [vmem:[%s350 + $0x8] sm:%s342] %v355
        %v357 = vld [vmem:[%s349 + $0xc] sm:%s342]
        %358 = vst [vmem:[%s350 + $0xc] sm:%s342] %v357
        %v359 = vld [vmem:[%s349 + $0x10] sm:%s342]
        %360 = vst [vmem:[%s350 + $0x10] sm:%s342] %v359
        %v361 = vld [vmem:[%s349 + $0x18] sm:%s342]
        %362 = vst [vmem:[%s350 + $0x14] sm:%s342] %v361
        %v363 = vld [vmem:[%s349 + $0x14] sm:%s342]
        %364 = vst [vmem:[%s350 + $0x18] sm:%s342] %v363
        %v365 = vld [vmem:[%s349 + $0x1c] sm:%s342]
        %366 = vst [vmem:[%s350 + $0x1c] sm:%s342] %v365
        %v367 = vld [vmem:[%s349 + $0x20] sm:%s342]
        %368 = vst [vmem:[%s350 + $0x20] sm:%s342] %v367
        %v369 = vld [vmem:[%s349 + $0x28] sm:%s342]
        %370 = vst [vmem:[%s350 + $0x24] sm:%s342] %v369
        %v371 = vld [vmem:[%s349 + $0x24] sm:%s342]
        %372 = vst [vmem:[%s350 + $0x28] sm:%s342] %v371
        %v373 = vld [vmem:[%s349 + $0x2c] sm:%s342]
        %374 = vst [vmem:[%s350 + $0x2c] sm:%s342] %v373
        %v375 = vld [vmem:[%s349 + $0x30] sm:%s342]
        %376 = vst [vmem:[%s350 + $0x30] sm:%s342] %v375
        %v377 = vld [vmem:[%s349 + $0x38] sm:%s342]
        %378 = vst [vmem:[%s350 + $0x34] sm:%s342] %v377
        %v379 = vld [vmem:[%s349 + $0x34] sm:%s342]
        %380 = vst [vmem:[%s350 + $0x38] sm:%s342] %v379
        %v381 = vld [vmem:[%s349 + $0x3c] sm:%s342]
        %382 = vst [vmem:[%s350 + $0x3c] sm:%s342] %v381
        %v383 = vld [vmem:[%s349 + $0x40] sm:%s342]
        %384 = vst [vmem:[%s350 + $0x40] sm:%s342] %v383
        %v385 = vld [vmem:[%s349 + $0x48] sm:%s342]
        %386 = vst [vmem:[%s350 + $0x44] sm:%s342] %v385
        %v387 = vld [vmem:[%s349 + $0x44] sm:%s342]
        %388 = vst [vmem:[%s350 + $0x48] sm:%s342] %v387
        %v389 = vld [vmem:[%s349 + $0x4c] sm:%s342]
        %390 = vst [vmem:[%s350 + $0x4c] sm:%s342] %v389
        %v391 = vld [vmem:[%s349 + $0x50] sm:%s342]
        %392 = vst [vmem:[%s350 + $0x50] sm:%s342] %v391
        %v393 = vld [vmem:[%s349 + $0x58] sm:%s342]
        %394 = vst [vmem:[%s350 + $0x54] sm:%s342] %v393
        %v395 = vld [vmem:[%s349 + $0x54] sm:%s342]
        %396 = vst [vmem:[%s350 + $0x58] sm:%s342] %v395
        %v397 = vld [vmem:[%s349 + $0x5c] sm:%s342]
        %398 = vst [vmem:[%s350 + $0x5c] sm:%s342] %v397
        %v399 = vld [vmem:[%s349 + $0x60] sm:%s342]
        %400 = vst [vmem:[%s350 + $0x60] sm:%s342] %v399
        %v401 = vld [vmem:[%s349 + $0x68] sm:%s342]
        %402 = vst [vmem:[%s350 + $0x64] sm:%s342] %v401
        %v403 = vld [vmem:[%s349 + $0x64] sm:%s342]
        %404 = vst [vmem:[%s350 + $0x68] sm:%s342] %v403
        %v405 = vld [vmem:[%s349 + $0x6c] sm:%s342]
        %406 = vst [vmem:[%s350 + $0x6c] sm:%s342] %v405
        %v407 = vld [vmem:[%s349 + $0x70] sm:%s342]
        %408 = vst [vmem:[%s350 + $0x70] sm:%s342] %v407
        %v409 = vld [vmem:[%s349 + $0x78] sm:%s342]
        %410 = vst [vmem:[%s350 + $0x74] sm:%s342] %v409
        %v411 = vld [vmem:[%s349 + $0x74] sm:%s342]
        %412 = vst [vmem:[%s350 + $0x78] sm:%s342] %v411
        %v413 = vld [vmem:[%s349 + $0x7c] sm:%s342]
        %414 = vst [vmem:[%s350 + $0x7c] sm:%s342] %v413
        %v415 = vld [vmem:[%s349 + $0x80] sm:%s342]
        %416 = vst [vmem:[%s350 + $0x80] sm:%s342] %v415
        %v417 = vld [vmem:[%s349 + $0x88] sm:%s342]
        %418 = vst [vmem:[%s350 + $0x84] sm:%s342] %v417
        %v419 = vld [vmem:[%s349 + $0x84] sm:%s342]
        %420 = vst [vmem:[%s350 + $0x88] sm:%s342] %v419
        %v421 = vld [vmem:[%s349 + $0x8c] sm:%s342]
        %422 = vst [vmem:[%s350 + $0x8c] sm:%s342] %v421
        %v423 = vld [vmem:[%s349 + $0x90] sm:%s342]
        %424 = vst [vmem:[%s350 + $0x90] sm:%s342] %v423
        %v425 = vld [vmem:[%s349 + $0x98] sm:%s342]
        %426 = vst [vmem:[%s350 + $0x94] sm:%s342] %v425
        %v427 = vld [vmem:[%s349 + $0x94] sm:%s342]
        %428 = vst [vmem:[%s350 + $0x98] sm:%s342] %v427
        %v429 = vld [vmem:[%s349 + $0x9c] sm:%s342]
        %430 = vst [vmem:[%s350 + $0x9c] sm:%s342] %v429
        %v431 = vld [vmem:[%s349 + $0xa0] sm:%s342]
        %432 = vst [vmem:[%s350 + $0xa0] sm:%s342] %v431
        %v433 = vld [vmem:[%s349 + $0xa8] sm:%s342]
        %434 = vst [vmem:[%s350 + $0xa4] sm:%s342] %v433
        %v435 = vld [vmem:[%s349 + $0xa4] sm:%s342]
        %436 = vst [vmem:[%s350 + $0xa8] sm:%s342] %v435
        %v437 = vld [vmem:[%s349 + $0xac] sm:%s342]
        %438 = vst [vmem:[%s350 + $0xac] sm:%s342] %v437
        %v439 = vld [vmem:[%s349 + $0xb0] sm:%s342]
        %440 = vst [vmem:[%s350 + $0xb0] sm:%s342] %v439
        %v441 = vld [vmem:[%s349 + $0xb8] sm:%s342]
        %442 = vst [vmem:[%s350 + $0xb4] sm:%s342] %v441
        %v443 = vld [vmem:[%s349 + $0xb4] sm:%s342]
        %444 = vst [vmem:[%s350 + $0xb8] sm:%s342] %v443
        %v445 = vld [vmem:[%s349 + $0xbc] sm:%s342]
        %446 = vst [vmem:[%s350 + $0xbc] sm:%s342] %v445
        %v447 = vld [vmem:[%s349 + $0xc0] sm:%s342]
        %448 = vst [vmem:[%s350 + $0xc0] sm:%s342] %v447
        %v449 = vld [vmem:[%s349 + $0xc8] sm:%s342]
        %450 = vst [vmem:[%s350 + $0xc4] sm:%s342] %v449
        %v451 = vld [vmem:[%s349 + $0xc4] sm:%s342]
        %452 = vst [vmem:[%s350 + $0xc8] sm:%s342] %v451
        %v453 = vld [vmem:[%s349 + $0xcc] sm:%s342]
        %454 = vst [vmem:[%s350 + $0xcc] sm:%s342] %v453
        %v455 = vld [vmem:[%s349 + $0xd0] sm:%s342]
        %456 = vst [vmem:[%s350 + $0xd0] sm:%s342] %v455
        %v457 = vld [vmem:[%s349 + $0xd8] sm:%s342]
        %458 = vst [vmem:[%s350 + $0xd4] sm:%s342] %v457
        %v459 = vld [vmem:[%s349 + $0xd4] sm:%s342]
        %460 = vst [vmem:[%s350 + $0xd8] sm:%s342] %v459
        %v461 = vld [vmem:[%s349 + $0xdc] sm:%s342]
        %462 = vst [vmem:[%s350 + $0xdc] sm:%s342] %v461
        %v463 = vld [vmem:[%s349 + $0xe0] sm:%s342]
        %464 = vst [vmem:[%s350 + $0xe0] sm:%s342] %v463
        %v465 = vld [vmem:[%s349 + $0xe8] sm:%s342]
        %466 = vst [vmem:[%s350 + $0xe4] sm:%s342] %v465
        %v467 = vld [vmem:[%s349 + $0xe4] sm:%s342]
        %468 = vst [vmem:[%s350 + $0xe8] sm:%s342] %v467
        %v469 = vld [vmem:[%s349 + $0xec] sm:%s342]
        %470 = vst [vmem:[%s350 + $0xec] sm:%s342] %v469
        %v471 = vld [vmem:[%s349 + $0xf0] sm:%s342]
        %472 = vst [vmem:[%s350 + $0xf0] sm:%s342] %v471
        %v473 = vld [vmem:[%s349 + $0xf8] sm:%s342]
        %474 = vst [vmem:[%s350 + $0xf4] sm:%s342] %v473
        %v475 = vld [vmem:[%s349 + $0xf4] sm:%s342]
        %476 = vst [vmem:[%s350 + $0xf8] sm:%s342] %v475
        %v477 = vld [vmem:[%s349 + $0xfc] sm:%s342]
        %478 = vst [vmem:[%s350 + $0xfc] sm:%s342] %v477
      $region75: #{rnn1_forward.1} parent=69 // loop_footer
        %s348 = sadd.s32 1, %s344
      $region76: #{rnn1_forward.1} parent=69 // loop_footer_branch
        %343 = sbr.rel target = $region72
      $region77: #{rnn1_forward.1} parent=69 // loop_exit
        _
    $region70: #{rnn1_forward.1} parent=1 // pred_fallthru
      _
    // Predicated region
    $region96: #{rnn1_forward.1} parent=1 // pred_check
      _
    $region97: #{rnn1_forward.1} parent=1 // pred_check_branch
      %636 = sbr.rel (0) target = $region99
    $region98: #{rnn1_forward.1} parent=1 // pred_region
      %637 = vsyncadd %s333, 4096
    $region99: #{rnn1_forward.1} parent=1 // pred_fallthru
      _
    %s638 = scalar_lea.sflag [#allocation8], 2
    %s640 = sshll.u32 1, 14
    %s641 = sxor.u32 4294967295, %s640
    %s643 = sld [smem:[#allocation0]]
    %s644 = sadd.s32 2, %s643
    %s646 = sshll.u32 7, 26
    %s647 = sxor.u32 4294967295, %s646
    %s648 = sand.u32 0, %s647
    %s649 = sshll.u32 %s644, 26
    %s650 = sor.u32 %s648, %s649
    %s651 = sshll.u32 [#allocation5], 4
    %s652 = int_to_ptr.vmem [resolvable:$true] %s651
    %655 = sst [smem:[#allocation12]] 256
    %s656 = scalar_lea.smem [#allocation12], 1
    %657 = sst [smem:[%s656]] 256
    %s658 = scalar_lea.smem [#allocation12], 2
    %659 = sst [smem:[%s658]] 2
    %s660 = scalar_lea.smem [#allocation12], 3
    %661 = sst [smem:[%s660]] 64
    %s662 = scalar_lea.smem [#allocation12], 4
    %663 = sst [smem:[%s662]] 128
    %s664 = scalar_lea.smem [#allocation12], 5
    %665 = sst [smem:[%s664]] 2
    %s666 = scalar_lea.smem [#allocation12], 6
    %667 = sst [smem:[%s666]] 128
    %s668 = scalar_lea.smem [#allocation12], 7
    %669 = sst [smem:[%s668]] 64
    %s670 = scalar_lea.smem [#allocation12], 8
    %671 = sst [smem:[%s670]] 4
    %673 = dma.general %s5, 4096, %s652, %s638, [#allocation11], [#allocation12], %s650, 0
    %s674 = scalar_lea.sflag [#allocation8], 3
    %s676 = sshll.u32 1, 14
    %s677 = sxor.u32 4294967295, %s676
    %s679 = sadd.s32 2, %s643
    %s681 = sshll.u32 7, 26
    %s682 = sxor.u32 4294967295, %s681
    %s683 = sand.u32 0, %s682
    %s684 = sshll.u32 %s679, 26
    %s685 = sor.u32 %s683, %s684
    %s686 = sshll.u32 [#allocation6], 4
    %s687 = int_to_ptr.vmem [resolvable:$true] %s686
    %690 = sst [smem:[#allocation14]] 256
    %s691 = scalar_lea.smem [#allocation14], 1
    %692 = sst [smem:[%s691]] 256
    %s693 = scalar_lea.smem [#allocation14], 2
    %694 = sst [smem:[%s693]] 2
    %s695 = scalar_lea.smem [#allocation14], 3
    %696 = sst [smem:[%s695]] 64
    %s697 = scalar_lea.smem [#allocation14], 4
    %698 = sst [smem:[%s697]] 128
    %s699 = scalar_lea.smem [#allocation14], 5
    %700 = sst [smem:[%s699]] 2
    %s701 = scalar_lea.smem [#allocation14], 6
    %702 = sst [smem:[%s701]] 128
    %s703 = scalar_lea.smem [#allocation14], 7
    %704 = sst [smem:[%s703]] 64
    %s705 = scalar_lea.smem [#allocation14], 8
    %706 = sst [smem:[%s705]] 4
    %708 = dma.general %s7, 4096, %s687, %s674, [#allocation13], [#allocation14], %s685, 0
    %s709 = scalar_lea.sflag [#allocation8], 4
    %p711 = scmp.lt.u32.totalorder 128, 8
    %p712 = pneg %p711
    // Predicated region
    $region100: #{rnn1_forward.1} parent=1 // pred_check
      _
    $region101: #{rnn1_forward.1} parent=1 // pred_check_branch
      %714 = sbr.rel (%p711) target = $region103
    $region102: #{rnn1_forward.1} parent=1 // pred_region
      %s729 = sand.u32 128, 7
      %p730 = scmp.eq.s32.totalorder %s729, 0
      // Predicated region
      $region115: #{rnn1_forward.1} parent=102 // pred_check
        %p731 = pneg %p730
      $region116: #{rnn1_forward.1} parent=102 // pred_check_branch
        %733 = sbr.rel (%p731) target = $region118
      $region117: #{rnn1_forward.1} parent=102 // pred_region
        loop: start=0, step=1, limit=1
        $region119: #{rnn1_forward.1} parent=117 // loop_pre_header
          _
        $region120: #{rnn1_forward.1} parent=117 // loop_header
          %s735 = sphi 0, %s739
          %p736 = scmp.ge.s32.totalorder %s735, 1
          %s740 = sphi %s9, %s9
          %s741 = sphi [#allocation7], [#allocation7]
        $region121: #{rnn1_forward.1} parent=117 // loop_header_branch
          %738 = sbr.rel (%p736) target = $region125
        $region122: #{rnn1_forward.1} parent=117 // loop_body
          %v742 = vld [vmem:[%s740] sm:$0xff]
          %743 = vst [vmem:[%s741] sm:$0xff] %v742
          %v744 = vld [vmem:[%s740 + $0x8] sm:$0xff]
          %745 = vst [vmem:[%s741 + $0x8] sm:$0xff] %v744
          %v746 = vld [vmem:[%s740 + $0x10] sm:$0xff]
          %747 = vst [vmem:[%s741 + $0x10] sm:$0xff] %v746
          %v748 = vld [vmem:[%s740 + $0x18] sm:$0xff]
          %749 = vst [vmem:[%s741 + $0x18] sm:$0xff] %v748
          %v750 = vld [vmem:[%s740 + $0x20] sm:$0xff]
          %751 = vst [vmem:[%s741 + $0x20] sm:$0xff] %v750
          %v752 = vld [vmem:[%s740 + $0x28] sm:$0xff]
          %753 = vst [vmem:[%s741 + $0x28] sm:$0xff] %v752
          %v754 = vld [vmem:[%s740 + $0x30] sm:$0xff]
          %755 = vst [vmem:[%s741 + $0x30] sm:$0xff] %v754
          %v756 = vld [vmem:[%s740 + $0x38] sm:$0xff]
          %757 = vst [vmem:[%s741 + $0x38] sm:$0xff] %v756
          %v758 = vld [vmem:[%s740 + $0x40] sm:$0xff]
          %759 = vst [vmem:[%s741 + $0x40] sm:$0xff] %v758
          %v760 = vld [vmem:[%s740 + $0x48] sm:$0xff]
          %761 = vst [vmem:[%s741 + $0x48] sm:$0xff] %v760
          %v762 = vld [vmem:[%s740 + $0x50] sm:$0xff]
          %763 = vst [vmem:[%s741 + $0x50] sm:$0xff] %v762
          %v764 = vld [vmem:[%s740 + $0x58] sm:$0xff]
          %765 = vst [vmem:[%s741 + $0x58] sm:$0xff] %v764
          %v766 = vld [vmem:[%s740 + $0x60] sm:$0xff]
          %767 = vst [vmem:[%s741 + $0x60] sm:$0xff] %v766
          %v768 = vld [vmem:[%s740 + $0x68] sm:$0xff]
          %769 = vst [vmem:[%s741 + $0x68] sm:$0xff] %v768
          %v770 = vld [vmem:[%s740 + $0x70] sm:$0xff]
          %771 = vst [vmem:[%s741 + $0x70] sm:$0xff] %v770
          %v772 = vld [vmem:[%s740 + $0x78] sm:$0xff]
          %773 = vst [vmem:[%s741 + $0x78] sm:$0xff] %v772
        $region123: #{rnn1_forward.1} parent=117 // loop_footer
          %s739 = sadd.s32 1, %s735
        $region124: #{rnn1_forward.1} parent=117 // loop_footer_branch
          %734 = sbr.rel target = $region120
        $region125: #{rnn1_forward.1} parent=117 // loop_exit
          _
      $region118: #{rnn1_forward.1} parent=102 // pred_fallthru
        _
      %p774 = pneg %p730
      // Predicated region
      $region126: #{rnn1_forward.1} parent=102 // pred_check
        _
      $region127: #{rnn1_forward.1} parent=102 // pred_check_branch
        %776 = sbr.rel (%p730) target = $region129
      $region128: #{rnn1_forward.1} parent=102 // pred_region
        %s777 = sand.u32 128, 7
      $region129: #{rnn1_forward.1} parent=102 // pred_fallthru
        _
    $region103: #{rnn1_forward.1} parent=1 // pred_fallthru
      _
    // Predicated region
    $region104: #{rnn1_forward.1} parent=1 // pred_check
      %p715 = pneg %p711
    $region105: #{rnn1_forward.1} parent=1 // pred_check_branch
      %717 = sbr.rel (%p715) target = $region107
    $region106: #{rnn1_forward.1} parent=1 // pred_region
      %s718 = sshllo.u32 0, 128
      loop: start=0, step=1, limit=1
      $region108: #{rnn1_forward.1} parent=106 // loop_pre_header
        _
      $region109: #{rnn1_forward.1} parent=106 // loop_header
        %s720 = sphi 0, %s724
        %p721 = scmp.ge.s32.totalorder %s720, 1
        %s725 = sphi %s9, %s9
        %s726 = sphi [#allocation7], [#allocation7]
      $region110: #{rnn1_forward.1} parent=106 // loop_header_branch
        %723 = sbr.rel (%p721) target = $region114
      $region111: #{rnn1_forward.1} parent=106 // loop_body
        %v727 = vld [vmem:[%s725] sm:%s718]
        %728 = vst [vmem:[%s726] sm:%s718] %v727
      $region112: #{rnn1_forward.1} parent=106 // loop_footer
        %s724 = sadd.s32 1, %s720
      $region113: #{rnn1_forward.1} parent=106 // loop_footer_branch
        %719 = sbr.rel target = $region109
      $region114: #{rnn1_forward.1} parent=106 // loop_exit
        _
    $region107: #{rnn1_forward.1} parent=1 // pred_fallthru
      _
    // Predicated region
    $region130: #{rnn1_forward.1} parent=1 // pred_check
      _
    $region131: #{rnn1_forward.1} parent=1 // pred_check_branch
      %780 = sbr.rel (0) target = $region133
    $region132: #{rnn1_forward.1} parent=1 // pred_region
      %781 = vsyncadd %s709, 2048
    $region133: #{rnn1_forward.1} parent=1 // pred_fallthru
      _
    %v782 = vld [vmem:[%s0] sm:$0xff]
    %v783 = vld [vmem:[%s0 + $0x8] sm:$0xf]
    %v784 = vld [vmem:[%s0 + $0xc] sm:$0xff]
    %v785 = vld [vmem:[%s0 + $0x14] sm:$0xf]
    %v786 = vld [vmem:[%s0 + $0x18] sm:$0xff]
    %v787 = vld [vmem:[%s0 + $0x20] sm:$0xf]
    %v788 = vld [vmem:[%s0 + $0x24] sm:$0xff]
    %v789 = vld [vmem:[%s0 + $0x2c] sm:$0xf]
    %v790 = vld [vmem:[%s0 + $0x30] sm:$0xff]
    %v791 = vld [vmem:[%s0 + $0x38] sm:$0xf]
    %v792 = vld [vmem:[%s0 + $0x3c] sm:$0xff]
    %v793 = vld [vmem:[%s0 + $0x44] sm:$0xf]
    %v794 = vld [vmem:[%s0 + $0x48] sm:$0xff]
    %v795 = vld [vmem:[%s0 + $0x50] sm:$0xf]
    %v796 = vld [vmem:[%s0 + $0x54] sm:$0xff]
    %v797 = vld [vmem:[%s0 + $0x5c] sm:$0xf]
    %v798 = vld [vmem:[%s1] sm:$0xff]
    %v799 = vld [vmem:[%s1 + $0x8] sm:$0xff]
    %v800 = vld [vmem:[%s1 + $0x10] sm:$0xff]
    %v801 = vld [vmem:[%s1 + $0x18] sm:$0xff]
    %v802 = vld [vmem:[%s1 + $0x20] sm:$0xff]
    %v803 = vld [vmem:[%s1 + $0x28] sm:$0xff]
    %v804 = vld [vmem:[%s1 + $0x30] sm:$0xff]
    %v805 = vld [vmem:[%s1 + $0x38] sm:$0xff]
    %v806 = vld [vmem:[%s1 + $0x40] sm:$0xff]
    %v807 = vld [vmem:[%s1 + $0x48] sm:$0xff]
    %v808 = vld [vmem:[%s1 + $0x50] sm:$0xff]
    %v809 = vld [vmem:[%s1 + $0x58] sm:$0xff]
    %v810 = vld [vmem:[%s1 + $0x60] sm:$0xff]
    %v811 = vld [vmem:[%s1 + $0x68] sm:$0xff]
    %v812 = vld [vmem:[%s1 + $0x70] sm:$0xff]
    %v813 = vld [vmem:[%s1 + $0x78] sm:$0xff]
    %v814 = vld [vmem:[%s1 + $0x80] sm:$0xff]
    %v815 = vld [vmem:[%s1 + $0x88] sm:$0xff]
    %v816 = vld [vmem:[%s1 + $0x90] sm:$0xff]
    %v817 = vld [vmem:[%s1 + $0x98] sm:$0xff]
    %v818 = vld [vmem:[%s1 + $0xa0] sm:$0xff]
    %v819 = vld [vmem:[%s1 + $0xa8] sm:$0xff]
    %v820 = vld [vmem:[%s1 + $0xb0] sm:$0xff]
    %v821 = vld [vmem:[%s1 + $0xb8] sm:$0xff]
    %v822 = vld [vmem:[%s1 + $0xc0] sm:$0xff]
    %v823 = vld [vmem:[%s1 + $0xc8] sm:$0xff]
    %v824 = vld [vmem:[%s1 + $0xd0] sm:$0xff]
    %v825 = vld [vmem:[%s1 + $0xd8] sm:$0xff]
    %v826 = vld [vmem:[%s1 + $0xe0] sm:$0xff]
    %v827 = vld [vmem:[%s1 + $0xe8] sm:$0xff]
    %v828 = vld [vmem:[%s1 + $0xf0] sm:$0xff]
    %v829 = vld [vmem:[%s1 + $0xf8] sm:$0xff]
    %v830 = vld [vmem:[%s1 + $0x100] sm:$0xff]
    %v831 = vld [vmem:[%s1 + $0x108] sm:$0xff]
    %v832 = vld [vmem:[%s1 + $0x110] sm:$0xff]
    %v833 = vld [vmem:[%s1 + $0x118] sm:$0xff]
    %v834 = vld [vmem:[%s1 + $0x120] sm:$0xff]
    %v835 = vld [vmem:[%s1 + $0x128] sm:$0xff]
    %v836 = vld [vmem:[%s1 + $0x130] sm:$0xff]
    %v837 = vld [vmem:[%s1 + $0x138] sm:$0xff]
    %v838 = vld [vmem:[%s1 + $0x140] sm:$0xff]
    %v839 = vld [vmem:[%s1 + $0x148] sm:$0xff]
    %v840 = vld [vmem:[%s1 + $0x150] sm:$0xff]
    %v841 = vld [vmem:[%s1 + $0x158] sm:$0xff]
    %v842 = vld [vmem:[%s1 + $0x160] sm:$0xff]
    %v843 = vld [vmem:[%s1 + $0x168] sm:$0xff]
    %v844 = vld [vmem:[%s1 + $0x170] sm:$0xff]
    %v845 = vld [vmem:[%s1 + $0x178] sm:$0xff]
    %v846 = vld [vmem:[%s3] sm:$0x3]
    %v848 = vlaneseq
    %v849 = vshrl.u32 %v848, 7
    %v850 = vsub.s32 0, %v849
    %v851 = vrot.slane %v846, %v850
    %v852 = vlaneseq
    %v853 = vshrl.u32 %v852, 7
    %v854 = vsub.s32 1, %v853
    %v855 = vrot.slane %v846, %v854
    %v874 = vunpack.c.l.b16 %v782
    %v875 = vunpack.c.h.b16 %v782
    %v876 = vunpack.c.l.b16 %v783
    %v877 = vunpack.c.l.b16 %v784
    %v878 = vunpack.c.h.b16 %v784
    %v879 = vunpack.c.l.b16 %v785
    %v880 = vunpack.c.l.b16 %v786
    %v881 = vunpack.c.h.b16 %v786
    %v882 = vunpack.c.l.b16 %v787
    %v883 = vunpack.c.l.b16 %v788
    %v884 = vunpack.c.h.b16 %v788
    %v885 = vunpack.c.l.b16 %v789
    %v886 = vunpack.c.l.b16 %v790
    %v887 = vunpack.c.h.b16 %v790
    %v888 = vunpack.c.l.b16 %v791
    %v889 = vunpack.c.l.b16 %v792
    %v890 = vunpack.c.h.b16 %v792
    %v891 = vunpack.c.l.b16 %v793
    %v892 = vunpack.c.l.b16 %v794
    %v893 = vunpack.c.h.b16 %v794
    %v894 = vunpack.c.l.b16 %v795
    %v895 = vunpack.c.l.b16 %v796
    %v896 = vunpack.c.h.b16 %v796
    %v897 = vunpack.c.l.b16 %v797
    %v898 = vpack.c.b16 %v877, %v874
    %v899 = vpack.c.b16 %v878, %v875
    %v900 = vpack.c.b16 %v879, %v876
    %v901 = vpack.c.b16 %v883, %v880
    %v902 = vpack.c.b16 %v884, %v881
    %v903 = vpack.c.b16 %v885, %v882
    %v904 = vpack.c.b16 %v889, %v886
    %v905 = vpack.c.b16 %v890, %v887
    %v906 = vpack.c.b16 %v891, %v888
    %v907 = vpack.c.b16 %v895, %v892
    %v908 = vpack.c.b16 %v896, %v893
    %v909 = vpack.c.b16 %v897, %v894
    %v970 = vunpack.c.l.b16 %v798
    %v971 = vunpack.c.h.b16 %v798
    %v972 = vunpack.c.l.b16 %v799
    %v973 = vunpack.c.h.b16 %v799
    %v974 = vunpack.c.l.b16 %v800
    %v975 = vunpack.c.h.b16 %v800
    %v976 = vunpack.c.l.b16 %v801
    %v977 = vunpack.c.h.b16 %v801
    %v978 = vunpack.c.l.b16 %v802
    %v979 = vunpack.c.h.b16 %v802
    %v980 = vunpack.c.l.b16 %v803
    %v981 = vunpack.c.h.b16 %v803
    %v982 = vunpack.c.l.b16 %v804
    %v983 = vunpack.c.h.b16 %v804
    %v984 = vunpack.c.l.b16 %v805
    %v985 = vunpack.c.h.b16 %v805
    %v986 = vunpack.c.l.b16 %v806
    %v987 = vunpack.c.h.b16 %v806
    %v988 = vunpack.c.l.b16 %v807
    %v989 = vunpack.c.h.b16 %v807
    %v990 = vunpack.c.l.b16 %v808
    %v991 = vunpack.c.h.b16 %v808
    %v992 = vunpack.c.l.b16 %v809
    %v993 = vunpack.c.h.b16 %v809
    %v994 = vunpack.c.l.b16 %v810
    %v995 = vunpack.c.h.b16 %v810
    %v996 = vunpack.c.l.b16 %v811
    %v997 = vunpack.c.h.b16 %v811
    %v998 = vunpack.c.l.b16 %v812
    %v999 = vunpack.c.h.b16 %v812
    %v1000 = vunpack.c.l.b16 %v813
    %v1001 = vunpack.c.h.b16 %v813
    %v1002 = vunpack.c.l.b16 %v814
    %v1003 = vunpack.c.h.b16 %v814
    %v1004 = vunpack.c.l.b16 %v815
    %v1005 = vunpack.c.h.b16 %v815
    %v1006 = vunpack.c.l.b16 %v816
    %v1007 = vunpack.c.h.b16 %v816
    %v1008 = vunpack.c.l.b16 %v817
    %v1009 = vunpack.c.h.b16 %v817
    %v1010 = vunpack.c.l.b16 %v818
    %v1011 = vunpack.c.h.b16 %v818
    %v1012 = vunpack.c.l.b16 %v819
    %v1013 = vunpack.c.h.b16 %v819
    %v1014 = vunpack.c.l.b16 %v820
    %v1015 = vunpack.c.h.b16 %v820
    %v1016 = vunpack.c.l.b16 %v821
    %v1017 = vunpack.c.h.b16 %v821
    %v1018 = vunpack.c.l.b16 %v822
    %v1019 = vunpack.c.h.b16 %v822
    %v1020 = vunpack.c.l.b16 %v823
    %v1021 = vunpack.c.h.b16 %v823
    %v1022 = vunpack.c.l.b16 %v824
    %v1023 = vunpack.c.h.b16 %v824
    %v1024 = vunpack.c.l.b16 %v825
    %v1025 = vunpack.c.h.b16 %v825
    %v1026 = vunpack.c.l.b16 %v826
    %v1027 = vunpack.c.h.b16 %v826
    %v1028 = vunpack.c.l.b16 %v827
    %v1029 = vunpack.c.h.b16 %v827
    %v1030 = vunpack.c.l.b16 %v828
    %v1031 = vunpack.c.h.b16 %v828
    %v1032 = vunpack.c.l.b16 %v829
    %v1033 = vunpack.c.h.b16 %v829
    %v1034 = vunpack.c.l.b16 %v830
    %v1035 = vunpack.c.h.b16 %v830
    %v1036 = vunpack.c.l.b16 %v831
    %v1037 = vunpack.c.h.b16 %v831
    %v1038 = vunpack.c.l.b16 %v832
    %v1039 = vunpack.c.h.b16 %v832
    %v1040 = vunpack.c.l.b16 %v833
    %v1041 = vunpack.c.h.b16 %v833
    %v1042 = vunpack.c.l.b16 %v834
    %v1043 = vunpack.c.h.b16 %v834
    %v1044 = vunpack.c.l.b16 %v835
    %v1045 = vunpack.c.h.b16 %v835
    %v1046 = vunpack.c.l.b16 %v836
    %v1047 = vunpack.c.h.b16 %v836
    %v1048 = vunpack.c.l.b16 %v837
    %v1049 = vunpack.c.h.b16 %v837
    %v1050 = vunpack.c.l.b16 %v838
    %v1051 = vunpack.c.h.b16 %v838
    %v1052 = vunpack.c.l.b16 %v839
    %v1053 = vunpack.c.h.b16 %v839
    %v1054 = vunpack.c.l.b16 %v840
    %v1055 = vunpack.c.h.b16 %v840
    %v1056 = vunpack.c.l.b16 %v841
    %v1057 = vunpack.c.h.b16 %v841
    %v1058 = vunpack.c.l.b16 %v842
    %v1059 = vunpack.c.h.b16 %v842
    %v1060 = vunpack.c.l.b16 %v843
    %v1061 = vunpack.c.h.b16 %v843
    %v1062 = vunpack.c.l.b16 %v844
    %v1063 = vunpack.c.h.b16 %v844
    %v1064 = vunpack.c.l.b16 %v845
    %v1065 = vunpack.c.h.b16 %v845
    %v1066 = vpack.c.b16 %v972, %v970
    %v1067 = vpack.c.b16 %v973, %v971
    %v1068 = vpack.c.b16 %v976, %v974
    %v1069 = vpack.c.b16 %v977, %v975
    %v1070 = vpack.c.b16 %v980, %v978
    %v1071 = vpack.c.b16 %v981, %v979
    %v1072 = vpack.c.b16 %v984, %v982
    %v1073 = vpack.c.b16 %v985, %v983
    %v1074 = vpack.c.b16 %v988, %v986
    %v1075 = vpack.c.b16 %v989, %v987
    %v1076 = vpack.c.b16 %v992, %v990
    %v1077 = vpack.c.b16 %v993, %v991
    %v1078 = vpack.c.b16 %v996, %v994
    %v1079 = vpack.c.b16 %v997, %v995
    %v1080 = vpack.c.b16 %v1000, %v998
    %v1081 = vpack.c.b16 %v1001, %v999
    %v1082 = vpack.c.b16 %v1004, %v1002
    %v1083 = vpack.c.b16 %v1005, %v1003
    %v1084 = vpack.c.b16 %v1008, %v1006
    %v1085 = vpack.c.b16 %v1009, %v1007
    %v1086 = vpack.c.b16 %v1012, %v1010
    %v1087 = vpack.c.b16 %v1013, %v1011
    %v1088 = vpack.c.b16 %v1016, %v1014
    %v1089 = vpack.c.b16 %v1017, %v1015
    %v1090 = vpack.c.b16 %v1020, %v1018
    %v1091 = vpack.c.b16 %v1021, %v1019
    %v1092 = vpack.c.b16 %v1024, %v1022
    %v1093 = vpack.c.b16 %v1025, %v1023
    %v1094 = vpack.c.b16 %v1028, %v1026
    %v1095 = vpack.c.b16 %v1029, %v1027
    %v1096 = vpack.c.b16 %v1032, %v1030
    %v1097 = vpack.c.b16 %v1033, %v1031
    %v1098 = vpack.c.b16 %v1036, %v1034
    %v1099 = vpack.c.b16 %v1037, %v1035
    %v1100 = vpack.c.b16 %v1040, %v1038
    %v1101 = vpack.c.b16 %v1041, %v1039
    %v1102 = vpack.c.b16 %v1044, %v1042
    %v1103 = vpack.c.b16 %v1045, %v1043
    %v1104 = vpack.c.b16 %v1048, %v1046
    %v1105 = vpack.c.b16 %v1049, %v1047
    %v1106 = vpack.c.b16 %v1052, %v1050
    %v1107 = vpack.c.b16 %v1053, %v1051
    %v1108 = vpack.c.b16 %v1056, %v1054
    %v1109 = vpack.c.b16 %v1057, %v1055
    %v1110 = vpack.c.b16 %v1060, %v1058
    %v1111 = vpack.c.b16 %v1061, %v1059
    %v1112 = vpack.c.b16 %v1064, %v1062
    %v1113 = vpack.c.b16 %v1065, %v1063
    %1162 = vmatprep.subr.bf16.mxu0 %v1067
    %1163 = vmatpush1.bf16.msra.mxu0 %v1066
    %1164 = vmatprep.subr.bf16.mxu0 %v1069
    %1165 = vmatpush1.bf16.msra.mxu0 %v1068
    %1166 = vmatprep.subr.bf16.mxu0 %v1071
    %1167 = vmatpush1.bf16.msra.mxu0 %v1070
    %1168 = vmatprep.subr.bf16.mxu0 %v1073
    %1169 = vmatpush1.bf16.msra.mxu0 %v1072
    %1170 = vmatprep.subr.bf16.mxu0 %v1075
    %1171 = vmatpush1.bf16.msra.mxu0 %v1074
    %1172 = vmatprep.subr.bf16.mxu0 %v1077
    %1173 = vmatpush1.bf16.msra.mxu0 %v1076
    %1174 = vmatprep.subr.bf16.mxu0 %v1079
    %1175 = vmatpush1.bf16.msra.mxu0 %v1078
    %1176 = vmatprep.subr.bf16.mxu0 %v1081
    %1177 = vmatpush1.bf16.msra.mxu0 %v1080
    %1178 = vmatprep.subr.bf16.mxu0 %v1083
    %1179 = vmatpush1.bf16.msra.mxu0 %v1082
    %1180 = vmatprep.subr.bf16.mxu0 %v1085
    %1181 = vmatpush1.bf16.msra.mxu0 %v1084
    %1182 = vmatprep.subr.bf16.mxu0 %v1087
    %1183 = vmatpush1.bf16.msra.mxu0 %v1086
    %1184 = vmatprep.subr.bf16.mxu0 %v1089
    %1185 = vmatpush1.bf16.msra.mxu0 %v1088
    %1186 = vmatprep.subr.bf16.mxu0 %v1091
    %1187 = vmatpush1.bf16.msra.mxu0 %v1090
    %1188 = vmatprep.subr.bf16.mxu0 %v1093
    %1189 = vmatpush1.bf16.msra.mxu0 %v1092
    %1190 = vmatprep.subr.bf16.mxu0 %v1095
    %1191 = vmatpush1.bf16.msra.mxu0 %v1094
    %1192 = vmatprep.subr.bf16.mxu0 %v1097
    %1193 = vmatpush1.bf16.msra.mxu0 %v1096
    %1194 = vmatprep.mubr.bf16.mxu0 %v899
    %1195 = vmatmul.mubr.bf16.gmra.mrb[0].mxu0 %v898
    %v1196 = vpop.f32.mrb[0].mxu0
    %v1197 = vadd.f32 %v851, %v1196
    %v1198 = vpop.f32.mrb[0].mxu0
    %v1199 = vadd.f32 %v855, %v1198
    %v1200 = vpop.f32.mrb[0].mxu0
    %v1201 = vadd.f32 %v851, %v1200
    %v1202 = vpop.f32.mrb[0].mxu0
    %v1203 = vadd.f32 %v855, %v1202
    %1204 = vmatprep.mubr.bf16.mxu0 %v902
    %1205 = vmatmul.mubr.bf16.gmra.mrb[0].mxu0 %v901
    %v1206 = vpop.f32.mrb[0].mxu0
    %v1207 = vadd.f32 %v851, %v1206
    %v1208 = vpop.f32.mrb[0].mxu0
    %v1209 = vadd.f32 %v855, %v1208
    %v1210 = vpop.f32.mrb[0].mxu0
    %v1211 = vadd.f32 %v851, %v1210
    %v1212 = vpop.f32.mrb[0].mxu0
    %v1213 = vadd.f32 %v855, %v1212
    %1214 = vmatprep.mubr.bf16.mxu0 %v905
    %1215 = vmatmul.mubr.bf16.gmra.mrb[0].mxu0 %v904
    %v1216 = vpop.f32.mrb[0].mxu0
    %v1217 = vadd.f32 %v851, %v1216
    %v1218 = vpop.f32.mrb[0].mxu0
    %v1219 = vadd.f32 %v855, %v1218
    %v1220 = vpop.f32.mrb[0].mxu0
    %v1221 = vadd.f32 %v851, %v1220
    %v1222 = vpop.f32.mrb[0].mxu0
    %v1223 = vadd.f32 %v855, %v1222
    %1224 = vmatprep.mubr.bf16.mxu0 %v908
    %1225 = vmatmul.mubr.bf16.gmra.mrb[0].mxu0 %v907
    %v1226 = vpop.f32.mrb[0].mxu0
    %v1227 = vadd.f32 %v851, %v1226
    %v1228 = vpop.f32.mrb[0].mxu0
    %v1229 = vadd.f32 %v855, %v1228
    %v1230 = vpop.f32.mrb[0].mxu0
    %v1231 = vadd.f32 %v851, %v1230
    %v1232 = vpop.f32.mrb[0].mxu0
    %v1233 = vadd.f32 %v855, %v1232
    %1234 = vdwg.mxu0
    %1235 = vmatprep.subr.bf16.mxu0 %v1099
    %1236 = vmatpush1.bf16.msra.mxu0 %v1098
    %1237 = vmatprep.subr.bf16.mxu0 %v1101
    %1238 = vmatpush1.bf16.msra.mxu0 %v1100
    %1239 = vmatprep.subr.bf16.mxu0 %v1103
    %1240 = vmatpush1.bf16.msra.mxu0 %v1102
    %1241 = vmatprep.subr.bf16.mxu0 %v1105
    %1242 = vmatpush1.bf16.msra.mxu0 %v1104
    %1243 = vmatprep.subr.bf16.mxu0 %v1107
    %1244 = vmatpush1.bf16.msra.mxu0 %v1106
    %1245 = vmatprep.subr.bf16.mxu0 %v1109
    %1246 = vmatpush1.bf16.msra.mxu0 %v1108
    %1247 = vmatprep.subr.bf16.mxu0 %v1111
    %1248 = vmatpush1.bf16.msra.mxu0 %v1110
    %1249 = vmatprep.subr.bf16.mxu0 %v1113
    %1250 = vmatpush1.bf16.msra.mxu0 %v1112
    %1251 = vmatprep.subr.bf16.mxu0 0
    %1252 = vmatpush1.bf16.msra.mxu0 0
    %1253 = vmatprep.subr.bf16.mxu0 0
    %1254 = vmatpush1.bf16.msra.mxu0 0
    %1255 = vmatprep.subr.bf16.mxu0 0
    %1256 = vmatpush1.bf16.msra.mxu0 0
    %1257 = vmatprep.subr.bf16.mxu0 0
    %1258 = vmatpush1.bf16.msra.mxu0 0
    %1259 = vmatprep.subr.bf16.mxu0 0
    %1260 = vmatpush1.bf16.msra.mxu0 0
    %1261 = vmatprep.subr.bf16.mxu0 0
    %1262 = vmatpush1.bf16.msra.mxu0 0
    %1263 = vmatprep.subr.bf16.mxu0 0
    %1264 = vmatpush1.bf16.msra.mxu0 0
    %1265 = vmatprep.subr.bf16.mxu0 0
    %1266 = vmatpush1.bf16.msra.mxu0 0
    %1267 = vmatprep.mubr.bf16.mxu0 0
    %1268 = vmatmul.mubr.bf16.gmra.mrb[0].mxu0 %v900
    %v1269 = vpop.f32.mrb[0].mxu0
    %v1270 = vadd.f32 %v1197, %v1269
    %v1271 = vpop.f32.mrb[0].mxu0
    %v1272 = vadd.f32 %v1199, %v1271
    %v1273 = vpop.f32.mrb[0].mxu0
    %v1274 = vadd.f32 %v1201, %v1273
    %v1275 = vpop.f32.mrb[0].mxu0
    %v1276 = vadd.f32 %v1203, %v1275
    %1277 = vmatprep.mubr.bf16.mxu0 0
    %1278 = vmatmul.mubr.bf16.gmra.mrb[0].mxu0 %v903
    %v1279 = vpop.f32.mrb[0].mxu0
    %v1280 = vadd.f32 %v1207, %v1279
    %v1281 = vpop.f32.mrb[0].mxu0
    %v1282 = vadd.f32 %v1209, %v1281
    %v1283 = vpop.f32.mrb[0].mxu0
    %v1284 = vadd.f32 %v1211, %v1283
    %v1285 = vpop.f32.mrb[0].mxu0
    %v1286 = vadd.f32 %v1213, %v1285
    %1287 = vmatprep.mubr.bf16.mxu0 0
    %1288 = vmatmul.mubr.bf16.gmra.mrb[0].mxu0 %v906
    %v1289 = vpop.f32.mrb[0].mxu0
    %v1290 = vadd.f32 %v1217, %v1289
    %v1291 = vpop.f32.mrb[0].mxu0
    %v1292 = vadd.f32 %v1219, %v1291
    %v1293 = vpop.f32.mrb[0].mxu0
    %v1294 = vadd.f32 %v1221, %v1293
    %v1295 = vpop.f32.mrb[0].mxu0
    %v1296 = vadd.f32 %v1223, %v1295
    %1297 = vmatprep.mubr.bf16.mxu0 0
    %1298 = vmatmul.mubr.bf16.gmra.mrb[0].mxu0 %v909
    %v1299 = vpop.f32.mrb[0].mxu0
    %v1300 = vadd.f32 %v1227, %v1299
    %v1301 = vpop.f32.mrb[0].mxu0
    %v1302 = vadd.f32 %v1229, %v1301
    %v1303 = vpop.f32.mrb[0].mxu0
    %v1304 = vadd.f32 %v1231, %v1303
    %v1305 = vpop.f32.mrb[0].mxu0
    %v1306 = vadd.f32 %v1233, %v1305
    %1307 = vdwg.mxu0
    %1308 = vst [vmem:[#allocation2] sm:$0xff] %v1270
    %1309 = vst [vmem:[#allocation2 + $0x8] sm:$0xff] %v1272
    %1310 = vst [vmem:[#allocation2 + $0x10] sm:$0xff] %v1274
    %1311 = vst [vmem:[#allocation2 + $0x18] sm:$0xff] %v1276
    %1312 = vst [vmem:[#allocation2 + $0x20] sm:$0xff] %v1280
    %1313 = vst [vmem:[#allocation2 + $0x28] sm:$0xff] %v1282
    %1314 = vst [vmem:[#allocation2 + $0x30] sm:$0xff] %v1284
    %1315 = vst [vmem:[#allocation2 + $0x38] sm:$0xff] %v1286
    %1316 = vst [vmem:[#allocation2 + $0x40] sm:$0xff] %v1290
    %1317 = vst [vmem:[#allocation2 + $0x48] sm:$0xff] %v1292
    %1318 = vst [vmem:[#allocation2 + $0x50] sm:$0xff] %v1294
    %1319 = vst [vmem:[#allocation2 + $0x58] sm:$0xff] %v1296
    %1320 = vst [vmem:[#allocation2 + $0x60] sm:$0xff] %v1300
    %1321 = vst [vmem:[#allocation2 + $0x68] sm:$0xff] %v1302
    %1322 = vst [vmem:[#allocation2 + $0x70] sm:$0xff] %v1304
    %1323 = vst [vmem:[#allocation2 + $0x78] sm:$0xff] %v1306
    %v1324 = vld [vmem:[%s6] sm:$0x3]
    %v1326 = vlaneseq
    %v1327 = vshrl.u32 %v1326, 7
    %v1328 = vsub.s32 0, %v1327
    %v1329 = vrot.slane %v1324, %v1328
    %v1330 = vlaneseq
    %v1331 = vshrl.u32 %v1330, 7
    %v1332 = vsub.s32 1, %v1331
    %v1333 = vrot.slane %v1324, %v1332
    %v1336 = vld [vmem:[#allocation2] sm:$0xff]
    %v1337 = vld [vmem:[#allocation2 + $0x8] sm:$0xff]
    %v1338 = vtanh.pop %v1336
    %v1339 = vtanh.pop %v1337
    %s1340 = smul.u32 4, 32
    %s1341 = smul.u32 %s1340, 2
    %s1342 = sshll.u32 %s1341, 4
    %1343 = dma.done %s333, %s1342
    %v1344 = vpack.c.bf16 %v1338, %v1338
    %v1345 = vpack.c.bf16 %v1339, %v1339
    %v1346 = vld [vmem:[#allocation4] sm:$0xff]
    %v1347 = vld [vmem:[#allocation4 + $0x8] sm:$0xff]
    %v1348 = vld [vmem:[#allocation4 + $0x10] sm:$0xff]
    %v1349 = vld [vmem:[#allocation4 + $0x18] sm:$0xff]
    %v1350 = vld [vmem:[#allocation4 + $0x20] sm:$0xff]
    %v1351 = vld [vmem:[#allocation4 + $0x28] sm:$0xff]
    %v1352 = vld [vmem:[#allocation4 + $0x30] sm:$0xff]
    %v1353 = vld [vmem:[#allocation4 + $0x38] sm:$0xff]
    %v1354 = vld [vmem:[#allocation4 + $0x40] sm:$0xff]
    %v1355 = vld [vmem:[#allocation4 + $0x48] sm:$0xff]
    %v1356 = vld [vmem:[#allocation4 + $0x50] sm:$0xff]
    %v1357 = vld [vmem:[#allocation4 + $0x58] sm:$0xff]
    %v1358 = vld [vmem:[#allocation4 + $0x60] sm:$0xff]
    %v1359 = vld [vmem:[#allocation4 + $0x68] sm:$0xff]
    %v1360 = vld [vmem:[#allocation4 + $0x70] sm:$0xff]
    %v1361 = vld [vmem:[#allocation4 + $0x78] sm:$0xff]
    %v1362 = vld [vmem:[#allocation4 + $0x80] sm:$0xff]
    %v1363 = vld [vmem:[#allocation4 + $0x88] sm:$0xff]
    %v1364 = vld [vmem:[#allocation4 + $0x90] sm:$0xff]
    %v1365 = vld [vmem:[#allocation4 + $0x98] sm:$0xff]
    %v1366 = vld [vmem:[#allocation4 + $0xa0] sm:$0xff]
    %v1367 = vld [vmem:[#allocation4 + $0xa8] sm:$0xff]
    %v1368 = vld [vmem:[#allocation4 + $0xb0] sm:$0xff]
    %v1369 = vld [vmem:[#allocation4 + $0xb8] sm:$0xff]
    %v1370 = vld [vmem:[#allocation4 + $0xc0] sm:$0xff]
    %v1371 = vld [vmem:[#allocation4 + $0xc8] sm:$0xff]
    %v1372 = vld [vmem:[#allocation4 + $0xd0] sm:$0xff]
    %v1373 = vld [vmem:[#allocation4 + $0xd8] sm:$0xff]
    %v1374 = vld [vmem:[#allocation4 + $0xe0] sm:$0xff]
    %v1375 = vld [vmem:[#allocation4 + $0xe8] sm:$0xff]
    %v1376 = vld [vmem:[#allocation4 + $0xf0] sm:$0xff]
    %v1377 = vld [vmem:[#allocation4 + $0xf8] sm:$0xff]
    %1378 = vmatprep.subr.bf16.mxu0 %v1347
    %1379 = vmatpush1.bf16.msra.mxu0 %v1346
    %1380 = vmatprep.subr.bf16.mxu0 %v1349
    %1381 = vmatpush1.bf16.msra.mxu0 %v1348
    %1382 = vmatprep.subr.bf16.mxu0 %v1351
    %1383 = vmatpush1.bf16.msra.mxu0 %v1350
    %1384 = vmatprep.subr.bf16.mxu0 %v1353
    %1385 = vmatpush1.bf16.msra.mxu0 %v1352
    %1386 = vmatprep.subr.bf16.mxu0 %v1355
    %1387 = vmatpush1.bf16.msra.mxu0 %v1354
    %1388 = vmatprep.subr.bf16.mxu0 %v1357
    %1389 = vmatpush1.bf16.msra.mxu0 %v1356
    %1390 = vmatprep.subr.bf16.mxu0 %v1359
    %1391 = vmatpush1.bf16.msra.mxu0 %v1358
    %1392 = vmatprep.subr.bf16.mxu0 %v1361
    %1393 = vmatpush1.bf16.msra.mxu0 %v1360
    %1394 = vmatprep.subr.bf16.mxu0 %v1363
    %1395 = vmatpush1.bf16.msra.mxu0 %v1362
    %1396 = vmatprep.subr.bf16.mxu0 %v1365
    %1397 = vmatpush1.bf16.msra.mxu0 %v1364
    %1398 = vmatprep.subr.bf16.mxu0 %v1367
    %1399 = vmatpush1.bf16.msra.mxu0 %v1366
    %1400 = vmatprep.subr.bf16.mxu0 %v1369
    %1401 = vmatpush1.bf16.msra.mxu0 %v1368
    %1402 = vmatprep.subr.bf16.mxu0 %v1371
    %1403 = vmatpush1.bf16.msra.mxu0 %v1370
    %1404 = vmatprep.subr.bf16.mxu0 %v1373
    %1405 = vmatpush1.bf16.msra.mxu0 %v1372
    %1406 = vmatprep.subr.bf16.mxu0 %v1375
    %1407 = vmatpush1.bf16.msra.mxu0 %v1374
    %1408 = vmatprep.subr.bf16.mxu0 %v1377
    %1409 = vmatpush1.bf16.msra.mxu0 %v1376
    %1410 = vmatprep.mubr.bf16.mxu0 %v1345
    %1411 = vmatmul.mubr.bf16.gmra.mrb[0].mxu0 %v1344
    %v1412 = vpop.f32.mrb[0].mxu0
    %v1413 = vadd.f32 %v1329, %v1412
    %v1414 = vpop.f32.mrb[0].mxu0
    %v1415 = vadd.f32 %v1333, %v1414
    %v1416 = vpop.f32.mrb[0].mxu0
    %v1417 = vpop.f32.mrb[0].mxu0
    %1418 = vdwg.mxu0
    %v1419 = vtanh.pop %v1413
    %v1420 = vtanh.pop %v1415
    %s1421 = sshll.u32 %s1341, 4
    %1422 = dma.done [#allocation8], %s1421
    %s1423 = sshll.u32 %s1341, 4
    %1424 = dma.done %s638, %s1423
    %v1425 = vpack.c.bf16 %v1419, %v1419
    %v1426 = vpack.c.bf16 %v1420, %v1420
    %v1427 = vld [vmem:[#allocation5] sm:$0xff]
    %v1428 = vld [vmem:[#allocation5 + $0x8] sm:$0xff]
    %v1429 = vld [vmem:[#allocation5 + $0x10] sm:$0xff]
    %v1430 = vld [vmem:[#allocation5 + $0x18] sm:$0xff]
    %v1431 = vld [vmem:[#allocation5 + $0x20] sm:$0xff]
    %v1432 = vld [vmem:[#allocation5 + $0x28] sm:$0xff]
    %v1433 = vld [vmem:[#allocation5 + $0x30] sm:$0xff]
    %v1434 = vld [vmem:[#allocation5 + $0x38] sm:$0xff]
    %v1435 = vld [vmem:[#allocation5 + $0x40] sm:$0xff]
    %v1436 = vld [vmem:[#allocation5 + $0x48] sm:$0xff]
    %v1437 = vld [vmem:[#allocation5 + $0x50] sm:$0xff]
    %v1438 = vld [vmem:[#allocation5 + $0x58] sm:$0xff]
    %v1439 = vld [vmem:[#allocation5 + $0x60] sm:$0xff]
    %v1440 = vld [vmem:[#allocation5 + $0x68] sm:$0xff]
    %v1441 = vld [vmem:[#allocation5 + $0x70] sm:$0xff]
    %v1442 = vld [vmem:[#allocation5 + $0x78] sm:$0xff]
    %v1443 = vld [vmem:[#allocation5 + $0x80] sm:$0xff]
    %v1444 = vld [vmem:[#allocation5 + $0x88] sm:$0xff]
    %v1445 = vld [vmem:[#allocation5 + $0x90] sm:$0xff]
    %v1446 = vld [vmem:[#allocation5 + $0x98] sm:$0xff]
    %v1447 = vld [vmem:[#allocation5 + $0xa0] sm:$0xff]
    %v1448 = vld [vmem:[#allocation5 + $0xa8] sm:$0xff]
    %v1449 = vld [vmem:[#allocation5 + $0xb0] sm:$0xff]
    %v1450 = vld [vmem:[#allocation5 + $0xb8] sm:$0xff]
    %v1451 = vld [vmem:[#allocation5 + $0xc0] sm:$0xff]
    %v1452 = vld [vmem:[#allocation5 + $0xc8] sm:$0xff]
    %v1453 = vld [vmem:[#allocation5 + $0xd0] sm:$0xff]
    %v1454 = vld [vmem:[#allocation5 + $0xd8] sm:$0xff]
    %v1455 = vld [vmem:[#allocation5 + $0xe0] sm:$0xff]
    %v1456 = vld [vmem:[#allocation5 + $0xe8] sm:$0xff]
    %v1457 = vld [vmem:[#allocation5 + $0xf0] sm:$0xff]
    %v1458 = vld [vmem:[#allocation5 + $0xf8] sm:$0xff]
    %1459 = vmatprep.subr.bf16.mxu0 %v1428
    %1460 = vmatpush1.bf16.msra.mxu0 %v1427
    %1461 = vmatprep.subr.bf16.mxu0 %v1430
    %1462 = vmatpush1.bf16.msra.mxu0 %v1429
    %1463 = vmatprep.subr.bf16.mxu0 %v1432
    %1464 = vmatpush1.bf16.msra.mxu0 %v1431
    %1465 = vmatprep.subr.bf16.mxu0 %v1434
    %1466 = vmatpush1.bf16.msra.mxu0 %v1433
    %1467 = vmatprep.subr.bf16.mxu0 %v1436
    %1468 = vmatpush1.bf16.msra.mxu0 %v1435
    %1469 = vmatprep.subr.bf16.mxu0 %v1438
    %1470 = vmatpush1.bf16.msra.mxu0 %v1437
    %1471 = vmatprep.subr.bf16.mxu0 %v1440
    %1472 = vmatpush1.bf16.msra.mxu0 %v1439
    %1473 = vmatprep.subr.bf16.mxu0 %v1442
    %1474 = vmatpush1.bf16.msra.mxu0 %v1441
    %1475 = vmatprep.subr.bf16.mxu0 %v1444
    %1476 = vmatpush1.bf16.msra.mxu0 %v1443
    %1477 = vmatprep.subr.bf16.mxu0 %v1446
    %1478 = vmatpush1.bf16.msra.mxu0 %v1445
    %1479 = vmatprep.subr.bf16.mxu0 %v1448
    %1480 = vmatpush1.bf16.msra.mxu0 %v1447
    %1481 = vmatprep.subr.bf16.mxu0 %v1450
    %1482 = vmatpush1.bf16.msra.mxu0 %v1449
    %1483 = vmatprep.subr.bf16.mxu0 %v1452
    %1484 = vmatpush1.bf16.msra.mxu0 %v1451
    %1485 = vmatprep.subr.bf16.mxu0 %v1454
    %1486 = vmatpush1.bf16.msra.mxu0 %v1453
    %1487 = vmatprep.subr.bf16.mxu0 %v1456
    %1488 = vmatpush1.bf16.msra.mxu0 %v1455
    %1489 = vmatprep.subr.bf16.mxu0 %v1458
    %1490 = vmatpush1.bf16.msra.mxu0 %v1457
    %1491 = vmatprep.mubr.bf16.mxu0 %v1426
    %1492 = vmatmul.mubr.bf16.gmra.mrb[0].mxu0 %v1425
    %v1493 = vpop.f32.mrb[0].mxu0
    %v1494 = vadd.f32 0.0, %v1493
    %v1495 = vpop.f32.mrb[0].mxu0
    %v1496 = vadd.f32 0.0, %v1495
    %v1497 = vpop.f32.mrb[0].mxu0
    %v1498 = vpop.f32.mrb[0].mxu0
    %1499 = vdwg.mxu0
    %v1500 = vld [vmem:[#allocation3] sm:$0xff]
    %v1501 = vld [vmem:[#allocation3 + $0x8] sm:$0xff]
    %v1502 = vld [vmem:[#allocation3 + $0x10] sm:$0xff]
    %v1503 = vld [vmem:[#allocation3 + $0x18] sm:$0xff]
    %v1504 = vld [vmem:[#allocation3 + $0x20] sm:$0xff]
    %v1505 = vld [vmem:[#allocation3 + $0x28] sm:$0xff]
    %v1506 = vld [vmem:[#allocation3 + $0x30] sm:$0xff]
    %v1507 = vld [vmem:[#allocation3 + $0x38] sm:$0xff]
    %v1508 = vld [vmem:[#allocation3 + $0x40] sm:$0xff]
    %v1509 = vld [vmem:[#allocation3 + $0x48] sm:$0xff]
    %v1510 = vld [vmem:[#allocation3 + $0x50] sm:$0xff]
    %v1511 = vld [vmem:[#allocation3 + $0x58] sm:$0xff]
    %v1512 = vld [vmem:[#allocation3 + $0x60] sm:$0xff]
    %v1513 = vld [vmem:[#allocation3 + $0x68] sm:$0xff]
    %v1514 = vld [vmem:[#allocation3 + $0x70] sm:$0xff]
    %v1515 = vld [vmem:[#allocation3 + $0x78] sm:$0xff]
    %v1516 = vld [vmem:[#allocation3 + $0x80] sm:$0xff]
    %v1517 = vld [vmem:[#allocation3 + $0x88] sm:$0xff]
    %v1518 = vld [vmem:[#allocation3 + $0x90] sm:$0xff]
    %v1519 = vld [vmem:[#allocation3 + $0x98] sm:$0xff]
    %v1520 = vld [vmem:[#allocation3 + $0xa0] sm:$0xff]
    %v1521 = vld [vmem:[#allocation3 + $0xa8] sm:$0xff]
    %v1522 = vld [vmem:[#allocation3 + $0xb0] sm:$0xff]
    %v1523 = vld [vmem:[#allocation3 + $0xb8] sm:$0xff]
    %v1524 = vld [vmem:[#allocation3 + $0xc0] sm:$0xff]
    %v1525 = vld [vmem:[#allocation3 + $0xc8] sm:$0xff]
    %v1526 = vld [vmem:[#allocation3 + $0xd0] sm:$0xff]
    %v1527 = vld [vmem:[#allocation3 + $0xd8] sm:$0xff]
    %v1528 = vld [vmem:[#allocation3 + $0xe0] sm:$0xff]
    %v1529 = vld [vmem:[#allocation3 + $0xe8] sm:$0xff]
    %v1530 = vld [vmem:[#allocation3 + $0xf0] sm:$0xff]
    %v1531 = vld [vmem:[#allocation3 + $0xf8] sm:$0xff]
    %1532 = vmatprep.subr.bf16.mxu0 %v1501
    %1533 = vmatpush1.bf16.msra.mxu0 %v1500
    %1534 = vmatprep.subr.bf16.mxu0 %v1503
    %1535 = vmatpush1.bf16.msra.mxu0 %v1502
    %1536 = vmatprep.subr.bf16.mxu0 %v1505
    %1537 = vmatpush1.bf16.msra.mxu0 %v1504
    %1538 = vmatprep.subr.bf16.mxu0 %v1507
    %1539 = vmatpush1.bf16.msra.mxu0 %v1506
    %1540 = vmatprep.subr.bf16.mxu0 %v1509
    %1541 = vmatpush1.bf16.msra.mxu0 %v1508
    %1542 = vmatprep.subr.bf16.mxu0 %v1511
    %1543 = vmatpush1.bf16.msra.mxu0 %v1510
    %1544 = vmatprep.subr.bf16.mxu0 %v1513
    %1545 = vmatpush1.bf16.msra.mxu0 %v1512
    %1546 = vmatprep.subr.bf16.mxu0 %v1515
    %1547 = vmatpush1.bf16.msra.mxu0 %v1514
    %1548 = vmatprep.subr.bf16.mxu0 %v1517
    %1549 = vmatpush1.bf16.msra.mxu0 %v1516
    %1550 = vmatprep.subr.bf16.mxu0 %v1519
    %1551 = vmatpush1.bf16.msra.mxu0 %v1518
    %1552 = vmatprep.subr.bf16.mxu0 %v1521
    %1553 = vmatpush1.bf16.msra.mxu0 %v1520
    %1554 = vmatprep.subr.bf16.mxu0 %v1523
    %1555 = vmatpush1.bf16.msra.mxu0 %v1522
    %1556 = vmatprep.subr.bf16.mxu0 %v1525
    %1557 = vmatpush1.bf16.msra.mxu0 %v1524
    %1558 = vmatprep.subr.bf16.mxu0 %v1527
    %1559 = vmatpush1.bf16.msra.mxu0 %v1526
    %1560 = vmatprep.subr.bf16.mxu0 %v1529
    %1561 = vmatpush1.bf16.msra.mxu0 %v1528
    %1562 = vmatprep.subr.bf16.mxu0 %v1531
    %1563 = vmatpush1.bf16.msra.mxu0 %v1530
    %1564 = vmatprep.mubr.bf16.mxu0 %v1345
    %1565 = vmatmul.mubr.bf16.gmra.mrb[0].mxu0 %v1344
    %v1566 = vpop.f32.mrb[0].mxu0
    %v1567 = vadd.f32 0.0, %v1566
    %v1568 = vpop.f32.mrb[0].mxu0
    %v1569 = vadd.f32 0.0, %v1568
    %v1570 = vpop.f32.mrb[0].mxu0
    %v1571 = vpop.f32.mrb[0].mxu0
    %1572 = vdwg.mxu0
    %v1573 = vld [vmem:[#allocation2 + $0x10] sm:$0xff]
    %v1574 = vld [vmem:[#allocation2 + $0x18] sm:$0xff]
    %v1575 = vadd.f32 %v1573, %v1567
    %v1576 = vadd.f32 %v1574, %v1569
    %v1577 = vtanh.pop %v1575
    %v1578 = vtanh.pop %v1576
    %v1579 = vpack.c.bf16 %v1577, %v1577
    %v1580 = vpack.c.bf16 %v1578, %v1578
    %v1581 = vld [vmem:[#allocation4] sm:$0xff]
    %v1582 = vld [vmem:[#allocation4 + $0x8] sm:$0xff]
    %v1583 = vld [vmem:[#allocation4 + $0x10] sm:$0xff]
    %v1584 = vld [vmem:[#allocation4 + $0x18] sm:$0xff]
    %v1585 = vld [vmem:[#allocation4 + $0x20] sm:$0xff]
    %v1586 = vld [vmem:[#allocation4 + $0x28] sm:$0xff]
    %v1587 = vld [vmem:[#allocation4 + $0x30] sm:$0xff]
    %v1588 = vld [vmem:[#allocation4 + $0x38] sm:$0xff]
    %v1589 = vld [vmem:[#allocation4 + $0x40] sm:$0xff]
    %v1590 = vld [vmem:[#allocation4 + $0x48] sm:$0xff]
    %v1591 = vld [vmem:[#allocation4 + $0x50] sm:$0xff]
    %v1592 = vld [vmem:[#allocation4 + $0x58] sm:$0xff]
    %v1593 = vld [vmem:[#allocation4 + $0x60] sm:$0xff]
    %v1594 = vld [vmem:[#allocation4 + $0x68] sm:$0xff]
    %v1595 = vld [vmem:[#allocation4 + $0x70] sm:$0xff]
    %v1596 = vld [vmem:[#allocation4 + $0x78] sm:$0xff]
    %v1597 = vld [vmem:[#allocation4 + $0x80] sm:$0xff]
    %v1598 = vld [vmem:[#allocation4 + $0x88] sm:$0xff]
    %v1599 = vld [vmem:[#allocation4 + $0x90] sm:$0xff]
    %v1600 = vld [vmem:[#allocation4 + $0x98] sm:$0xff]
    %v1601 = vld [vmem:[#allocation4 + $0xa0] sm:$0xff]
    %v1602 = vld [vmem:[#allocation4 + $0xa8] sm:$0xff]
    %v1603 = vld [vmem:[#allocation4 + $0xb0] sm:$0xff]
    %v1604 = vld [vmem:[#allocation4 + $0xb8] sm:$0xff]
    %v1605 = vld [vmem:[#allocation4 + $0xc0] sm:$0xff]
    %v1606 = vld [vmem:[#allocation4 + $0xc8] sm:$0xff]
    %v1607 = vld [vmem:[#allocation4 + $0xd0] sm:$0xff]
    %v1608 = vld [vmem:[#allocation4 + $0xd8] sm:$0xff]
    %v1609 = vld [vmem:[#allocation4 + $0xe0] sm:$0xff]
    %v1610 = vld [vmem:[#allocation4 + $0xe8] sm:$0xff]
    %v1611 = vld [vmem:[#allocation4 + $0xf0] sm:$0xff]
    %v1612 = vld [vmem:[#allocation4 + $0xf8] sm:$0xff]
    %1613 = vmatprep.subr.bf16.mxu0 %v1582
    %1614 = vmatpush1.bf16.msra.mxu0 %v1581
    %1615 = vmatprep.subr.bf16.mxu0 %v1584
    %1616 = vmatpush1.bf16.msra.mxu0 %v1583
    %1617 = vmatprep.subr.bf16.mxu0 %v1586
    %1618 = vmatpush1.bf16.msra.mxu0 %v1585
    %1619 = vmatprep.subr.bf16.mxu0 %v1588
    %1620 = vmatpush1.bf16.msra.mxu0 %v1587
    %1621 = vmatprep.subr.bf16.mxu0 %v1590
    %1622 = vmatpush1.bf16.msra.mxu0 %v1589
    %1623 = vmatprep.subr.bf16.mxu0 %v1592
    %1624 = vmatpush1.bf16.msra.mxu0 %v1591
    %1625 = vmatprep.subr.bf16.mxu0 %v1594
    %1626 = vmatpush1.bf16.msra.mxu0 %v1593
    %1627 = vmatprep.subr.bf16.mxu0 %v1596
    %1628 = vmatpush1.bf16.msra.mxu0 %v1595
    %1629 = vmatprep.subr.bf16.mxu0 %v1598
    %1630 = vmatpush1.bf16.msra.mxu0 %v1597
    %1631 = vmatprep.subr.bf16.mxu0 %v1600
    %1632 = vmatpush1.bf16.msra.mxu0 %v1599
    %1633 = vmatprep.subr.bf16.mxu0 %v1602
    %1634 = vmatpush1.bf16.msra.mxu0 %v1601
    %1635 = vmatprep.subr.bf16.mxu0 %v1604
    %1636 = vmatpush1.bf16.msra.mxu0 %v1603
    %1637 = vmatprep.subr.bf16.mxu0 %v1606
    %1638 = vmatpush1.bf16.msra.mxu0 %v1605
    %1639 = vmatprep.subr.bf16.mxu0 %v1608
    %1640 = vmatpush1.bf16.msra.mxu0 %v1607
    %1641 = vmatprep.subr.bf16.mxu0 %v1610
    %1642 = vmatpush1.bf16.msra.mxu0 %v1609
    %1643 = vmatprep.subr.bf16.mxu0 %v1612
    %1644 = vmatpush1.bf16.msra.mxu0 %v1611
    %1645 = vmatprep.mubr.bf16.mxu0 %v1580
    %1646 = vmatmul.mubr.bf16.gmra.mrb[0].mxu0 %v1579
    %v1647 = vpop.f32.mrb[0].mxu0
    %v1648 = vadd.f32 %v1494, %v1647
    %v1649 = vpop.f32.mrb[0].mxu0
    %v1650 = vadd.f32 %v1496, %v1649
    %v1651 = vpop.f32.mrb[0].mxu0
    %v1652 = vpop.f32.mrb[0].mxu0
    %1653 = vdwg.mxu0
    %v1654 = vadd.f32 %v1648, %v1329
    %v1655 = vadd.f32 %v1650, %v1333
    %v1656 = vtanh.pop %v1654
    %v1657 = vtanh.pop %v1655
    %v1658 = vpack.c.bf16 %v1656, %v1656
    %v1659 = vpack.c.bf16 %v1657, %v1657
    %1660 = vmatprep.subr.bf16.mxu0 %v1428
    %1661 = vmatpush1.bf16.msra.mxu0 %v1427
    %1662 = vmatprep.subr.bf16.mxu0 %v1430
    %1663 = vmatpush1.bf16.msra.mxu0 %v1429
    %1664 = vmatprep.subr.bf16.mxu0 %v1432
    %1665 = vmatpush1.bf16.msra.mxu0 %v1431
    %1666 = vmatprep.subr.bf16.mxu0 %v1434
    %1667 = vmatpush1.bf16.msra.mxu0 %v1433
    %1668 = vmatprep.subr.bf16.mxu0 %v1436
    %1669 = vmatpush1.bf16.msra.mxu0 %v1435
    %1670 = vmatprep.subr.bf16.mxu0 %v1438
    %1671 = vmatpush1.bf16.msra.mxu0 %v1437
    %1672 = vmatprep.subr.bf16.mxu0 %v1440
    %1673 = vmatpush1.bf16.msra.mxu0 %v1439
    %1674 = vmatprep.subr.bf16.mxu0 %v1442
    %1675 = vmatpush1.bf16.msra.mxu0 %v1441
    %1676 = vmatprep.subr.bf16.mxu0 %v1444
    %1677 = vmatpush1.bf16.msra.mxu0 %v1443
    %1678 = vmatprep.subr.bf16.mxu0 %v1446
    %1679 = vmatpush1.bf16.msra.mxu0 %v1445
    %1680 = vmatprep.subr.bf16.mxu0 %v1448
    %1681 = vmatpush1.bf16.msra.mxu0 %v1447
    %1682 = vmatprep.subr.bf16.mxu0 %v1450
    %1683 = vmatpush1.bf16.msra.mxu0 %v1449
    %1684 = vmatprep.subr.bf16.mxu0 %v1452
    %1685 = vmatpush1.bf16.msra.mxu0 %v1451
    %1686 = vmatprep.subr.bf16.mxu0 %v1454
    %1687 = vmatpush1.bf16.msra.mxu0 %v1453
    %1688 = vmatprep.subr.bf16.mxu0 %v1456
    %1689 = vmatpush1.bf16.msra.mxu0 %v1455
    %1690 = vmatprep.subr.bf16.mxu0 %v1458
    %1691 = vmatpush1.bf16.msra.mxu0 %v1457
    %1692 = vmatprep.mubr.bf16.mxu0 %v1659
    %1693 = vmatmul.mubr.bf16.gmra.mrb[0].mxu0 %v1658
    %v1694 = vpop.f32.mrb[0].mxu0
    %v1695 = vadd.f32 0.0, %v1694
    %v1696 = vpop.f32.mrb[0].mxu0
    %v1697 = vadd.f32 0.0, %v1696
    %v1698 = vpop.f32.mrb[0].mxu0
    %v1699 = vpop.f32.mrb[0].mxu0
    %1700 = vdwg.mxu0
    %1701 = vmatprep.subr.bf16.mxu0 %v1501
    %1702 = vmatpush1.bf16.msra.mxu0 %v1500
    %1703 = vmatprep.subr.bf16.mxu0 %v1503
    %1704 = vmatpush1.bf16.msra.mxu0 %v1502
    %1705 = vmatprep.subr.bf16.mxu0 %v1505
    %1706 = vmatpush1.bf16.msra.mxu0 %v1504
    %1707 = vmatprep.subr.bf16.mxu0 %v1507
    %1708 = vmatpush1.bf16.msra.mxu0 %v1506
    %1709 = vmatprep.subr.bf16.mxu0 %v1509
    %1710 = vmatpush1.bf16.msra.mxu0 %v1508
    %1711 = vmatprep.subr.bf16.mxu0 %v1511
    %1712 = vmatpush1.bf16.msra.mxu0 %v1510
    %1713 = vmatprep.subr.bf16.mxu0 %v1513
    %1714 = vmatpush1.bf16.msra.mxu0 %v1512
    %1715 = vmatprep.subr.bf16.mxu0 %v1515
    %1716 = vmatpush1.bf16.msra.mxu0 %v1514
    %1717 = vmatprep.subr.bf16.mxu0 %v1517
    %1718 = vmatpush1.bf16.msra.mxu0 %v1516
    %1719 = vmatprep.subr.bf16.mxu0 %v1519
    %1720 = vmatpush1.bf16.msra.mxu0 %v1518
    %1721 = vmatprep.subr.bf16.mxu0 %v1521
    %1722 = vmatpush1.bf16.msra.mxu0 %v1520
    %1723 = vmatprep.subr.bf16.mxu0 %v1523
    %1724 = vmatpush1.bf16.msra.mxu0 %v1522
    %1725 = vmatprep.subr.bf16.mxu0 %v1525
    %1726 = vmatpush1.bf16.msra.mxu0 %v1524
    %1727 = vmatprep.subr.bf16.mxu0 %v1527
    %1728 = vmatpush1.bf16.msra.mxu0 %v1526
    %1729 = vmatprep.subr.bf16.mxu0 %v1529
    %1730 = vmatpush1.bf16.msra.mxu0 %v1528
    %1731 = vmatprep.subr.bf16.mxu0 %v1531
    %1732 = vmatpush1.bf16.msra.mxu0 %v1530
    %1733 = vmatprep.mubr.bf16.mxu0 %v1580
    %1734 = vmatmul.mubr.bf16.gmra.mrb[0].mxu0 %v1579
    %v1735 = vpop.f32.mrb[0].mxu0
    %v1736 = vadd.f32 0.0, %v1735
    %v1737 = vpop.f32.mrb[0].mxu0
    %v1738 = vadd.f32 0.0, %v1737
    %v1739 = vpop.f32.mrb[0].mxu0
    %v1740 = vpop.f32.mrb[0].mxu0
    %1741 = vdwg.mxu0
    %v1742 = vld [vmem:[#allocation2 + $0x20] sm:$0xff]
    %v1743 = vld [vmem:[#allocation2 + $0x28] sm:$0xff]
    %v1744 = vadd.f32 %v1742, %v1736
    %v1745 = vadd.f32 %v1743, %v1738
    %v1746 = vtanh.pop %v1744
    %v1747 = vtanh.pop %v1745
    %v1748 = vpack.c.bf16 %v1746, %v1746
    %v1749 = vpack.c.bf16 %v1747, %v1747
    %1750 = vmatprep.subr.bf16.mxu0 %v1582
    %1751 = vmatpush1.bf16.msra.mxu0 %v1581
    %1752 = vmatprep.subr.bf16.mxu0 %v1584
    %1753 = vmatpush1.bf16.msra.mxu0 %v1583
    %1754 = vmatprep.subr.bf16.mxu0 %v1586
    %1755 = vmatpush1.bf16.msra.mxu0 %v1585
    %1756 = vmatprep.subr.bf16.mxu0 %v1588
    %1757 = vmatpush1.bf16.msra.mxu0 %v1587
    %1758 = vmatprep.subr.bf16.mxu0 %v1590
    %1759 = vmatpush1.bf16.msra.mxu0 %v1589
    %1760 = vmatprep.subr.bf16.mxu0 %v1592
    %1761 = vmatpush1.bf16.msra.mxu0 %v1591
    %1762 = vmatprep.subr.bf16.mxu0 %v1594
    %1763 = vmatpush1.bf16.msra.mxu0 %v1593
    %1764 = vmatprep.subr.bf16.mxu0 %v1596
    %1765 = vmatpush1.bf16.msra.mxu0 %v1595
    %1766 = vmatprep.subr.bf16.mxu0 %v1598
    %1767 = vmatpush1.bf16.msra.mxu0 %v1597
    %1768 = vmatprep.subr.bf16.mxu0 %v1600
    %1769 = vmatpush1.bf16.msra.mxu0 %v1599
    %1770 = vmatprep.subr.bf16.mxu0 %v1602
    %1771 = vmatpush1.bf16.msra.mxu0 %v1601
    %1772 = vmatprep.subr.bf16.mxu0 %v1604
    %1773 = vmatpush1.bf16.msra.mxu0 %v1603
    %1774 = vmatprep.subr.bf16.mxu0 %v1606
    %1775 = vmatpush1.bf16.msra.mxu0 %v1605
    %1776 = vmatprep.subr.bf16.mxu0 %v1608
    %1777 = vmatpush1.bf16.msra.mxu0 %v1607
    %1778 = vmatprep.subr.bf16.mxu0 %v1610
    %1779 = vmatpush1.bf16.msra.mxu0 %v1609
    %1780 = vmatprep.subr.bf16.mxu0 %v1612
    %1781 = vmatpush1.bf16.msra.mxu0 %v1611
    %1782 = vmatprep.mubr.bf16.mxu0 %v1749
    %1783 = vmatmul.mubr.bf16.gmra.mrb[0].mxu0 %v1748
    %v1784 = vpop.f32.mrb[0].mxu0
    %v1785 = vadd.f32 %v1695, %v1784
    %v1786 = vpop.f32.mrb[0].mxu0
    %v1787 = vadd.f32 %v1697, %v1786
    %v1788 = vpop.f32.mrb[0].mxu0
    %v1789 = vpop.f32.mrb[0].mxu0
    %1790 = vdwg.mxu0
    %v1791 = vadd.f32 %v1785, %v1329
    %v1792 = vadd.f32 %v1787, %v1333
    %v1793 = vtanh.pop %v1791
    %v1794 = vtanh.pop %v1792
    %v1795 = vpack.c.bf16 %v1793, %v1793
    %v1796 = vpack.c.bf16 %v1794, %v1794
    %1797 = vmatprep.subr.bf16.mxu0 %v1428
    %1798 = vmatpush1.bf16.msra.mxu0 %v1427
    %1799 = vmatprep.subr.bf16.mxu0 %v1430
    %1800 = vmatpush1.bf16.msra.mxu0 %v1429
    %1801 = vmatprep.subr.bf16.mxu0 %v1432
    %1802 = vmatpush1.bf16.msra.mxu0 %v1431
    %1803 = vmatprep.subr.bf16.mxu0 %v1434
    %1804 = vmatpush1.bf16.msra.mxu0 %v1433
    %1805 = vmatprep.subr.bf16.mxu0 %v1436
    %1806 = vmatpush1.bf16.msra.mxu0 %v1435
    %1807 = vmatprep.subr.bf16.mxu0 %v1438
    %1808 = vmatpush1.bf16.msra.mxu0 %v1437
    %1809 = vmatprep.subr.bf16.mxu0 %v1440
    %1810 = vmatpush1.bf16.msra.mxu0 %v1439
    %1811 = vmatprep.subr.bf16.mxu0 %v1442
    %1812 = vmatpush1.bf16.msra.mxu0 %v1441
    %1813 = vmatprep.subr.bf16.mxu0 %v1444
    %1814 = vmatpush1.bf16.msra.mxu0 %v1443
    %1815 = vmatprep.subr.bf16.mxu0 %v1446
    %1816 = vmatpush1.bf16.msra.mxu0 %v1445
    %1817 = vmatprep.subr.bf16.mxu0 %v1448
    %1818 = vmatpush1.bf16.msra.mxu0 %v1447
    %1819 = vmatprep.subr.bf16.mxu0 %v1450
    %1820 = vmatpush1.bf16.msra.mxu0 %v1449
    %1821 = vmatprep.subr.bf16.mxu0 %v1452
    %1822 = vmatpush1.bf16.msra.mxu0 %v1451
    %1823 = vmatprep.subr.bf16.mxu0 %v1454
    %1824 = vmatpush1.bf16.msra.mxu0 %v1453
    %1825 = vmatprep.subr.bf16.mxu0 %v1456
    %1826 = vmatpush1.bf16.msra.mxu0 %v1455
    %1827 = vmatprep.subr.bf16.mxu0 %v1458
    %1828 = vmatpush1.bf16.msra.mxu0 %v1457
    %1829 = vmatprep.mubr.bf16.mxu0 %v1796
    %1830 = vmatmul.mubr.bf16.gmra.mrb[0].mxu0 %v1795
    %v1831 = vpop.f32.mrb[0].mxu0
    %v1832 = vadd.f32 0.0, %v1831
    %v1833 = vpop.f32.mrb[0].mxu0
    %v1834 = vadd.f32 0.0, %v1833
    %v1835 = vpop.f32.mrb[0].mxu0
    %v1836 = vpop.f32.mrb[0].mxu0
    %1837 = vdwg.mxu0
    %1838 = vmatprep.subr.bf16.mxu0 %v1501
    %1839 = vmatpush1.bf16.msra.mxu0 %v1500
    %1840 = vmatprep.subr.bf16.mxu0 %v1503
    %1841 = vmatpush1.bf16.msra.mxu0 %v1502
    %1842 = vmatprep.subr.bf16.mxu0 %v1505
    %1843 = vmatpush1.bf16.msra.mxu0 %v1504
    %1844 = vmatprep.subr.bf16.mxu0 %v1507
    %1845 = vmatpush1.bf16.msra.mxu0 %v1506
    %1846 = vmatprep.subr.bf16.mxu0 %v1509
    %1847 = vmatpush1.bf16.msra.mxu0 %v1508
    %1848 = vmatprep.subr.bf16.mxu0 %v1511
    %1849 = vmatpush1.bf16.msra.mxu0 %v1510
    %1850 = vmatprep.subr.bf16.mxu0 %v1513
    %1851 = vmatpush1.bf16.msra.mxu0 %v1512
    %1852 = vmatprep.subr.bf16.mxu0 %v1515
    %1853 = vmatpush1.bf16.msra.mxu0 %v1514
    %1854 = vmatprep.subr.bf16.mxu0 %v1517
    %1855 = vmatpush1.bf16.msra.mxu0 %v1516
    %1856 = vmatprep.subr.bf16.mxu0 %v1519
    %1857 = vmatpush1.bf16.msra.mxu0 %v1518
    %1858 = vmatprep.subr.bf16.mxu0 %v1521
    %1859 = vmatpush1.bf16.msra.mxu0 %v1520
    %1860 = vmatprep.subr.bf16.mxu0 %v1523
    %1861 = vmatpush1.bf16.msra.mxu0 %v1522
    %1862 = vmatprep.subr.bf16.mxu0 %v1525
    %1863 = vmatpush1.bf16.msra.mxu0 %v1524
    %1864 = vmatprep.subr.bf16.mxu0 %v1527
    %1865 = vmatpush1.bf16.msra.mxu0 %v1526
    %1866 = vmatprep.subr.bf16.mxu0 %v1529
    %1867 = vmatpush1.bf16.msra.mxu0 %v1528
    %1868 = vmatprep.subr.bf16.mxu0 %v1531
    %1869 = vmatpush1.bf16.msra.mxu0 %v1530
    %1870 = vmatprep.mubr.bf16.mxu0 %v1749
    %1871 = vmatmul.mubr.bf16.gmra.mrb[0].mxu0 %v1748
    %v1872 = vpop.f32.mrb[0].mxu0
    %v1873 = vadd.f32 0.0, %v1872
    %v1874 = vpop.f32.mrb[0].mxu0
    %v1875 = vadd.f32 0.0, %v1874
    %v1876 = vpop.f32.mrb[0].mxu0
    %v1877 = vpop.f32.mrb[0].mxu0
    %1878 = vdwg.mxu0
    %v1879 = vld [vmem:[#allocation2 + $0x30] sm:$0xff]
    %v1880 = vld [vmem:[#allocation2 + $0x38] sm:$0xff]
    %v1881 = vadd.f32 %v1879, %v1873
    %v1882 = vadd.f32 %v1880, %v1875
    %v1883 = vtanh.pop %v1881
    %v1884 = vtanh.pop %v1882
    %v1885 = vpack.c.bf16 %v1883, %v1883
    %v1886 = vpack.c.bf16 %v1884, %v1884
    %1887 = vmatprep.subr.bf16.mxu0 %v1582
    %1888 = vmatpush1.bf16.msra.mxu0 %v1581
    %1889 = vmatprep.subr.bf16.mxu0 %v1584
    %1890 = vmatpush1.bf16.msra.mxu0 %v1583
    %1891 = vmatprep.subr.bf16.mxu0 %v1586
    %1892 = vmatpush1.bf16.msra.mxu0 %v1585
    %1893 = vmatprep.subr.bf16.mxu0 %v1588
    %1894 = vmatpush1.bf16.msra.mxu0 %v1587
    %1895 = vmatprep.subr.bf16.mxu0 %v1590
    %1896 = vmatpush1.bf16.msra.mxu0 %v1589
    %1897 = vmatprep.subr.bf16.mxu0 %v1592
    %1898 = vmatpush1.bf16.msra.mxu0 %v1591
    %1899 = vmatprep.subr.bf16.mxu0 %v1594
    %1900 = vmatpush1.bf16.msra.mxu0 %v1593
    %1901 = vmatprep.subr.bf16.mxu0 %v1596
    %1902 = vmatpush1.bf16.msra.mxu0 %v1595
    %1903 = vmatprep.subr.bf16.mxu0 %v1598
    %1904 = vmatpush1.bf16.msra.mxu0 %v1597
    %1905 = vmatprep.subr.bf16.mxu0 %v1600
    %1906 = vmatpush1.bf16.msra.mxu0 %v1599
    %1907 = vmatprep.subr.bf16.mxu0 %v1602
    %1908 = vmatpush1.bf16.msra.mxu0 %v1601
    %1909 = vmatprep.subr.bf16.mxu0 %v1604
    %1910 = vmatpush1.bf16.msra.mxu0 %v1603
    %1911 = vmatprep.subr.bf16.mxu0 %v1606
    %1912 = vmatpush1.bf16.msra.mxu0 %v1605
    %1913 = vmatprep.subr.bf16.mxu0 %v1608
    %1914 = vmatpush1.bf16.msra.mxu0 %v1607
    %1915 = vmatprep.subr.bf16.mxu0 %v1610
    %1916 = vmatpush1.bf16.msra.mxu0 %v1609
    %1917 = vmatprep.subr.bf16.mxu0 %v1612
    %1918 = vmatpush1.bf16.msra.mxu0 %v1611
    %1919 = vmatprep.mubr.bf16.mxu0 %v1886
    %1920 = vmatmul.mubr.bf16.gmra.mrb[0].mxu0 %v1885
    %v1921 = vpop.f32.mrb[0].mxu0
    %v1922 = vadd.f32 %v1832, %v1921
    %v1923 = vpop.f32.mrb[0].mxu0
    %v1924 = vadd.f32 %v1834, %v1923
    %v1925 = vpop.f32.mrb[0].mxu0
    %v1926 = vpop.f32.mrb[0].mxu0
    %1927 = vdwg.mxu0
    %v1928 = vadd.f32 %v1922, %v1329
    %v1929 = vadd.f32 %v1924, %v1333
    %v1930 = vtanh.pop %v1928
    %v1931 = vtanh.pop %v1929
    %v1932 = vpack.c.bf16 %v1930, %v1930
    %v1933 = vpack.c.bf16 %v1931, %v1931
    %1934 = vmatprep.subr.bf16.mxu0 %v1428
    %1935 = vmatpush1.bf16.msra.mxu0 %v1427
    %1936 = vmatprep.subr.bf16.mxu0 %v1430
    %1937 = vmatpush1.bf16.msra.mxu0 %v1429
    %1938 = vmatprep.subr.bf16.mxu0 %v1432
    %1939 = vmatpush1.bf16.msra.mxu0 %v1431
    %1940 = vmatprep.subr.bf16.mxu0 %v1434
    %1941 = vmatpush1.bf16.msra.mxu0 %v1433
    %1942 = vmatprep.subr.bf16.mxu0 %v1436
    %1943 = vmatpush1.bf16.msra.mxu0 %v1435
    %1944 = vmatprep.subr.bf16.mxu0 %v1438
    %1945 = vmatpush1.bf16.msra.mxu0 %v1437
    %1946 = vmatprep.subr.bf16.mxu0 %v1440
    %1947 = vmatpush1.bf16.msra.mxu0 %v1439
    %1948 = vmatprep.subr.bf16.mxu0 %v1442
    %1949 = vmatpush1.bf16.msra.mxu0 %v1441
    %1950 = vmatprep.subr.bf16.mxu0 %v1444
    %1951 = vmatpush1.bf16.msra.mxu0 %v1443
    %1952 = vmatprep.subr.bf16.mxu0 %v1446
    %1953 = vmatpush1.bf16.msra.mxu0 %v1445
    %1954 = vmatprep.subr.bf16.mxu0 %v1448
    %1955 = vmatpush1.bf16.msra.mxu0 %v1447
    %1956 = vmatprep.subr.bf16.mxu0 %v1450
    %1957 = vmatpush1.bf16.msra.mxu0 %v1449
    %1958 = vmatprep.subr.bf16.mxu0 %v1452
    %1959 = vmatpush1.bf16.msra.mxu0 %v1451
    %1960 = vmatprep.subr.bf16.mxu0 %v1454
    %1961 = vmatpush1.bf16.msra.mxu0 %v1453
    %1962 = vmatprep.subr.bf16.mxu0 %v1456
    %1963 = vmatpush1.bf16.msra.mxu0 %v1455
    %1964 = vmatprep.subr.bf16.mxu0 %v1458
    %1965 = vmatpush1.bf16.msra.mxu0 %v1457
    %1966 = vmatprep.mubr.bf16.mxu0 %v1933
    %1967 = vmatmul.mubr.bf16.gmra.mrb[0].mxu0 %v1932
    %v1968 = vpop.f32.mrb[0].mxu0
    %v1969 = vadd.f32 0.0, %v1968
    %v1970 = vpop.f32.mrb[0].mxu0
    %v1971 = vadd.f32 0.0, %v1970
    %v1972 = vpop.f32.mrb[0].mxu0
    %v1973 = vpop.f32.mrb[0].mxu0
    %1974 = vdwg.mxu0
    %1975 = vmatprep.subr.bf16.mxu0 %v1501
    %1976 = vmatpush1.bf16.msra.mxu0 %v1500
    %1977 = vmatprep.subr.bf16.mxu0 %v1503
    %1978 = vmatpush1.bf16.msra.mxu0 %v1502
    %1979 = vmatprep.subr.bf16.mxu0 %v1505
    %1980 = vmatpush1.bf16.msra.mxu0 %v1504
    %1981 = vmatprep.subr.bf16.mxu0 %v1507
    %1982 = vmatpush1.bf16.msra.mxu0 %v1506
    %1983 = vmatprep.subr.bf16.mxu0 %v1509
    %1984 = vmatpush1.bf16.msra.mxu0 %v1508
    %1985 = vmatprep.subr.bf16.mxu0 %v1511
    %1986 = vmatpush1.bf16.msra.mxu0 %v1510
    %1987 = vmatprep.subr.bf16.mxu0 %v1513
    %1988 = vmatpush1.bf16.msra.mxu0 %v1512
    %1989 = vmatprep.subr.bf16.mxu0 %v1515
    %1990 = vmatpush1.bf16.msra.mxu0 %v1514
    %1991 = vmatprep.subr.bf16.mxu0 %v1517
    %1992 = vmatpush1.bf16.msra.mxu0 %v1516
    %1993 = vmatprep.subr.bf16.mxu0 %v1519
    %1994 = vmatpush1.bf16.msra.mxu0 %v1518
    %1995 = vmatprep.subr.bf16.mxu0 %v1521
    %1996 = vmatpush1.bf16.msra.mxu0 %v1520
    %1997 = vmatprep.subr.bf16.mxu0 %v1523
    %1998 = vmatpush1.bf16.msra.mxu0 %v1522
    %1999 = vmatprep.subr.bf16.mxu0 %v1525
    %2000 = vmatpush1.bf16.msra.mxu0 %v1524
    %2001 = vmatprep.subr.bf16.mxu0 %v1527
    %2002 = vmatpush1.bf16.msra.mxu0 %v1526
    %2003 = vmatprep.subr.bf16.mxu0 %v1529
    %2004 = vmatpush1.bf16.msra.mxu0 %v1528
    %2005 = vmatprep.subr.bf16.mxu0 %v1531
    %2006 = vmatpush1.bf16.msra.mxu0 %v1530
    %2007 = vmatprep.mubr.bf16.mxu0 %v1886
    %2008 = vmatmul.mubr.bf16.gmra.mrb[0].mxu0 %v1885
    %v2009 = vpop.f32.mrb[0].mxu0
    %v2010 = vadd.f32 0.0, %v2009
    %v2011 = vpop.f32.mrb[0].mxu0
    %v2012 = vadd.f32 0.0, %v2011
    %v2013 = vpop.f32.mrb[0].mxu0
    %v2014 = vpop.f32.mrb[0].mxu0
    %2015 = vdwg.mxu0
    %v2016 = vld [vmem:[#allocation2 + $0x40] sm:$0xff]
    %v2017 = vld [vmem:[#allocation2 + $0x48] sm:$0xff]
    %v2018 = vadd.f32 %v2016, %v2010
    %v2019 = vadd.f32 %v2017, %v2012
    %v2020 = vtanh.pop %v2018
    %v2021 = vtanh.pop %v2019
    %v2022 = vpack.c.bf16 %v2020, %v2020
    %v2023 = vpack.c.bf16 %v2021, %v2021
    %2024 = vmatprep.subr.bf16.mxu0 %v1582
    %2025 = vmatpush1.bf16.msra.mxu0 %v1581
    %2026 = vmatprep.subr.bf16.mxu0 %v1584
    %2027 = vmatpush1.bf16.msra.mxu0 %v1583
    %2028 = vmatprep.subr.bf16.mxu0 %v1586
    %2029 = vmatpush1.bf16.msra.mxu0 %v1585
    %2030 = vmatprep.subr.bf16.mxu0 %v1588
    %2031 = vmatpush1.bf16.msra.mxu0 %v1587
    %2032 = vmatprep.subr.bf16.mxu0 %v1590
    %2033 = vmatpush1.bf16.msra.mxu0 %v1589
    %2034 = vmatprep.subr.bf16.mxu0 %v1592
    %2035 = vmatpush1.bf16.msra.mxu0 %v1591
    %2036 = vmatprep.subr.bf16.mxu0 %v1594
    %2037 = vmatpush1.bf16.msra.mxu0 %v1593
    %2038 = vmatprep.subr.bf16.mxu0 %v1596
    %2039 = vmatpush1.bf16.msra.mxu0 %v1595
    %2040 = vmatprep.subr.bf16.mxu0 %v1598
    %2041 = vmatpush1.bf16.msra.mxu0 %v1597
    %2042 = vmatprep.subr.bf16.mxu0 %v1600
    %2043 = vmatpush1.bf16.msra.mxu0 %v1599
    %2044 = vmatprep.subr.bf16.mxu0 %v1602
    %2045 = vmatpush1.bf16.msra.mxu0 %v1601
    %2046 = vmatprep.subr.bf16.mxu0 %v1604
    %2047 = vmatpush1.bf16.msra.mxu0 %v1603
    %2048 = vmatprep.subr.bf16.mxu0 %v1606
    %2049 = vmatpush1.bf16.msra.mxu0 %v1605
    %2050 = vmatprep.subr.bf16.mxu0 %v1608
    %2051 = vmatpush1.bf16.msra.mxu0 %v1607
    %2052 = vmatprep.subr.bf16.mxu0 %v1610
    %2053 = vmatpush1.bf16.msra.mxu0 %v1609
    %2054 = vmatprep.subr.bf16.mxu0 %v1612
    %2055 = vmatpush1.bf16.msra.mxu0 %v1611
    %2056 = vmatprep.mubr.bf16.mxu0 %v2023
    %2057 = vmatmul.mubr.bf16.gmra.mrb[0].mxu0 %v2022
    %v2058 = vpop.f32.mrb[0].mxu0
    %v2059 = vadd.f32 %v1969, %v2058
    %v2060 = vpop.f32.mrb[0].mxu0
    %v2061 = vadd.f32 %v1971, %v2060
    %v2062 = vpop.f32.mrb[0].mxu0
    %v2063 = vpop.f32.mrb[0].mxu0
    %2064 = vdwg.mxu0
    %v2065 = vadd.f32 %v2059, %v1329
    %v2066 = vadd.f32 %v2061, %v1333
    %v2067 = vtanh.pop %v2065
    %v2068 = vtanh.pop %v2066
    %v2069 = vpack.c.bf16 %v2067, %v2067
    %v2070 = vpack.c.bf16 %v2068, %v2068
    %2071 = vmatprep.subr.bf16.mxu0 %v1428
    %2072 = vmatpush1.bf16.msra.mxu0 %v1427
    %2073 = vmatprep.subr.bf16.mxu0 %v1430
    %2074 = vmatpush1.bf16.msra.mxu0 %v1429
    %2075 = vmatprep.subr.bf16.mxu0 %v1432
    %2076 = vmatpush1.bf16.msra.mxu0 %v1431
    %2077 = vmatprep.subr.bf16.mxu0 %v1434
    %2078 = vmatpush1.bf16.msra.mxu0 %v1433
    %2079 = vmatprep.subr.bf16.mxu0 %v1436
    %2080 = vmatpush1.bf16.msra.mxu0 %v1435
    %2081 = vmatprep.subr.bf16.mxu0 %v1438
    %2082 = vmatpush1.bf16.msra.mxu0 %v1437
    %2083 = vmatprep.subr.bf16.mxu0 %v1440
    %2084 = vmatpush1.bf16.msra.mxu0 %v1439
    %2085 = vmatprep.subr.bf16.mxu0 %v1442
    %2086 = vmatpush1.bf16.msra.mxu0 %v1441
    %2087 = vmatprep.subr.bf16.mxu0 %v1444
    %2088 = vmatpush1.bf16.msra.mxu0 %v1443
    %2089 = vmatprep.subr.bf16.mxu0 %v1446
    %2090 = vmatpush1.bf16.msra.mxu0 %v1445
    %2091 = vmatprep.subr.bf16.mxu0 %v1448
    %2092 = vmatpush1.bf16.msra.mxu0 %v1447
    %2093 = vmatprep.subr.bf16.mxu0 %v1450
    %2094 = vmatpush1.bf16.msra.mxu0 %v1449
    %2095 = vmatprep.subr.bf16.mxu0 %v1452
    %2096 = vmatpush1.bf16.msra.mxu0 %v1451
    %2097 = vmatprep.subr.bf16.mxu0 %v1454
    %2098 = vmatpush1.bf16.msra.mxu0 %v1453
    %2099 = vmatprep.subr.bf16.mxu0 %v1456
    %2100 = vmatpush1.bf16.msra.mxu0 %v1455
    %2101 = vmatprep.subr.bf16.mxu0 %v1458
    %2102 = vmatpush1.bf16.msra.mxu0 %v1457
    %2103 = vmatprep.mubr.bf16.mxu0 %v2070
    %2104 = vmatmul.mubr.bf16.gmra.mrb[0].mxu0 %v2069
    %v2105 = vpop.f32.mrb[0].mxu0
    %v2106 = vadd.f32 0.0, %v2105
    %v2107 = vpop.f32.mrb[0].mxu0
    %v2108 = vadd.f32 0.0, %v2107
    %v2109 = vpop.f32.mrb[0].mxu0
    %v2110 = vpop.f32.mrb[0].mxu0
    %2111 = vdwg.mxu0
    %2112 = vmatprep.subr.bf16.mxu0 %v1501
    %2113 = vmatpush1.bf16.msra.mxu0 %v1500
    %2114 = vmatprep.subr.bf16.mxu0 %v1503
    %2115 = vmatpush1.bf16.msra.mxu0 %v1502
    %2116 = vmatprep.subr.bf16.mxu0 %v1505
    %2117 = vmatpush1.bf16.msra.mxu0 %v1504
    %2118 = vmatprep.subr.bf16.mxu0 %v1507
    %2119 = vmatpush1.bf16.msra.mxu0 %v1506
    %2120 = vmatprep.subr.bf16.mxu0 %v1509
    %2121 = vmatpush1.bf16.msra.mxu0 %v1508
    %2122 = vmatprep.subr.bf16.mxu0 %v1511
    %2123 = vmatpush1.bf16.msra.mxu0 %v1510
    %2124 = vmatprep.subr.bf16.mxu0 %v1513
    %2125 = vmatpush1.bf16.msra.mxu0 %v1512
    %2126 = vmatprep.subr.bf16.mxu0 %v1515
    %2127 = vmatpush1.bf16.msra.mxu0 %v1514
    %2128 = vmatprep.subr.bf16.mxu0 %v1517
    %2129 = vmatpush1.bf16.msra.mxu0 %v1516
    %2130 = vmatprep.subr.bf16.mxu0 %v1519
    %2131 = vmatpush1.bf16.msra.mxu0 %v1518
    %2132 = vmatprep.subr.bf16.mxu0 %v1521
    %2133 = vmatpush1.bf16.msra.mxu0 %v1520
    %2134 = vmatprep.subr.bf16.mxu0 %v1523
    %2135 = vmatpush1.bf16.msra.mxu0 %v1522
    %2136 = vmatprep.subr.bf16.mxu0 %v1525
    %2137 = vmatpush1.bf16.msra.mxu0 %v1524
    %2138 = vmatprep.subr.bf16.mxu0 %v1527
    %2139 = vmatpush1.bf16.msra.mxu0 %v1526
    %2140 = vmatprep.subr.bf16.mxu0 %v1529
    %2141 = vmatpush1.bf16.msra.mxu0 %v1528
    %2142 = vmatprep.subr.bf16.mxu0 %v1531
    %2143 = vmatpush1.bf16.msra.mxu0 %v1530
    %2144 = vmatprep.mubr.bf16.mxu0 %v2023
    %2145 = vmatmul.mubr.bf16.gmra.mrb[0].mxu0 %v2022
    %v2146 = vpop.f32.mrb[0].mxu0
    %v2147 = vadd.f32 0.0, %v2146
    %v2148 = vpop.f32.mrb[0].mxu0
    %v2149 = vadd.f32 0.0, %v2148
    %v2150 = vpop.f32.mrb[0].mxu0
    %v2151 = vpop.f32.mrb[0].mxu0
    %2152 = vdwg.mxu0
    %v2153 = vld [vmem:[#allocation2 + $0x50] sm:$0xff]
    %v2154 = vld [vmem:[#allocation2 + $0x58] sm:$0xff]
    %v2155 = vadd.f32 %v2153, %v2147
    %v2156 = vadd.f32 %v2154, %v2149
    %v2157 = vtanh.pop %v2155
    %v2158 = vtanh.pop %v2156
    %v2159 = vpack.c.bf16 %v2157, %v2157
    %v2160 = vpack.c.bf16 %v2158, %v2158
    %2161 = vmatprep.subr.bf16.mxu0 %v1582
    %2162 = vmatpush1.bf16.msra.mxu0 %v1581
    %2163 = vmatprep.subr.bf16.mxu0 %v1584
    %2164 = vmatpush1.bf16.msra.mxu0 %v1583
    %2165 = vmatprep.subr.bf16.mxu0 %v1586
    %2166 = vmatpush1.bf16.msra.mxu0 %v1585
    %2167 = vmatprep.subr.bf16.mxu0 %v1588
    %2168 = vmatpush1.bf16.msra.mxu0 %v1587
    %2169 = vmatprep.subr.bf16.mxu0 %v1590
    %2170 = vmatpush1.bf16.msra.mxu0 %v1589
    %2171 = vmatprep.subr.bf16.mxu0 %v1592
    %2172 = vmatpush1.bf16.msra.mxu0 %v1591
    %2173 = vmatprep.subr.bf16.mxu0 %v1594
    %2174 = vmatpush1.bf16.msra.mxu0 %v1593
    %2175 = vmatprep.subr.bf16.mxu0 %v1596
    %2176 = vmatpush1.bf16.msra.mxu0 %v1595
    %2177 = vmatprep.subr.bf16.mxu0 %v1598
    %2178 = vmatpush1.bf16.msra.mxu0 %v1597
    %2179 = vmatprep.subr.bf16.mxu0 %v1600
    %2180 = vmatpush1.bf16.msra.mxu0 %v1599
    %2181 = vmatprep.subr.bf16.mxu0 %v1602
    %2182 = vmatpush1.bf16.msra.mxu0 %v1601
    %2183 = vmatprep.subr.bf16.mxu0 %v1604
    %2184 = vmatpush1.bf16.msra.mxu0 %v1603
    %2185 = vmatprep.subr.bf16.mxu0 %v1606
    %2186 = vmatpush1.bf16.msra.mxu0 %v1605
    %2187 = vmatprep.subr.bf16.mxu0 %v1608
    %2188 = vmatpush1.bf16.msra.mxu0 %v1607
    %2189 = vmatprep.subr.bf16.mxu0 %v1610
    %2190 = vmatpush1.bf16.msra.mxu0 %v1609
    %2191 = vmatprep.subr.bf16.mxu0 %v1612
    %2192 = vmatpush1.bf16.msra.mxu0 %v1611
    %2193 = vmatprep.mubr.bf16.mxu0 %v2160
    %2194 = vmatmul.mubr.bf16.gmra.mrb[0].mxu0 %v2159
    %v2195 = vpop.f32.mrb[0].mxu0
    %v2196 = vadd.f32 %v2106, %v2195
    %v2197 = vpop.f32.mrb[0].mxu0
    %v2198 = vadd.f32 %v2108, %v2197
    %v2199 = vpop.f32.mrb[0].mxu0
    %v2200 = vpop.f32.mrb[0].mxu0
    %2201 = vdwg.mxu0
    %v2202 = vadd.f32 %v2196, %v1329
    %v2203 = vadd.f32 %v2198, %v1333
    %v2204 = vtanh.pop %v2202
    %v2205 = vtanh.pop %v2203
    %v2206 = vpack.c.bf16 %v2204, %v2204
    %v2207 = vpack.c.bf16 %v2205, %v2205
    %2208 = vmatprep.subr.bf16.mxu0 %v1428
    %2209 = vmatpush1.bf16.msra.mxu0 %v1427
    %2210 = vmatprep.subr.bf16.mxu0 %v1430
    %2211 = vmatpush1.bf16.msra.mxu0 %v1429
    %2212 = vmatprep.subr.bf16.mxu0 %v1432
    %2213 = vmatpush1.bf16.msra.mxu0 %v1431
    %2214 = vmatprep.subr.bf16.mxu0 %v1434
    %2215 = vmatpush1.bf16.msra.mxu0 %v1433
    %2216 = vmatprep.subr.bf16.mxu0 %v1436
    %2217 = vmatpush1.bf16.msra.mxu0 %v1435
    %2218 = vmatprep.subr.bf16.mxu0 %v1438
    %2219 = vmatpush1.bf16.msra.mxu0 %v1437
    %2220 = vmatprep.subr.bf16.mxu0 %v1440
    %2221 = vmatpush1.bf16.msra.mxu0 %v1439
    %2222 = vmatprep.subr.bf16.mxu0 %v1442
    %2223 = vmatpush1.bf16.msra.mxu0 %v1441
    %2224 = vmatprep.subr.bf16.mxu0 %v1444
    %2225 = vmatpush1.bf16.msra.mxu0 %v1443
    %2226 = vmatprep.subr.bf16.mxu0 %v1446
    %2227 = vmatpush1.bf16.msra.mxu0 %v1445
    %2228 = vmatprep.subr.bf16.mxu0 %v1448
    %2229 = vmatpush1.bf16.msra.mxu0 %v1447
    %2230 = vmatprep.subr.bf16.mxu0 %v1450
    %2231 = vmatpush1.bf16.msra.mxu0 %v1449
    %2232 = vmatprep.subr.bf16.mxu0 %v1452
    %2233 = vmatpush1.bf16.msra.mxu0 %v1451
    %2234 = vmatprep.subr.bf16.mxu0 %v1454
    %2235 = vmatpush1.bf16.msra.mxu0 %v1453
    %2236 = vmatprep.subr.bf16.mxu0 %v1456
    %2237 = vmatpush1.bf16.msra.mxu0 %v1455
    %2238 = vmatprep.subr.bf16.mxu0 %v1458
    %2239 = vmatpush1.bf16.msra.mxu0 %v1457
    %2240 = vmatprep.mubr.bf16.mxu0 %v2207
    %2241 = vmatmul.mubr.bf16.gmra.mrb[0].mxu0 %v2206
    %v2242 = vpop.f32.mrb[0].mxu0
    %v2243 = vadd.f32 0.0, %v2242
    %v2244 = vpop.f32.mrb[0].mxu0
    %v2245 = vadd.f32 0.0, %v2244
    %v2246 = vpop.f32.mrb[0].mxu0
    %v2247 = vpop.f32.mrb[0].mxu0
    %2248 = vdwg.mxu0
    %2249 = vmatprep.subr.bf16.mxu0 %v1501
    %2250 = vmatpush1.bf16.msra.mxu0 %v1500
    %2251 = vmatprep.subr.bf16.mxu0 %v1503
    %2252 = vmatpush1.bf16.msra.mxu0 %v1502
    %2253 = vmatprep.subr.bf16.mxu0 %v1505
    %2254 = vmatpush1.bf16.msra.mxu0 %v1504
    %2255 = vmatprep.subr.bf16.mxu0 %v1507
    %2256 = vmatpush1.bf16.msra.mxu0 %v1506
    %2257 = vmatprep.subr.bf16.mxu0 %v1509
    %2258 = vmatpush1.bf16.msra.mxu0 %v1508
    %2259 = vmatprep.subr.bf16.mxu0 %v1511
    %2260 = vmatpush1.bf16.msra.mxu0 %v1510
    %2261 = vmatprep.subr.bf16.mxu0 %v1513
    %2262 = vmatpush1.bf16.msra.mxu0 %v1512
    %2263 = vmatprep.subr.bf16.mxu0 %v1515
    %2264 = vmatpush1.bf16.msra.mxu0 %v1514
    %2265 = vmatprep.subr.bf16.mxu0 %v1517
    %2266 = vmatpush1.bf16.msra.mxu0 %v1516
    %2267 = vmatprep.subr.bf16.mxu0 %v1519
    %2268 = vmatpush1.bf16.msra.mxu0 %v1518
    %2269 = vmatprep.subr.bf16.mxu0 %v1521
    %2270 = vmatpush1.bf16.msra.mxu0 %v1520
    %2271 = vmatprep.subr.bf16.mxu0 %v1523
    %2272 = vmatpush1.bf16.msra.mxu0 %v1522
    %2273 = vmatprep.subr.bf16.mxu0 %v1525
    %2274 = vmatpush1.bf16.msra.mxu0 %v1524
    %2275 = vmatprep.subr.bf16.mxu0 %v1527
    %2276 = vmatpush1.bf16.msra.mxu0 %v1526
    %2277 = vmatprep.subr.bf16.mxu0 %v1529
    %2278 = vmatpush1.bf16.msra.mxu0 %v1528
    %2279 = vmatprep.subr.bf16.mxu0 %v1531
    %2280 = vmatpush1.bf16.msra.mxu0 %v1530
    %2281 = vmatprep.mubr.bf16.mxu0 %v2160
    %2282 = vmatmul.mubr.bf16.gmra.mrb[0].mxu0 %v2159
    %v2283 = vpop.f32.mrb[0].mxu0
    %v2284 = vadd.f32 0.0, %v2283
    %v2285 = vpop.f32.mrb[0].mxu0
    %v2286 = vadd.f32 0.0, %v2285
    %v2287 = vpop.f32.mrb[0].mxu0
    %v2288 = vpop.f32.mrb[0].mxu0
    %2289 = vdwg.mxu0
    %v2290 = vld [vmem:[#allocation2 + $0x60] sm:$0xff]
    %v2291 = vld [vmem:[#allocation2 + $0x68] sm:$0xff]
    %v2292 = vadd.f32 %v2290, %v2284
    %v2293 = vadd.f32 %v2291, %v2286
    %v2294 = vtanh.pop %v2292
    %v2295 = vtanh.pop %v2293
    %v2296 = vpack.c.bf16 %v2294, %v2294
    %v2297 = vpack.c.bf16 %v2295, %v2295
    %2298 = vmatprep.subr.bf16.mxu0 %v1582
    %2299 = vmatpush1.bf16.msra.mxu0 %v1581
    %2300 = vmatprep.subr.bf16.mxu0 %v1584
    %2301 = vmatpush1.bf16.msra.mxu0 %v1583
    %2302 = vmatprep.subr.bf16.mxu0 %v1586
    %2303 = vmatpush1.bf16.msra.mxu0 %v1585
    %2304 = vmatprep.subr.bf16.mxu0 %v1588
    %2305 = vmatpush1.bf16.msra.mxu0 %v1587
    %2306 = vmatprep.subr.bf16.mxu0 %v1590
    %2307 = vmatpush1.bf16.msra.mxu0 %v1589
    %2308 = vmatprep.subr.bf16.mxu0 %v1592
    %2309 = vmatpush1.bf16.msra.mxu0 %v1591
    %2310 = vmatprep.subr.bf16.mxu0 %v1594
    %2311 = vmatpush1.bf16.msra.mxu0 %v1593
    %2312 = vmatprep.subr.bf16.mxu0 %v1596
    %2313 = vmatpush1.bf16.msra.mxu0 %v1595
    %2314 = vmatprep.subr.bf16.mxu0 %v1598
    %2315 = vmatpush1.bf16.msra.mxu0 %v1597
    %2316 = vmatprep.subr.bf16.mxu0 %v1600
    %2317 = vmatpush1.bf16.msra.mxu0 %v1599
    %2318 = vmatprep.subr.bf16.mxu0 %v1602
    %2319 = vmatpush1.bf16.msra.mxu0 %v1601
    %2320 = vmatprep.subr.bf16.mxu0 %v1604
    %2321 = vmatpush1.bf16.msra.mxu0 %v1603
    %2322 = vmatprep.subr.bf16.mxu0 %v1606
    %2323 = vmatpush1.bf16.msra.mxu0 %v1605
    %2324 = vmatprep.subr.bf16.mxu0 %v1608
    %2325 = vmatpush1.bf16.msra.mxu0 %v1607
    %2326 = vmatprep.subr.bf16.mxu0 %v1610
    %2327 = vmatpush1.bf16.msra.mxu0 %v1609
    %2328 = vmatprep.subr.bf16.mxu0 %v1612
    %2329 = vmatpush1.bf16.msra.mxu0 %v1611
    %2330 = vmatprep.mubr.bf16.mxu0 %v2297
    %2331 = vmatmul.mubr.bf16.gmra.mrb[0].mxu0 %v2296
    %v2332 = vpop.f32.mrb[0].mxu0
    %v2333 = vadd.f32 %v2243, %v2332
    %v2334 = vpop.f32.mrb[0].mxu0
    %v2335 = vadd.f32 %v2245, %v2334
    %v2336 = vpop.f32.mrb[0].mxu0
    %v2337 = vpop.f32.mrb[0].mxu0
    %2338 = vdwg.mxu0
    %v2339 = vadd.f32 %v2333, %v1329
    %v2340 = vadd.f32 %v2335, %v1333
    %v2341 = vtanh.pop %v2339
    %v2342 = vtanh.pop %v2340
    %v2343 = vpack.c.bf16 %v2341, %v2341
    %v2344 = vpack.c.bf16 %v2342, %v2342
    %2345 = vmatprep.subr.bf16.mxu0 %v1428
    %2346 = vmatpush1.bf16.msra.mxu0 %v1427
    %2347 = vmatprep.subr.bf16.mxu0 %v1430
    %2348 = vmatpush1.bf16.msra.mxu0 %v1429
    %2349 = vmatprep.subr.bf16.mxu0 %v1432
    %2350 = vmatpush1.bf16.msra.mxu0 %v1431
    %2351 = vmatprep.subr.bf16.mxu0 %v1434
    %2352 = vmatpush1.bf16.msra.mxu0 %v1433
    %2353 = vmatprep.subr.bf16.mxu0 %v1436
    %2354 = vmatpush1.bf16.msra.mxu0 %v1435
    %2355 = vmatprep.subr.bf16.mxu0 %v1438
    %2356 = vmatpush1.bf16.msra.mxu0 %v1437
    %2357 = vmatprep.subr.bf16.mxu0 %v1440
    %2358 = vmatpush1.bf16.msra.mxu0 %v1439
    %2359 = vmatprep.subr.bf16.mxu0 %v1442
    %2360 = vmatpush1.bf16.msra.mxu0 %v1441
    %2361 = vmatprep.subr.bf16.mxu0 %v1444
    %2362 = vmatpush1.bf16.msra.mxu0 %v1443
    %2363 = vmatprep.subr.bf16.mxu0 %v1446
    %2364 = vmatpush1.bf16.msra.mxu0 %v1445
    %2365 = vmatprep.subr.bf16.mxu0 %v1448
    %2366 = vmatpush1.bf16.msra.mxu0 %v1447
    %2367 = vmatprep.subr.bf16.mxu0 %v1450
    %2368 = vmatpush1.bf16.msra.mxu0 %v1449
    %2369 = vmatprep.subr.bf16.mxu0 %v1452
    %2370 = vmatpush1.bf16.msra.mxu0 %v1451
    %2371 = vmatprep.subr.bf16.mxu0 %v1454
    %2372 = vmatpush1.bf16.msra.mxu0 %v1453
    %2373 = vmatprep.subr.bf16.mxu0 %v1456
    %2374 = vmatpush1.bf16.msra.mxu0 %v1455
    %2375 = vmatprep.subr.bf16.mxu0 %v1458
    %2376 = vmatpush1.bf16.msra.mxu0 %v1457
    %2377 = vmatprep.mubr.bf16.mxu0 %v2344
    %2378 = vmatmul.mubr.bf16.gmra.mrb[0].mxu0 %v2343
    %v2379 = vpop.f32.mrb[0].mxu0
    %v2380 = vadd.f32 0.0, %v2379
    %v2381 = vpop.f32.mrb[0].mxu0
    %v2382 = vadd.f32 0.0, %v2381
    %v2383 = vpop.f32.mrb[0].mxu0
    %v2384 = vpop.f32.mrb[0].mxu0
    %2385 = vdwg.mxu0
    %2386 = vmatprep.subr.bf16.mxu0 %v1501
    %2387 = vmatpush1.bf16.msra.mxu0 %v1500
    %2388 = vmatprep.subr.bf16.mxu0 %v1503
    %2389 = vmatpush1.bf16.msra.mxu0 %v1502
    %2390 = vmatprep.subr.bf16.mxu0 %v1505
    %2391 = vmatpush1.bf16.msra.mxu0 %v1504
    %2392 = vmatprep.subr.bf16.mxu0 %v1507
    %2393 = vmatpush1.bf16.msra.mxu0 %v1506
    %2394 = vmatprep.subr.bf16.mxu0 %v1509
    %2395 = vmatpush1.bf16.msra.mxu0 %v1508
    %2396 = vmatprep.subr.bf16.mxu0 %v1511
    %2397 = vmatpush1.bf16.msra.mxu0 %v1510
    %2398 = vmatprep.subr.bf16.mxu0 %v1513
    %2399 = vmatpush1.bf16.msra.mxu0 %v1512
    %2400 = vmatprep.subr.bf16.mxu0 %v1515
    %2401 = vmatpush1.bf16.msra.mxu0 %v1514
    %2402 = vmatprep.subr.bf16.mxu0 %v1517
    %2403 = vmatpush1.bf16.msra.mxu0 %v1516
    %2404 = vmatprep.subr.bf16.mxu0 %v1519
    %2405 = vmatpush1.bf16.msra.mxu0 %v1518
    %2406 = vmatprep.subr.bf16.mxu0 %v1521
    %2407 = vmatpush1.bf16.msra.mxu0 %v1520
    %2408 = vmatprep.subr.bf16.mxu0 %v1523
    %2409 = vmatpush1.bf16.msra.mxu0 %v1522
    %2410 = vmatprep.subr.bf16.mxu0 %v1525
    %2411 = vmatpush1.bf16.msra.mxu0 %v1524
    %2412 = vmatprep.subr.bf16.mxu0 %v1527
    %2413 = vmatpush1.bf16.msra.mxu0 %v1526
    %2414 = vmatprep.subr.bf16.mxu0 %v1529
    %2415 = vmatpush1.bf16.msra.mxu0 %v1528
    %2416 = vmatprep.subr.bf16.mxu0 %v1531
    %2417 = vmatpush1.bf16.msra.mxu0 %v1530
    %2418 = vmatprep.mubr.bf16.mxu0 %v2297
    %2419 = vmatmul.mubr.bf16.gmra.mrb[0].mxu0 %v2296
    %v2420 = vpop.f32.mrb[0].mxu0
    %v2421 = vadd.f32 0.0, %v2420
    %v2422 = vpop.f32.mrb[0].mxu0
    %v2423 = vadd.f32 0.0, %v2422
    %v2424 = vpop.f32.mrb[0].mxu0
    %v2425 = vpop.f32.mrb[0].mxu0
    %2426 = vdwg.mxu0
    %v2427 = vld [vmem:[#allocation2 + $0x70] sm:$0xff]
    %v2428 = vld [vmem:[#allocation2 + $0x78] sm:$0xff]
    %v2429 = vadd.f32 %v2427, %v2421
    %v2430 = vadd.f32 %v2428, %v2423
    %v2431 = vtanh.pop %v2429
    %v2432 = vtanh.pop %v2430
    %v2433 = vpack.c.bf16 %v2431, %v2431
    %v2434 = vpack.c.bf16 %v2432, %v2432
    %2435 = vmatprep.subr.bf16.mxu0 %v1582
    %2436 = vmatpush1.bf16.msra.mxu0 %v1581
    %2437 = vmatprep.subr.bf16.mxu0 %v1584
    %2438 = vmatpush1.bf16.msra.mxu0 %v1583
    %2439 = vmatprep.subr.bf16.mxu0 %v1586
    %2440 = vmatpush1.bf16.msra.mxu0 %v1585
    %2441 = vmatprep.subr.bf16.mxu0 %v1588
    %2442 = vmatpush1.bf16.msra.mxu0 %v1587
    %2443 = vmatprep.subr.bf16.mxu0 %v1590
    %2444 = vmatpush1.bf16.msra.mxu0 %v1589
    %2445 = vmatprep.subr.bf16.mxu0 %v1592
    %2446 = vmatpush1.bf16.msra.mxu0 %v1591
    %2447 = vmatprep.subr.bf16.mxu0 %v1594
    %2448 = vmatpush1.bf16.msra.mxu0 %v1593
    %2449 = vmatprep.subr.bf16.mxu0 %v1596
    %2450 = vmatpush1.bf16.msra.mxu0 %v1595
    %2451 = vmatprep.subr.bf16.mxu0 %v1598
    %2452 = vmatpush1.bf16.msra.mxu0 %v1597
    %2453 = vmatprep.subr.bf16.mxu0 %v1600
    %2454 = vmatpush1.bf16.msra.mxu0 %v1599
    %2455 = vmatprep.subr.bf16.mxu0 %v1602
    %2456 = vmatpush1.bf16.msra.mxu0 %v1601
    %2457 = vmatprep.subr.bf16.mxu0 %v1604
    %2458 = vmatpush1.bf16.msra.mxu0 %v1603
    %2459 = vmatprep.subr.bf16.mxu0 %v1606
    %2460 = vmatpush1.bf16.msra.mxu0 %v1605
    %2461 = vmatprep.subr.bf16.mxu0 %v1608
    %2462 = vmatpush1.bf16.msra.mxu0 %v1607
    %2463 = vmatprep.subr.bf16.mxu0 %v1610
    %2464 = vmatpush1.bf16.msra.mxu0 %v1609
    %2465 = vmatprep.subr.bf16.mxu0 %v1612
    %2466 = vmatpush1.bf16.msra.mxu0 %v1611
    %2467 = vmatprep.mubr.bf16.mxu0 %v2434
    %2468 = vmatmul.mubr.bf16.gmra.mrb[0].mxu0 %v2433
    %v2469 = vpop.f32.mrb[0].mxu0
    %v2470 = vadd.f32 %v2380, %v2469
    %v2471 = vpop.f32.mrb[0].mxu0
    %v2472 = vadd.f32 %v2382, %v2471
    %v2473 = vpop.f32.mrb[0].mxu0
    %v2474 = vpop.f32.mrb[0].mxu0
    %2475 = vdwg.mxu0
    %v2476 = vadd.f32 %v2470, %v1329
    %v2477 = vadd.f32 %v2472, %v1333
    %v2478 = vtanh.pop %v2476
    %v2479 = vtanh.pop %v2477
    %s2480 = sshll.u32 %s1341, 4
    %2481 = dma.done %s674, %s2480
    %v2482 = vpack.c.bf16 %v2478, %v2478
    %v2483 = vpack.c.bf16 %v2479, %v2479
    %v2484 = vld [vmem:[#allocation6] sm:$0xff]
    %v2485 = vld [vmem:[#allocation6 + $0x8] sm:$0xff]
    %v2486 = vld [vmem:[#allocation6 + $0x10] sm:$0xff]
    %v2487 = vld [vmem:[#allocation6 + $0x18] sm:$0xff]
    %v2488 = vld [vmem:[#allocation6 + $0x20] sm:$0xff]
    %v2489 = vld [vmem:[#allocation6 + $0x28] sm:$0xff]
    %v2490 = vld [vmem:[#allocation6 + $0x30] sm:$0xff]
    %v2491 = vld [vmem:[#allocation6 + $0x38] sm:$0xff]
    %v2492 = vld [vmem:[#allocation6 + $0x40] sm:$0xff]
    %v2493 = vld [vmem:[#allocation6 + $0x48] sm:$0xff]
    %v2494 = vld [vmem:[#allocation6 + $0x50] sm:$0xff]
    %v2495 = vld [vmem:[#allocation6 + $0x58] sm:$0xff]
    %v2496 = vld [vmem:[#allocation6 + $0x60] sm:$0xff]
    %v2497 = vld [vmem:[#allocation6 + $0x68] sm:$0xff]
    %v2498 = vld [vmem:[#allocation6 + $0x70] sm:$0xff]
    %v2499 = vld [vmem:[#allocation6 + $0x78] sm:$0xff]
    %v2500 = vld [vmem:[#allocation6 + $0x80] sm:$0xff]
    %v2501 = vld [vmem:[#allocation6 + $0x88] sm:$0xff]
    %v2502 = vld [vmem:[#allocation6 + $0x90] sm:$0xff]
    %v2503 = vld [vmem:[#allocation6 + $0x98] sm:$0xff]
    %v2504 = vld [vmem:[#allocation6 + $0xa0] sm:$0xff]
    %v2505 = vld [vmem:[#allocation6 + $0xa8] sm:$0xff]
    %v2506 = vld [vmem:[#allocation6 + $0xb0] sm:$0xff]
    %v2507 = vld [vmem:[#allocation6 + $0xb8] sm:$0xff]
    %v2508 = vld [vmem:[#allocation6 + $0xc0] sm:$0xff]
    %v2509 = vld [vmem:[#allocation6 + $0xc8] sm:$0xff]
    %v2510 = vld [vmem:[#allocation6 + $0xd0] sm:$0xff]
    %v2511 = vld [vmem:[#allocation6 + $0xd8] sm:$0xff]
    %v2512 = vld [vmem:[#allocation6 + $0xe0] sm:$0xff]
    %v2513 = vld [vmem:[#allocation6 + $0xe8] sm:$0xff]
    %v2514 = vld [vmem:[#allocation6 + $0xf0] sm:$0xff]
    %v2515 = vld [vmem:[#allocation6 + $0xf8] sm:$0xff]
    %v2516 = vld [vmem:[%s8] sm:$0x3]
    %v2518 = vlaneseq
    %v2519 = vshrl.u32 %v2518, 7
    %v2520 = vsub.s32 0, %v2519
    %v2521 = vrot.slane %v2516, %v2520
    %v2522 = vlaneseq
    %v2523 = vshrl.u32 %v2522, 7
    %v2524 = vsub.s32 1, %v2523
    %v2525 = vrot.slane %v2516, %v2524
    %2528 = vmatprep.subr.bf16.mxu0 %v2485
    %2529 = vmatpush1.bf16.msra.mxu0 %v2484
    %2530 = vmatprep.subr.bf16.mxu0 %v2487
    %2531 = vmatpush1.bf16.msra.mxu0 %v2486
    %2532 = vmatprep.subr.bf16.mxu0 %v2489
    %2533 = vmatpush1.bf16.msra.mxu0 %v2488
    %2534 = vmatprep.subr.bf16.mxu0 %v2491
    %2535 = vmatpush1.bf16.msra.mxu0 %v2490
    %2536 = vmatprep.subr.bf16.mxu0 %v2493
    %2537 = vmatpush1.bf16.msra.mxu0 %v2492
    %2538 = vmatprep.subr.bf16.mxu0 %v2495
    %2539 = vmatpush1.bf16.msra.mxu0 %v2494
    %2540 = vmatprep.subr.bf16.mxu0 %v2497
    %2541 = vmatpush1.bf16.msra.mxu0 %v2496
    %2542 = vmatprep.subr.bf16.mxu0 %v2499
    %2543 = vmatpush1.bf16.msra.mxu0 %v2498
    %2544 = vmatprep.subr.bf16.mxu0 %v2501
    %2545 = vmatpush1.bf16.msra.mxu0 %v2500
    %2546 = vmatprep.subr.bf16.mxu0 %v2503
    %2547 = vmatpush1.bf16.msra.mxu0 %v2502
    %2548 = vmatprep.subr.bf16.mxu0 %v2505
    %2549 = vmatpush1.bf16.msra.mxu0 %v2504
    %2550 = vmatprep.subr.bf16.mxu0 %v2507
    %2551 = vmatpush1.bf16.msra.mxu0 %v2506
    %2552 = vmatprep.subr.bf16.mxu0 %v2509
    %2553 = vmatpush1.bf16.msra.mxu0 %v2508
    %2554 = vmatprep.subr.bf16.mxu0 %v2511
    %2555 = vmatpush1.bf16.msra.mxu0 %v2510
    %2556 = vmatprep.subr.bf16.mxu0 %v2513
    %2557 = vmatpush1.bf16.msra.mxu0 %v2512
    %2558 = vmatprep.subr.bf16.mxu0 %v2515
    %2559 = vmatpush1.bf16.msra.mxu0 %v2514
    %2560 = vmatprep.mubr.bf16.mxu0 %v2483
    %2561 = vmatmul.mubr.bf16.gmra.mrb[0].mxu0 %v2482
    %v2562 = vpop.f32.mrb[0].mxu0
    %v2563 = vadd.f32 %v2521, %v2562
    %v2564 = vpop.f32.mrb[0].mxu0
    %v2565 = vadd.f32 %v2525, %v2564
    %v2566 = vpop.f32.mrb[0].mxu0
    %v2567 = vpop.f32.mrb[0].mxu0
    %2568 = vdwg.mxu0
    %v2569 = vmax.f32 %v2563, 0.0
    %v2570 = vmax.f32 %v2565, 0.0
    %s2571 = smul.u32 %s1340, 1
    %s2572 = sshll.u32 %s2571, 4
    %2573 = dma.done %s709, %s2572
    %v2574 = vpack.c.bf16 %v2569, %v2569
    %v2575 = vpack.c.bf16 %v2570, %v2570
    %v2576 = vld [vmem:[#allocation7] sm:$0xff]
    %v2577 = vld [vmem:[#allocation7 + $0x8] sm:$0xff]
    %v2578 = vld [vmem:[#allocation7 + $0x10] sm:$0xff]
    %v2579 = vld [vmem:[#allocation7 + $0x18] sm:$0xff]
    %v2580 = vld [vmem:[#allocation7 + $0x20] sm:$0xff]
    %v2581 = vld [vmem:[#allocation7 + $0x28] sm:$0xff]
    %v2582 = vld [vmem:[#allocation7 + $0x30] sm:$0xff]
    %v2583 = vld [vmem:[#allocation7 + $0x38] sm:$0xff]
    %v2584 = vld [vmem:[#allocation7 + $0x40] sm:$0xff]
    %v2585 = vld [vmem:[#allocation7 + $0x48] sm:$0xff]
    %v2586 = vld [vmem:[#allocation7 + $0x50] sm:$0xff]
    %v2587 = vld [vmem:[#allocation7 + $0x58] sm:$0xff]
    %v2588 = vld [vmem:[#allocation7 + $0x60] sm:$0xff]
    %v2589 = vld [vmem:[#allocation7 + $0x68] sm:$0xff]
    %v2590 = vld [vmem:[#allocation7 + $0x70] sm:$0xff]
    %v2591 = vld [vmem:[#allocation7 + $0x78] sm:$0xff]
    %v2592 = vld [vmem:[%s10] sm:$0x1]
    %v2594 = vlaneseq
    %v2595 = vshrl.u32 %v2594, 7
    %v2596 = vsub.s32 0, %v2595
    %v2597 = vrot.slane %v2592, %v2596
    %2599 = vmatprep.subr.bf16.mxu0 0
    %2600 = vmatpush1.bf16.msra.mxu0 %v2576
    %2601 = vmatprep.subr.bf16.mxu0 0
    %2602 = vmatpush1.bf16.msra.mxu0 %v2577
    %2603 = vmatprep.subr.bf16.mxu0 0
    %2604 = vmatpush1.bf16.msra.mxu0 %v2578
    %2605 = vmatprep.subr.bf16.mxu0 0
    %2606 = vmatpush1.bf16.msra.mxu0 %v2579
    %2607 = vmatprep.subr.bf16.mxu0 0
    %2608 = vmatpush1.bf16.msra.mxu0 %v2580
    %2609 = vmatprep.subr.bf16.mxu0 0
    %2610 = vmatpush1.bf16.msra.mxu0 %v2581
    %2611 = vmatprep.subr.bf16.mxu0 0
    %2612 = vmatpush1.bf16.msra.mxu0 %v2582
    %2613 = vmatprep.subr.bf16.mxu0 0
    %2614 = vmatpush1.bf16.msra.mxu0 %v2583
    %2615 = vmatprep.subr.bf16.mxu0 0
    %2616 = vmatpush1.bf16.msra.mxu0 %v2584
    %2617 = vmatprep.subr.bf16.mxu0 0
    %2618 = vmatpush1.bf16.msra.mxu0 %v2585
    %2619 = vmatprep.subr.bf16.mxu0 0
    %2620 = vmatpush1.bf16.msra.mxu0 %v2586
    %2621 = vmatprep.subr.bf16.mxu0 0
    %2622 = vmatpush1.bf16.msra.mxu0 %v2587
    %2623 = vmatprep.subr.bf16.mxu0 0
    %2624 = vmatpush1.bf16.msra.mxu0 %v2588
    %2625 = vmatprep.subr.bf16.mxu0 0
    %2626 = vmatpush1.bf16.msra.mxu0 %v2589
    %2627 = vmatprep.subr.bf16.mxu0 0
    %2628 = vmatpush1.bf16.msra.mxu0 %v2590
    %2629 = vmatprep.subr.bf16.mxu0 0
    %2630 = vmatpush1.bf16.msra.mxu0 %v2591
    %2631 = vmatprep.mubr.bf16.mxu0 %v2575
    %2632 = vmatmul.mubr.bf16.gmra.mrb[0].mxu0 %v2574
    %v2633 = vpop.f32.mrb[0].mxu0
    %v2634 = vadd.f32 %v2597, %v2633
    %v2635 = vpop.f32.mrb[0].mxu0
    %v2636 = vpop.f32.mrb[0].mxu0
    %v2637 = vpop.f32.mrb[0].mxu0
    %2638 = vdwg.mxu0
    %2639 = vst [vmem:[%s11] sm:$0xff] %v2634
    // Predicated region
    $region134: #{rnn1_forward.1} parent=1 // pred_check
      _
    $region135: #{rnn1_forward.1} parent=1 // pred_check_branch
      %2641 = sbr.rel (0) target = $region137
    $region136: #{rnn1_forward.1} parent=1 // pred_region
      _
    $region137: #{rnn1_forward.1} parent=1 // pred_fallthru
      _
    // Predicated region
    $region138: #{rnn1_forward.1} parent=1 // pred_check
      _
    $region139: #{rnn1_forward.1} parent=1 // pred_check_branch
      %2643 = sbr.rel (0) target = $region141
    $region140: #{rnn1_forward.1} parent=1 // pred_region
      _
    $region141: #{rnn1_forward.1} parent=1 // pred_fallthru
      _
  %2644 = vsyncmov [#allocation8]
  %s2645 = vpop.sfrf %2644
  %p2646 = scmp.eq.s32.totalorder %s2645, 0
  %p2647 = pneg %p2646
  %2649 = shalt.err (%p2647)
  %s2650 = scalar_lea.sflag [#allocation8], 1
  %2651 = vsyncmov %s2650
  %s2652 = vpop.sfrf %2651
  %p2653 = scmp.eq.s32.totalorder %s2652, 0
  %p2654 = pneg %p2653
  %2656 = shalt.err (%p2654)
  %s2657 = scalar_lea.sflag [#allocation8], 2
  %2658 = vsyncmov %s2657
  %s2659 = vpop.sfrf %2658
  %p2660 = scmp.eq.s32.totalorder %s2659, 0
  %p2661 = pneg %p2660
  %2663 = shalt.err (%p2661)
  %s2664 = scalar_lea.sflag [#allocation8], 3
  %2665 = vsyncmov %s2664
  %s2666 = vpop.sfrf %2665
  %p2667 = scmp.eq.s32.totalorder %s2666, 0
  %p2668 = pneg %p2667
  %2670 = shalt.err (%p2668)
  %s2671 = scalar_lea.sflag [#allocation8], 4
  %2672 = vsyncmov %s2671
  %s2673 = vpop.sfrf %2672
  %p2674 = scmp.eq.s32.totalorder %s2673, 0
  %p2675 = pneg %p2674
  %2677 = shalt.err (%p2675)

</llo_original>
